<compile_context>
chip_gen: v5e
topology: v5e:2x2
jax: 0.10.0
libtpu: 0.0.40
codegen_flags: <defaults>
</compile_context>

<pallas_src>
import jax
import jax.numpy as jnp
from jax.experimental import pallas as pl
from jax.experimental.pallas import tpu as pltpu


def _round_up(x, m):
    return (x + m - 1) // m * m


# ----------------------------------------------------------------------------
# Fused kernel: in-kernel token gather + shared LSTM recurrence (3 encoders
# batch-concatenated) + self-attention over question states + L1 distances +
# attention penalty.
# ----------------------------------------------------------------------------
def answer_selection_kernel(tok_ref, gt_ref, whh_ref, s1t_ref, s2w_ref,
                            h0_ref, c0_ref, out_ref):
    # tok_ref : (T, 3B)    int32 token ids in SMEM (a | b | c batch-concat)
    # gt_ref  : (V, 1, 4H) f32 gate table emb @ W_ih^T, gate order i|f|g|o
    # whh_ref : (4, H, H)  per-gate W_hh^T (i, f, g, o)
    # s1t_ref : (H, da)    S1.weight.T
    # s2w_ref : (1, da)    S2.weight  (r = 1)
    # h0/c0   : (3B, H)    initial hidden / cell (a, b, c stacked)
    # out_ref : (>=8, 128) packed: col0 = pred1, col1 = pred2, [0,2] = penalty
    T = tok_ref.shape[0]
    B3, H = h0_ref.shape
    B = B3 // 3

    # Per-gate recurrent weights, loaded once.  Separate (H, H) matrices mean
    # every gate's dot result starts at lane 0 -> no XLU lane re-alignment on
    # the serial c/h update chain.
    whh_i = whh_ref[0]
    whh_f = whh_ref[1]
    whh_g = whh_ref[2]
    whh_o = whh_ref[3]
    s1t = s1t_ref[...]                 # (H, da)
    s2w = s2w_ref[...]                 # (1, da)

    h = h0_ref[...]                    # (3B, H)
    c = c0_ref[...]                    # (3B, H)

    hq_steps = []                      # question hidden states, kept in vregs
    logit_cols = []                    # per-step attention logits (B, 1)

    # Shared LSTM recurrence, statically unrolled over T.
    # TODO(synk): switch to lax.fori_loop / a T-streaming grid once T grows
    # beyond a few dozen steps (vreg live ranges / VMEM).
    for t in range(T):
        # In-kernel token -> gate-row gather: 3B dynamic leading-dim loads
        # from the VMEM gate table.  Independent of h/c, so the scheduler
        # overlaps it with the previous step's recurrence.
        rows = [gt_ref[tok_ref[t, b]] for b in range(B3)]        # each (1, 4H)
        zx = jnp.concatenate(rows, axis=0)                       # (3B, 4H)
        zi = zx[:, 0 * H:1 * H]
        zf = zx[:, 1 * H:2 * H]
        zg = zx[:, 2 * H:3 * H]
        zo = zx[:, 3 * H:4 * H]

        # Only h @ W_hh_g is on the serial critical path (x @ W_ih is folded
        # into the gate table; the module's LSTM has bias=False).
        # TODO(synk): hold W_hh in MXU weight regs (matmul_push_rhs /
        # matmul_acc_lhs) once the delta is verified with a bundle dump.
        i_g = jax.nn.sigmoid(zi + jnp.dot(h, whh_i, preferred_element_type=jnp.float32))
        f_g = jax.nn.sigmoid(zf + jnp.dot(h, whh_f, preferred_element_type=jnp.float32))
        g_g = jnp.tanh(zg + jnp.dot(h, whh_g, preferred_element_type=jnp.float32))
        o_g = jax.nn.sigmoid(zo + jnp.dot(h, whh_o, preferred_element_type=jnp.float32))
        c = f_g * c + i_g * g_g
        h = o_g * jnp.tanh(c)

        # Per-step attention pieces for the question encoder: off the h/c
        # chain, so they hide under the next step's MXU latency.
        hq = h[0:B, :]                                              # (B, H)
        s1 = jnp.dot(hq, s1t, preferred_element_type=jnp.float32)   # (B, da)
        logit = jnp.sum(jnp.tanh(s1) * s2w, axis=1, keepdims=True)  # (B, 1); r=1
        hq_steps.append(hq)
        logit_cols.append(logit)

    # ---- softmax over time per batch row, attention pooling (r == 1) -------
    s2 = jnp.concatenate(logit_cols, axis=1)                        # (B, T)
    m = jnp.max(s2, axis=1, keepdims=True)
    e = jnp.exp(s2 - m)
    inv = pl.reciprocal(jnp.sum(e, axis=1, keepdims=True), approx=True)
    A = e * inv                                                     # (B, T)
    M = jnp.zeros((B, H), jnp.float32)
    for t in range(T):
        M = M + A[:, t:t + 1] * hq_steps[t]                         # (B, H)
    # penalty: mean_b ||A_b A_b^T - I||_F^2 ; r = 1 -> (sum_t A^2 - 1)^2
    sA2 = jnp.sum(A * A, axis=1, keepdims=True)                     # (B, 1)
    penal = jnp.sum((sA2 - 1.0) ** 2, axis=0, keepdims=True) * (1.0 / B)  # (1, 1)

    # ---- L1 pairwise distances vs. final hidden of encoders b / c ----------
    # PyTorch PairwiseDistance(p=1, eps=1e-6): sum(|x1 - x2 + eps|, dim=1)
    hb = h[B:2 * B, :]
    hc = h[2 * B:3 * B, :]
    eps = 1e-6
    d1 = jnp.sum(jnp.abs(M - hb + eps), axis=1, keepdims=True)      # (B, 1)
    d2 = jnp.sum(jnp.abs(M - hc + eps), axis=1, keepdims=True)      # (B, 1)

    # ---- single packed, lane-padded output --------------------------------
    out_ref[...] = jnp.zeros_like(out_ref)
    out_ref[0:B, 0:2] = jnp.concatenate([d1, d2], axis=1)           # one store
    out_ref[0:1, 2:3] = penal


def _fused_call(tokens, gate_table, whh_t_gates, s1_t, s2_w, h0, c0):
    B3, _ = h0.shape
    B = B3 // 3
    out_rows = max(8, _round_up(B, 8))
    vmem = pl.BlockSpec(memory_space=pltpu.MemorySpace.VMEM)
    smem = pl.BlockSpec(memory_space=pltpu.MemorySpace.SMEM)
    return pl.pallas_call(
        answer_selection_kernel,
        out_shape=jax.ShapeDtypeStruct((out_rows, 128), jnp.float32),
        in_specs=[smem, vmem, vmem, vmem, vmem, vmem, vmem],
        out_specs=vmem,
    )(tokens, gate_table, whh_t_gates, s1_t, s2_w, h0, c0)


# ----------------------------------------------------------------------------
# Full AnswerSelection.forward (train path): returns (prediction1, prediction2)
# plus the attention penalty (stored as self.penal in the original module).
# ----------------------------------------------------------------------------
@jax.jit
def answer_selection_forward(params, batch_a, batch_b, batch_c, init_states):
    emb = params['embedding']                     # (V, E), row 0 = padding
    w_ih, w_hh = params['w_ih'], params['w_hh']   # (4H, E), (4H, H)
    s1_w, s2_w = params['s1'], params['s2']       # (da, H), (r=1, da)
    (h0a, c0a), (h0b, c0b), (h0c, c0c) = init_states
    T, B = batch_a.shape
    H = w_hh.shape[1]

    # Weight-only trace-time folds (no per-example activation traffic):
    # bias-free LSTM => W_ih @ embed(tok) == (embedding @ W_ih^T)[tok].
    gate_table = jnp.dot(emb, w_ih.T)[:, None, :]                  # (V, 1, 4H)
    # Per-gate transposed recurrent weights, PyTorch gate order i|f|g|o.
    whh_t_gates = jnp.transpose(w_hh.reshape(4, H, H), (0, 2, 1))  # (4, H, H)

    # Batch-concatenate the three shared-weight encoders: one recurrence.
    tokens = jnp.concatenate([batch_a, batch_b, batch_c], axis=1).astype(jnp.int32)
    h0 = jnp.concatenate([h0a, h0b, h0c], axis=0)                  # (3B, H)
    c0 = jnp.concatenate([c0a, c0b, c0c], axis=0)                  # (3B, H)

    out = _fused_call(tokens, gate_table, whh_t_gates, s1_w.T, s2_w, h0, c0)
    pred1 = out[0:B, 0:1]
    pred2 = out[0:B, 1:2]
    penal = out[0:1, 2:3]
    return pred1, pred2, penal


if __name__ == "__main__":
    # small shapes consistent with the module
    V, E, H, DA, R = 50, 32, 32, 16, 1      # r = 1 so r*H == H (required by the
                                            # original PairwiseDistance usage)
    B, T = 2, 8

    key = jax.random.PRNGKey(0)
    ks = jax.random.split(key, 14)

    # deterministic parameter init (scaled normals; padding row = 0)
    embedding = jax.random.normal(ks[0], (V, E), jnp.float32) * 0.1
    embedding = embedding.at[0].set(0.0)                  # padding_idx=0
    w_ih = jax.random.normal(ks[1], (4 * H, E), jnp.float32) * 0.1   # LSTM weight_ih
    w_hh = jax.random.normal(ks[2], (4 * H, H), jnp.float32) * 0.1   # LSTM weight_hh
    s1_w = jax.random.normal(ks[3], (DA, H), jnp.float32) * 0.1      # S1.weight
    s2_w = jax.random.normal(ks[4], (R, DA), jnp.float32) * 0.1      # S2.weight
    params = dict(embedding=embedding, w_ih=w_ih, w_hh=w_hh, s1=s1_w, s2=s2_w)

    # token batches in PyTorch layout (seq, batch)
    batch_a = jax.random.randint(ks[5], (T, B), 0, V, dtype=jnp.int32)
    batch_b = jax.random.randint(ks[6], (T, B), 0, V, dtype=jnp.int32)
    batch_c = jax.random.randint(ks[7], (T, B), 0, V, dtype=jnp.int32)

    # initialize_hidden_plus_cell: random-normal initial states (deterministic here)
    init_states = (
        (jax.random.normal(ks[8], (B, H), jnp.float32),
         jax.random.normal(ks[9], (B, H), jnp.float32)),
        (jax.random.normal(ks[10], (B, H), jnp.float32),
         jax.random.normal(ks[11], (B, H), jnp.float32)),
        (jax.random.normal(ks[12], (B, H), jnp.float32),
         jax.random.normal(ks[13], (B, H), jnp.float32)),
    )

    pred1, pred2, penal = answer_selection_forward(
        params, batch_a, batch_b, batch_c, init_states)
    jax.block_until_ready((pred1, pred2, penal))

    assert pred1.shape == (B, 1) and pred2.shape == (B, 1) and penal.shape == (1, 1)
    print("KERNEL_OK")
</pallas_src>

<mosaic_0001>
module attributes {stable_mosaic.version = 11 : i64} {
  func.func @answer_selection_kernel(%arg0: memref<8x6xi32, #tpu.memory_space<smem>>, %arg1: memref<50x1x128xf32, #tpu.memory_space<vmem>>, %arg2: memref<4x32x32xf32, #tpu.memory_space<vmem>>, %arg3: memref<32x16xf32, #tpu.memory_space<vmem>>, %arg4: memref<1x16xf32, #tpu.memory_space<vmem>>, %arg5: memref<6x32xf32, #tpu.memory_space<vmem>>, %arg6: memref<6x32xf32, #tpu.memory_space<vmem>>, %arg7: memref<8x128xf32, #tpu.memory_space<vmem>>) attributes {dimension_semantics = [], scalar_prefetch = 0 : i64, scratch_operands = 0 : i64, tpu.core_type = #tpu.core_type<tc>} {
    %c0 = arith.constant 0 : index
    %c0_0 = arith.constant 0 : index
    %c0_1 = arith.constant 0 : index
    %0 = vector.load %arg2[%c0, %c0_0, %c0_1] : memref<4x32x32xf32, #tpu.memory_space<vmem>>, vector<1x32x32xf32>
    %1 = vector.shape_cast %0 : vector<1x32x32xf32> to vector<32x32xf32>
    %c1 = arith.constant 1 : index
    %c0_2 = arith.constant 0 : index
    %c0_3 = arith.constant 0 : index
    %2 = vector.load %arg2[%c1, %c0_2, %c0_3] : memref<4x32x32xf32, #tpu.memory_space<vmem>>, vector<1x32x32xf32>
    %3 = vector.shape_cast %2 : vector<1x32x32xf32> to vector<32x32xf32>
    %c2 = arith.constant 2 : index
    %c0_4 = arith.constant 0 : index
    %c0_5 = arith.constant 0 : index
    %4 = vector.load %arg2[%c2, %c0_4, %c0_5] : memref<4x32x32xf32, #tpu.memory_space<vmem>>, vector<1x32x32xf32>
    %5 = vector.shape_cast %4 : vector<1x32x32xf32> to vector<32x32xf32>
    %c3 = arith.constant 3 : index
    %c0_6 = arith.constant 0 : index
    %c0_7 = arith.constant 0 : index
    %6 = vector.load %arg2[%c3, %c0_6, %c0_7] : memref<4x32x32xf32, #tpu.memory_space<vmem>>, vector<1x32x32xf32>
    %7 = vector.shape_cast %6 : vector<1x32x32xf32> to vector<32x32xf32>
    %c0_8 = arith.constant 0 : index
    %c0_9 = arith.constant 0 : index
    %8 = vector.load %arg3[%c0_8, %c0_9] : memref<32x16xf32, #tpu.memory_space<vmem>>, vector<32x16xf32>
    %c0_10 = arith.constant 0 : index
    %c0_11 = arith.constant 0 : index
    %9 = vector.load %arg4[%c0_10, %c0_11] : memref<1x16xf32, #tpu.memory_space<vmem>>, vector<1x16xf32>
    %c0_12 = arith.constant 0 : index
    %c0_13 = arith.constant 0 : index
    %10 = vector.load %arg5[%c0_12, %c0_13] : memref<6x32xf32, #tpu.memory_space<vmem>>, vector<6x32xf32>
    %c0_14 = arith.constant 0 : index
    %c0_15 = arith.constant 0 : index
    %11 = vector.load %arg6[%c0_14, %c0_15] : memref<6x32xf32, #tpu.memory_space<vmem>>, vector<6x32xf32>
    %c0_16 = arith.constant 0 : index
    %c0_17 = arith.constant 0 : index
    %12 = memref.load %arg0[%c0_16, %c0_17] : memref<8x6xi32, #tpu.memory_space<smem>>
    %13 = arith.index_cast %12 : i32 to index
    %c0_18 = arith.constant 0 : index
    %c0_19 = arith.constant 0 : index
    %14 = vector.load %arg1[%13, %c0_18, %c0_19] : memref<50x1x128xf32, #tpu.memory_space<vmem>>, vector<1x1x128xf32>
    %15 = vector.shape_cast %14 : vector<1x1x128xf32> to vector<1x128xf32>
    %c0_20 = arith.constant 0 : index
    %c1_21 = arith.constant 1 : index
    %16 = memref.load %arg0[%c0_20, %c1_21] : memref<8x6xi32, #tpu.memory_space<smem>>
    %17 = arith.index_cast %16 : i32 to index
    %c0_22 = arith.constant 0 : index
    %c0_23 = arith.constant 0 : index
    %18 = vector.load %arg1[%17, %c0_22, %c0_23] : memref<50x1x128xf32, #tpu.memory_space<vmem>>, vector<1x1x128xf32>
    %19 = vector.shape_cast %18 : vector<1x1x128xf32> to vector<1x128xf32>
    %c0_24 = arith.constant 0 : index
    %c2_25 = arith.constant 2 : index
    %20 = memref.load %arg0[%c0_24, %c2_25] : memref<8x6xi32, #tpu.memory_space<smem>>
    %21 = arith.index_cast %20 : i32 to index
    %c0_26 = arith.constant 0 : index
    %c0_27 = arith.constant 0 : index
    %22 = vector.load %arg1[%21, %c0_26, %c0_27] : memref<50x1x128xf32, #tpu.memory_space<vmem>>, vector<1x1x128xf32>
    %23 = vector.shape_cast %22 : vector<1x1x128xf32> to vector<1x128xf32>
    %c0_28 = arith.constant 0 : index
    %c3_29 = arith.constant 3 : index
    %24 = memref.load %arg0[%c0_28, %c3_29] : memref<8x6xi32, #tpu.memory_space<smem>>
    %25 = arith.index_cast %24 : i32 to index
    %c0_30 = arith.constant 0 : index
    %c0_31 = arith.constant 0 : index
    %26 = vector.load %arg1[%25, %c0_30, %c0_31] : memref<50x1x128xf32, #tpu.memory_space<vmem>>, vector<1x1x128xf32>
    %27 = vector.shape_cast %26 : vector<1x1x128xf32> to vector<1x128xf32>
    %c0_32 = arith.constant 0 : index
    %c4 = arith.constant 4 : index
    %28 = memref.load %arg0[%c0_32, %c4] : memref<8x6xi32, #tpu.memory_space<smem>>
    %29 = arith.index_cast %28 : i32 to index
    %c0_33 = arith.constant 0 : index
    %c0_34 = arith.constant 0 : index
    %30 = vector.load %arg1[%29, %c0_33, %c0_34] : memref<50x1x128xf32, #tpu.memory_space<vmem>>, vector<1x1x128xf32>
    %31 = vector.shape_cast %30 : vector<1x1x128xf32> to vector<1x128xf32>
    %c0_35 = arith.constant 0 : index
    %c5 = arith.constant 5 : index
    %32 = memref.load %arg0[%c0_35, %c5] : memref<8x6xi32, #tpu.memory_space<smem>>
    %33 = arith.index_cast %32 : i32 to index
    %c0_36 = arith.constant 0 : index
    %c0_37 = arith.constant 0 : index
    %34 = vector.load %arg1[%33, %c0_36, %c0_37] : memref<50x1x128xf32, #tpu.memory_space<vmem>>, vector<1x1x128xf32>
    %35 = vector.shape_cast %34 : vector<1x1x128xf32> to vector<1x128xf32>
    %36 = tpu.concatenate %15, %19, %23, %27, %31, %35 in 0 : vector<1x128xf32>, vector<1x128xf32>, vector<1x128xf32>, vector<1x128xf32>, vector<1x128xf32>, vector<1x128xf32> -> vector<6x128xf32>
    %37 = vector.extract_strided_slice %36 {offsets = [0, 0], sizes = [6, 32], strides = [1, 1]} : vector<6x128xf32> to vector<6x32xf32>
    %38 = vector.extract_strided_slice %36 {offsets = [0, 32], sizes = [6, 32], strides = [1, 1]} : vector<6x128xf32> to vector<6x32xf32>
    %39 = vector.extract_strided_slice %36 {offsets = [0, 64], sizes = [6, 32], strides = [1, 1]} : vector<6x128xf32> to vector<6x32xf32>
    %40 = vector.extract_strided_slice %36 {offsets = [0, 96], sizes = [6, 32], strides = [1, 1]} : vector<6x128xf32> to vector<6x32xf32>
    %cst = arith.constant dense<0.000000e+00> : vector<6x32xf32>
    %41 = tpu.matmul %10, %1, %cst {dimension_numbers = #tpu.dot_dimension_numbers<[1], [0], [0], [1], [0, 0, 1, 1], [], []>} : vector<6x32xf32>, vector<32x32xf32>, vector<6x32xf32> -> vector<6x32xf32>
    %42 = arith.addf %37, %41 : vector<6x32xf32>
    %43 = arith.negf %42 : vector<6x32xf32>
    %44 = math.exp %43 : vector<6x32xf32>
    %cst_38 = arith.constant 1.000000e+00 : f32
    %45 = vector.broadcast %cst_38 : f32 to vector<6x32xf32>
    %46 = arith.addf %45, %44 : vector<6x32xf32>
    %47 = arith.divf %45, %46 : vector<6x32xf32>
    %cst_39 = arith.constant dense<0.000000e+00> : vector<6x32xf32>
    %48 = tpu.matmul %10, %3, %cst_39 {dimension_numbers = #tpu.dot_dimension_numbers<[1], [0], [0], [1], [0, 0, 1, 1], [], []>} : vector<6x32xf32>, vector<32x32xf32>, vector<6x32xf32> -> vector<6x32xf32>
    %49 = arith.addf %38, %48 : vector<6x32xf32>
    %50 = arith.negf %49 : vector<6x32xf32>
    %51 = math.exp %50 : vector<6x32xf32>
    %cst_40 = arith.constant 1.000000e+00 : f32
    %52 = vector.broadcast %cst_40 : f32 to vector<6x32xf32>
    %53 = arith.addf %52, %51 : vector<6x32xf32>
    %54 = arith.divf %52, %53 : vector<6x32xf32>
    %cst_41 = arith.constant dense<0.000000e+00> : vector<6x32xf32>
    %55 = tpu.matmul %10, %5, %cst_41 {dimension_numbers = #tpu.dot_dimension_numbers<[1], [0], [0], [1], [0, 0, 1, 1], [], []>} : vector<6x32xf32>, vector<32x32xf32>, vector<6x32xf32> -> vector<6x32xf32>
    %56 = arith.addf %39, %55 : vector<6x32xf32>
    %57 = math.tanh %56 : vector<6x32xf32>
    %cst_42 = arith.constant dense<0.000000e+00> : vector<6x32xf32>
    %58 = tpu.matmul %10, %7, %cst_42 {dimension_numbers = #tpu.dot_dimension_numbers<[1], [0], [0], [1], [0, 0, 1, 1], [], []>} : vector<6x32xf32>, vector<32x32xf32>, vector<6x32xf32> -> vector<6x32xf32>
    %59 = arith.addf %40, %58 : vector<6x32xf32>
    %60 = arith.negf %59 : vector<6x32xf32>
    %61 = math.exp %60 : vector<6x32xf32>
    %cst_43 = arith.constant 1.000000e+00 : f32
    %62 = vector.broadcast %cst_43 : f32 to vector<6x32xf32>
    %63 = arith.addf %62, %61 : vector<6x32xf32>
    %64 = arith.divf %62, %63 : vector<6x32xf32>
    %65 = arith.mulf %54, %11 : vector<6x32xf32>
    %66 = arith.mulf %47, %57 : vector<6x32xf32>
    %67 = arith.addf %65, %66 : vector<6x32xf32>
    %68 = math.tanh %67 : vector<6x32xf32>
    %69 = arith.mulf %64, %68 : vector<6x32xf32>
    %70 = vector.extract_strided_slice %69 {offsets = [0, 0], sizes = [2, 32], strides = [1, 1]} : vector<6x32xf32> to vector<2x32xf32>
    %cst_44 = arith.constant dense<0.000000e+00> : vector<2x16xf32>
    %71 = tpu.matmul %70, %8, %cst_44 {dimension_numbers = #tpu.dot_dimension_numbers<[1], [0], [0], [1], [0, 0, 1, 1], [], []>} : vector<2x32xf32>, vector<32x16xf32>, vector<2x16xf32> -> vector<2x16xf32>
    %72 = math.tanh %71 : vector<2x16xf32>
    %73 = vector.broadcast %9 : vector<1x16xf32> to vector<2x16xf32>
    %74 = arith.mulf %72, %73 : vector<2x16xf32>
    %cst_45 = arith.constant dense<0.000000e+00> : vector<2xf32>
    %75 = vector.multi_reduction <add>, %74, %cst_45 [1] : vector<2x16xf32> to vector<2xf32>
    %76 = vector.shape_cast %75 : vector<2xf32> to vector<2x1xf32>
    %c1_46 = arith.constant 1 : index
    %c0_47 = arith.constant 0 : index
    %77 = memref.load %arg0[%c1_46, %c0_47] : memref<8x6xi32, #tpu.memory_space<smem>>
    %78 = arith.index_cast %77 : i32 to index
    %c0_48 = arith.constant 0 : index
    %c0_49 = arith.constant 0 : index
    %79 = vector.load %arg1[%78, %c0_48, %c0_49] : memref<50x1x128xf32, #tpu.memory_space<vmem>>, vector<1x1x128xf32>
    %80 = vector.shape_cast %79 : vector<1x1x128xf32> to vector<1x128xf32>
    %c1_50 = arith.constant 1 : index
    %c1_51 = arith.constant 1 : index
    %81 = memref.load %arg0[%c1_50, %c1_51] : memref<8x6xi32, #tpu.memory_space<smem>>
    %82 = arith.index_cast %81 : i32 to index
    %c0_52 = arith.constant 0 : index
    %c0_53 = arith.constant 0 : index
    %83 = vector.load %arg1[%82, %c0_52, %c0_53] : memref<50x1x128xf32, #tpu.memory_space<vmem>>, vector<1x1x128xf32>
    %84 = vector.shape_cast %83 : vector<1x1x128xf32> to vector<1x128xf32>
    %c1_54 = arith.constant 1 : index
    %c2_55 = arith.constant 2 : index
    %85 = memref.load %arg0[%c1_54, %c2_55] : memref<8x6xi32, #tpu.memory_space<smem>>
    %86 = arith.index_cast %85 : i32 to index
    %c0_56 = arith.constant 0 : index
    %c0_57 = arith.constant 0 : index
    %87 = vector.load %arg1[%86, %c0_56, %c0_57] : memref<50x1x128xf32, #tpu.memory_space<vmem>>, vector<1x1x128xf32>
    %88 = vector.shape_cast %87 : vector<1x1x128xf32> to vector<1x128xf32>
    %c1_58 = arith.constant 1 : index
    %c3_59 = arith.constant 3 : index
    %89 = memref.load %arg0[%c1_58, %c3_59] : memref<8x6xi32, #tpu.memory_space<smem>>
    %90 = arith.index_cast %89 : i32 to index
    %c0_60 = arith.constant 0 : index
    %c0_61 = arith.constant 0 : index
    %91 = vector.load %arg1[%90, %c0_60, %c0_61] : memref<50x1x128xf32, #tpu.memory_space<vmem>>, vector<1x1x128xf32>
    %92 = vector.shape_cast %91 : vector<1x1x128xf32> to vector<1x128xf32>
    %c1_62 = arith.constant 1 : index
    %c4_63 = arith.constant 4 : index
    %93 = memref.load %arg0[%c1_62, %c4_63] : memref<8x6xi32, #tpu.memory_space<smem>>
    %94 = arith.index_cast %93 : i32 to index
    %c0_64 = arith.constant 0 : index
    %c0_65 = arith.constant 0 : index
    %95 = vector.load %arg1[%94, %c0_64, %c0_65] : memref<50x1x128xf32, #tpu.memory_space<vmem>>, vector<1x1x128xf32>
    %96 = vector.shape_cast %95 : vector<1x1x128xf32> to vector<1x128xf32>
    %c1_66 = arith.constant 1 : index
    %c5_67 = arith.constant 5 : index
    %97 = memref.load %arg0[%c1_66, %c5_67] : memref<8x6xi32, #tpu.memory_space<smem>>
    %98 = arith.index_cast %97 : i32 to index
    %c0_68 = arith.constant 0 : index
    %c0_69 = arith.constant 0 : index
    %99 = vector.load %arg1[%98, %c0_68, %c0_69] : memref<50x1x128xf32, #tpu.memory_space<vmem>>, vector<1x1x128xf32>
    %100 = vector.shape_cast %99 : vector<1x1x128xf32> to vector<1x128xf32>
    %101 = tpu.concatenate %80, %84, %88, %92, %96, %100 in 0 : vector<1x128xf32>, vector<1x128xf32>, vector<1x128xf32>, vector<1x128xf32>, vector<1x128xf32>, vector<1x128xf32> -> vector<6x128xf32>
    %102 = vector.extract_strided_slice %101 {offsets = [0, 0], sizes = [6, 32], strides = [1, 1]} : vector<6x128xf32> to vector<6x32xf32>
    %103 = vector.extract_strided_slice %101 {offsets = [0, 32], sizes = [6, 32], strides = [1, 1]} : vector<6x128xf32> to vector<6x32xf32>
    %104 = vector.extract_strided_slice %101 {offsets = [0, 64], sizes = [6, 32], strides = [1, 1]} : vector<6x128xf32> to vector<6x32xf32>
    %105 = vector.extract_strided_slice %101 {offsets = [0, 96], sizes = [6, 32], strides = [1, 1]} : vector<6x128xf32> to vector<6x32xf32>
    %cst_70 = arith.constant dense<0.000000e+00> : vector<6x32xf32>
    %106 = tpu.matmul %69, %1, %cst_70 {dimension_numbers = #tpu.dot_dimension_numbers<[1], [0], [0], [1], [0, 0, 1, 1], [], []>} : vector<6x32xf32>, vector<32x32xf32>, vector<6x32xf32> -> vector<6x32xf32>
    %107 = arith.addf %102, %106 : vector<6x32xf32>
    %108 = arith.negf %107 : vector<6x32xf32>
    %109 = math.exp %108 : vector<6x32xf32>
    %cst_71 = arith.constant 1.000000e+00 : f32
    %110 = vector.broadcast %cst_71 : f32 to vector<6x32xf32>
    %111 = arith.addf %110, %109 : vector<6x32xf32>
    %112 = arith.divf %110, %111 : vector<6x32xf32>
    %cst_72 = arith.constant dense<0.000000e+00> : vector<6x32xf32>
    %113 = tpu.matmul %69, %3, %cst_72 {dimension_numbers = #tpu.dot_dimension_numbers<[1], [0], [0], [1], [0, 0, 1, 1], [], []>} : vector<6x32xf32>, vector<32x32xf32>, vector<6x32xf32> -> vector<6x32xf32>
    %114 = arith.addf %103, %113 : vector<6x32xf32>
    %115 = arith.negf %114 : vector<6x32xf32>
    %116 = math.exp %115 : vector<6x32xf32>
    %cst_73 = arith.constant 1.000000e+00 : f32
    %117 = vector.broadcast %cst_73 : f32 to vector<6x32xf32>
    %118 = arith.addf %117, %116 : vector<6x32xf32>
    %119 = arith.divf %117, %118 : vector<6x32xf32>
    %cst_74 = arith.constant dense<0.000000e+00> : vector<6x32xf32>
    %120 = tpu.matmul %69, %5, %cst_74 {dimension_numbers = #tpu.dot_dimension_numbers<[1], [0], [0], [1], [0, 0, 1, 1], [], []>} : vector<6x32xf32>, vector<32x32xf32>, vector<6x32xf32> -> vector<6x32xf32>
    %121 = arith.addf %104, %120 : vector<6x32xf32>
    %122 = math.tanh %121 : vector<6x32xf32>
    %cst_75 = arith.constant dense<0.000000e+00> : vector<6x32xf32>
    %123 = tpu.matmul %69, %7, %cst_75 {dimension_numbers = #tpu.dot_dimension_numbers<[1], [0], [0], [1], [0, 0, 1, 1], [], []>} : vector<6x32xf32>, vector<32x32xf32>, vector<6x32xf32> -> vector<6x32xf32>
    %124 = arith.addf %105, %123 : vector<6x32xf32>
    %125 = arith.negf %124 : vector<6x32xf32>
    %126 = math.exp %125 : vector<6x32xf32>
    %cst_76 = arith.constant 1.000000e+00 : f32
    %127 = vector.broadcast %cst_76 : f32 to vector<6x32xf32>
    %128 = arith.addf %127, %126 : vector<6x32xf32>
    %129 = arith.divf %127, %128 : vector<6x32xf32>
    %130 = arith.mulf %119, %67 : vector<6x32xf32>
    %131 = arith.mulf %112, %122 : vector<6x32xf32>
    %132 = arith.addf %130, %131 : vector<6x32xf32>
    %133 = math.tanh %132 : vector<6x32xf32>
    %134 = arith.mulf %129, %133 : vector<6x32xf32>
    %135 = vector.extract_strided_slice %134 {offsets = [0, 0], sizes = [2, 32], strides = [1, 1]} : vector<6x32xf32> to vector<2x32xf32>
    %cst_77 = arith.constant dense<0.000000e+00> : vector<2x16xf32>
    %136 = tpu.matmul %135, %8, %cst_77 {dimension_numbers = #tpu.dot_dimension_numbers<[1], [0], [0], [1], [0, 0, 1, 1], [], []>} : vector<2x32xf32>, vector<32x16xf32>, vector<2x16xf32> -> vector<2x16xf32>
    %137 = math.tanh %136 : vector<2x16xf32>
    %138 = vector.broadcast %9 : vector<1x16xf32> to vector<2x16xf32>
    %139 = arith.mulf %137, %138 : vector<2x16xf32>
    %cst_78 = arith.constant dense<0.000000e+00> : vector<2xf32>
    %140 = vector.multi_reduction <add>, %139, %cst_78 [1] : vector<2x16xf32> to vector<2xf32>
    %141 = vector.shape_cast %140 : vector<2xf32> to vector<2x1xf32>
    %c2_79 = arith.constant 2 : index
    %c0_80 = arith.constant 0 : index
    %142 = memref.load %arg0[%c2_79, %c0_80] : memref<8x6xi32, #tpu.memory_space<smem>>
    %143 = arith.index_cast %142 : i32 to index
    %c0_81 = arith.constant 0 : index
    %c0_82 = arith.constant 0 : index
    %144 = vector.load %arg1[%143, %c0_81, %c0_82] : memref<50x1x128xf32, #tpu.memory_space<vmem>>, vector<1x1x128xf32>
    %145 = vector.shape_cast %144 : vector<1x1x128xf32> to vector<1x128xf32>
    %c2_83 = arith.constant 2 : index
    %c1_84 = arith.constant 1 : index
    %146 = memref.load %arg0[%c2_83, %c1_84] : memref<8x6xi32, #tpu.memory_space<smem>>
    %147 = arith.index_cast %146 : i32 to index
    %c0_85 = arith.constant 0 : index
    %c0_86 = arith.constant 0 : index
    %148 = vector.load %arg1[%147, %c0_85, %c0_86] : memref<50x1x128xf32, #tpu.memory_space<vmem>>, vector<1x1x128xf32>
    %149 = vector.shape_cast %148 : vector<1x1x128xf32> to vector<1x128xf32>
    %c2_87 = arith.constant 2 : index
    %c2_88 = arith.constant 2 : index
    %150 = memref.load %arg0[%c2_87, %c2_88] : memref<8x6xi32, #tpu.memory_space<smem>>
    %151 = arith.index_cast %150 : i32 to index
    %c0_89 = arith.constant 0 : index
    %c0_90 = arith.constant 0 : index
    %152 = vector.load %arg1[%151, %c0_89, %c0_90] : memref<50x1x128xf32, #tpu.memory_space<vmem>>, vector<1x1x128xf32>
    %153 = vector.shape_cast %152 : vector<1x1x128xf32> to vector<1x128xf32>
    %c2_91 = arith.constant 2 : index
    %c3_92 = arith.constant 3 : index
    %154 = memref.load %arg0[%c2_91, %c3_92] : memref<8x6xi32, #tpu.memory_space<smem>>
    %155 = arith.index_cast %154 : i32 to index
    %c0_93 = arith.constant 0 : index
    %c0_94 = arith.constant 0 : index
    %156 = vector.load %arg1[%155, %c0_93, %c0_94] : memref<50x1x128xf32, #tpu.memory_space<vmem>>, vector<1x1x128xf32>
    %157 = vector.shape_cast %156 : vector<1x1x128xf32> to vector<1x128xf32>
    %c2_95 = arith.constant 2 : index
    %c4_96 = arith.constant 4 : index
    %158 = memref.load %arg0[%c2_95, %c4_96] : memref<8x6xi32, #tpu.memory_space<smem>>
    %159 = arith.index_cast %158 : i32 to index
    %c0_97 = arith.constant 0 : index
    %c0_98 = arith.constant 0 : index
    %160 = vector.load %arg1[%159, %c0_97, %c0_98] : memref<50x1x128xf32, #tpu.memory_space<vmem>>, vector<1x1x128xf32>
    %161 = vector.shape_cast %160 : vector<1x1x128xf32> to vector<1x128xf32>
    %c2_99 = arith.constant 2 : index
    %c5_100 = arith.constant 5 : index
    %162 = memref.load %arg0[%c2_99, %c5_100] : memref<8x6xi32, #tpu.memory_space<smem>>
    %163 = arith.index_cast %162 : i32 to index
    %c0_101 = arith.constant 0 : index
    %c0_102 = arith.constant 0 : index
    %164 = vector.load %arg1[%163, %c0_101, %c0_102] : memref<50x1x128xf32, #tpu.memory_space<vmem>>, vector<1x1x128xf32>
    %165 = vector.shape_cast %164 : vector<1x1x128xf32> to vector<1x128xf32>
    %166 = tpu.concatenate %145, %149, %153, %157, %161, %165 in 0 : vector<1x128xf32>, vector<1x128xf32>, vector<1x128xf32>, vector<1x128xf32>, vector<1x128xf32>, vector<1x128xf32> -> vector<6x128xf32>
    %167 = vector.extract_strided_slice %166 {offsets = [0, 0], sizes = [6, 32], strides = [1, 1]} : vector<6x128xf32> to vector<6x32xf32>
    %168 = vector.extract_strided_slice %166 {offsets = [0, 32], sizes = [6, 32], strides = [1, 1]} : vector<6x128xf32> to vector<6x32xf32>
    %169 = vector.extract_strided_slice %166 {offsets = [0, 64], sizes = [6, 32], strides = [1, 1]} : vector<6x128xf32> to vector<6x32xf32>
    %170 = vector.extract_strided_slice %166 {offsets = [0, 96], sizes = [6, 32], strides = [1, 1]} : vector<6x128xf32> to vector<6x32xf32>
    %cst_103 = arith.constant dense<0.000000e+00> : vector<6x32xf32>
    %171 = tpu.matmul %134, %1, %cst_103 {dimension_numbers = #tpu.dot_dimension_numbers<[1], [0], [0], [1], [0, 0, 1, 1], [], []>} : vector<6x32xf32>, vector<32x32xf32>, vector<6x32xf32> -> vector<6x32xf32>
    %172 = arith.addf %167, %171 : vector<6x32xf32>
    %173 = arith.negf %172 : vector<6x32xf32>
    %174 = math.exp %173 : vector<6x32xf32>
    %cst_104 = arith.constant 1.000000e+00 : f32
    %175 = vector.broadcast %cst_104 : f32 to vector<6x32xf32>
    %176 = arith.addf %175, %174 : vector<6x32xf32>
    %177 = arith.divf %175, %176 : vector<6x32xf32>
    %cst_105 = arith.constant dense<0.000000e+00> : vector<6x32xf32>
    %178 = tpu.matmul %134, %3, %cst_105 {dimension_numbers = #tpu.dot_dimension_numbers<[1], [0], [0], [1], [0, 0, 1, 1], [], []>} : vector<6x32xf32>, vector<32x32xf32>, vector<6x32xf32> -> vector<6x32xf32>
    %179 = arith.addf %168, %178 : vector<6x32xf32>
    %180 = arith.negf %179 : vector<6x32xf32>
    %181 = math.exp %180 : vector<6x32xf32>
    %cst_106 = arith.constant 1.000000e+00 : f32
    %182 = vector.broadcast %cst_106 : f32 to vector<6x32xf32>
    %183 = arith.addf %182, %181 : vector<6x32xf32>
    %184 = arith.divf %182, %183 : vector<6x32xf32>
    %cst_107 = arith.constant dense<0.000000e+00> : vector<6x32xf32>
    %185 = tpu.matmul %134, %5, %cst_107 {dimension_numbers = #tpu.dot_dimension_numbers<[1], [0], [0], [1], [0, 0, 1, 1], [], []>} : vector<6x32xf32>, vector<32x32xf32>, vector<6x32xf32> -> vector<6x32xf32>
    %186 = arith.addf %169, %185 : vector<6x32xf32>
    %187 = math.tanh %186 : vector<6x32xf32>
    %cst_108 = arith.constant dense<0.000000e+00> : vector<6x32xf32>
    %188 = tpu.matmul %134, %7, %cst_108 {dimension_numbers = #tpu.dot_dimension_numbers<[1], [0], [0], [1], [0, 0, 1, 1], [], []>} : vector<6x32xf32>, vector<32x32xf32>, vector<6x32xf32> -> vector<6x32xf32>
    %189 = arith.addf %170, %188 : vector<6x32xf32>
    %190 = arith.negf %189 : vector<6x32xf32>
    %191 = math.exp %190 : vector<6x32xf32>
    %cst_109 = arith.constant 1.000000e+00 : f32
    %192 = vector.broadcast %cst_109 : f32 to vector<6x32xf32>
    %193 = arith.addf %192, %191 : vector<6x32xf32>
    %194 = arith.divf %192, %193 : vector<6x32xf32>
    %195 = arith.mulf %184, %132 : vector<6x32xf32>
    %196 = arith.mulf %177, %187 : vector<6x32xf32>
    %197 = arith.addf %195, %196 : vector<6x32xf32>
    %198 = math.tanh %197 : vector<6x32xf32>
    %199 = arith.mulf %194, %198 : vector<6x32xf32>
    %200 = vector.extract_strided_slice %199 {offsets = [0, 0], sizes = [2, 32], strides = [1, 1]} : vector<6x32xf32> to vector<2x32xf32>
    %cst_110 = arith.constant dense<0.000000e+00> : vector<2x16xf32>
    %201 = tpu.matmul %200, %8, %cst_110 {dimension_numbers = #tpu.dot_dimension_numbers<[1], [0], [0], [1], [0, 0, 1, 1], [], []>} : vector<2x32xf32>, vector<32x16xf32>, vector<2x16xf32> -> vector<2x16xf32>
    %202 = math.tanh %201 : vector<2x16xf32>
    %203 = vector.broadcast %9 : vector<1x16xf32> to vector<2x16xf32>
    %204 = arith.mulf %202, %203 : vector<2x16xf32>
    %cst_111 = arith.constant dense<0.000000e+00> : vector<2xf32>
    %205 = vector.multi_reduction <add>, %204, %cst_111 [1] : vector<2x16xf32> to vector<2xf32>
    %206 = vector.shape_cast %205 : vector<2xf32> to vector<2x1xf32>
    %c3_112 = arith.constant 3 : index
    %c0_113 = arith.constant 0 : index
    %207 = memref.load %arg0[%c3_112, %c0_113] : memref<8x6xi32, #tpu.memory_space<smem>>
    %208 = arith.index_cast %207 : i32 to index
    %c0_114 = arith.constant 0 : index
    %c0_115 = arith.constant 0 : index
    %209 = vector.load %arg1[%208, %c0_114, %c0_115] : memref<50x1x128xf32, #tpu.memory_space<vmem>>, vector<1x1x128xf32>
    %210 = vector.shape_cast %209 : vector<1x1x128xf32> to vector<1x128xf32>
    %c3_116 = arith.constant 3 : index
    %c1_117 = arith.constant 1 : index
    %211 = memref.load %arg0[%c3_116, %c1_117] : memref<8x6xi32, #tpu.memory_space<smem>>
    %212 = arith.index_cast %211 : i32 to index
    %c0_118 = arith.constant 0 : index
    %c0_119 = arith.constant 0 : index
    %213 = vector.load %arg1[%212, %c0_118, %c0_119] : memref<50x1x128xf32, #tpu.memory_space<vmem>>, vector<1x1x128xf32>
    %214 = vector.shape_cast %213 : vector<1x1x128xf32> to vector<1x128xf32>
    %c3_120 = arith.constant 3 : index
    %c2_121 = arith.constant 2 : index
    %215 = memref.load %arg0[%c3_120, %c2_121] : memref<8x6xi32, #tpu.memory_space<smem>>
    %216 = arith.index_cast %215 : i32 to index
    %c0_122 = arith.constant 0 : index
    %c0_123 = arith.constant 0 : index
    %217 = vector.load %arg1[%216, %c0_122, %c0_123] : memref<50x1x128xf32, #tpu.memory_space<vmem>>, vector<1x1x128xf32>
    %218 = vector.shape_cast %217 : vector<1x1x128xf32> to vector<1x128xf32>
    %c3_124 = arith.constant 3 : index
    %c3_125 = arith.constant 3 : index
    %219 = memref.load %arg0[%c3_124, %c3_125] : memref<8x6xi32, #tpu.memory_space<smem>>
    %220 = arith.index_cast %219 : i32 to index
    %c0_126 = arith.constant 0 : index
    %c0_127 = arith.constant 0 : index
    %221 = vector.load %arg1[%220, %c0_126, %c0_127] : memref<50x1x128xf32, #tpu.memory_space<vmem>>, vector<1x1x128xf32>
    %222 = vector.shape_cast %221 : vector<1x1x128xf32> to vector<1x128xf32>
    %c3_128 = arith.constant 3 : index
    %c4_129 = arith.constant 4 : index
    %223 = memref.load %arg0[%c3_128, %c4_129] : memref<8x6xi32, #tpu.memory_space<smem>>
    %224 = arith.index_cast %223 : i32 to index
    %c0_130 = arith.constant 0 : index
    %c0_131 = arith.constant 0 : index
    %225 = vector.load %arg1[%224, %c0_130, %c0_131] : memref<50x1x128xf32, #tpu.memory_space<vmem>>, vector<1x1x128xf32>
    %226 = vector.shape_cast %225 : vector<1x1x128xf32> to vector<1x128xf32>
    %c3_132 = arith.constant 3 : index
    %c5_133 = arith.constant 5 : index
    %227 = memref.load %arg0[%c3_132, %c5_133] : memref<8x6xi32, #tpu.memory_space<smem>>
    %228 = arith.index_cast %227 : i32 to index
    %c0_134 = arith.constant 0 : index
    %c0_135 = arith.constant 0 : index
    %229 = vector.load %arg1[%228, %c0_134, %c0_135] : memref<50x1x128xf32, #tpu.memory_space<vmem>>, vector<1x1x128xf32>
    %230 = vector.shape_cast %229 : vector<1x1x128xf32> to vector<1x128xf32>
    %231 = tpu.concatenate %210, %214, %218, %222, %226, %230 in 0 : vector<1x128xf32>, vector<1x128xf32>, vector<1x128xf32>, vector<1x128xf32>, vector<1x128xf32>, vector<1x128xf32> -> vector<6x128xf32>
    %232 = vector.extract_strided_slice %231 {offsets = [0, 0], sizes = [6, 32], strides = [1, 1]} : vector<6x128xf32> to vector<6x32xf32>
    %233 = vector.extract_strided_slice %231 {offsets = [0, 32], sizes = [6, 32], strides = [1, 1]} : vector<6x128xf32> to vector<6x32xf32>
    %234 = vector.extract_strided_slice %231 {offsets = [0, 64], sizes = [6, 32], strides = [1, 1]} : vector<6x128xf32> to vector<6x32xf32>
    %235 = vector.extract_strided_slice %231 {offsets = [0, 96], sizes = [6, 32], strides = [1, 1]} : vector<6x128xf32> to vector<6x32xf32>
    %cst_136 = arith.constant dense<0.000000e+00> : vector<6x32xf32>
    %236 = tpu.matmul %199, %1, %cst_136 {dimension_numbers = #tpu.dot_dimension_numbers<[1], [0], [0], [1], [0, 0, 1, 1], [], []>} : vector<6x32xf32>, vector<32x32xf32>, vector<6x32xf32> -> vector<6x32xf32>
    %237 = arith.addf %232, %236 : vector<6x32xf32>
    %238 = arith.negf %237 : vector<6x32xf32>
    %239 = math.exp %238 : vector<6x32xf32>
    %cst_137 = arith.constant 1.000000e+00 : f32
    %240 = vector.broadcast %cst_137 : f32 to vector<6x32xf32>
    %241 = arith.addf %240, %239 : vector<6x32xf32>
    %242 = arith.divf %240, %241 : vector<6x32xf32>
    %cst_138 = arith.constant dense<0.000000e+00> : vector<6x32xf32>
    %243 = tpu.matmul %199, %3, %cst_138 {dimension_numbers = #tpu.dot_dimension_numbers<[1], [0], [0], [1], [0, 0, 1, 1], [], []>} : vector<6x32xf32>, vector<32x32xf32>, vector<6x32xf32> -> vector<6x32xf32>
    %244 = arith.addf %233, %243 : vector<6x32xf32>
    %245 = arith.negf %244 : vector<6x32xf32>
    %246 = math.exp %245 : vector<6x32xf32>
    %cst_139 = arith.constant 1.000000e+00 : f32
    %247 = vector.broadcast %cst_139 : f32 to vector<6x32xf32>
    %248 = arith.addf %247, %246 : vector<6x32xf32>
    %249 = arith.divf %247, %248 : vector<6x32xf32>
    %cst_140 = arith.constant dense<0.000000e+00> : vector<6x32xf32>
    %250 = tpu.matmul %199, %5, %cst_140 {dimension_numbers = #tpu.dot_dimension_numbers<[1], [0], [0], [1], [0, 0, 1, 1], [], []>} : vector<6x32xf32>, vector<32x32xf32>, vector<6x32xf32> -> vector<6x32xf32>
    %251 = arith.addf %234, %250 : vector<6x32xf32>
    %252 = math.tanh %251 : vector<6x32xf32>
    %cst_141 = arith.constant dense<0.000000e+00> : vector<6x32xf32>
    %253 = tpu.matmul %199, %7, %cst_141 {dimension_numbers = #tpu.dot_dimension_numbers<[1], [0], [0], [1], [0, 0, 1, 1], [], []>} : vector<6x32xf32>, vector<32x32xf32>, vector<6x32xf32> -> vector<6x32xf32>
    %254 = arith.addf %235, %253 : vector<6x32xf32>
    %255 = arith.negf %254 : vector<6x32xf32>
    %256 = math.exp %255 : vector<6x32xf32>
    %cst_142 = arith.constant 1.000000e+00 : f32
    %257 = vector.broadcast %cst_142 : f32 to vector<6x32xf32>
    %258 = arith.addf %257, %256 : vector<6x32xf32>
    %259 = arith.divf %257, %258 : vector<6x32xf32>
    %260 = arith.mulf %249, %197 : vector<6x32xf32>
    %261 = arith.mulf %242, %252 : vector<6x32xf32>
    %262 = arith.addf %260, %261 : vector<6x32xf32>
    %263 = math.tanh %262 : vector<6x32xf32>
    %264 = arith.mulf %259, %263 : vector<6x32xf32>
    %265 = vector.extract_strided_slice %264 {offsets = [0, 0], sizes = [2, 32], strides = [1, 1]} : vector<6x32xf32> to vector<2x32xf32>
    %cst_143 = arith.constant dense<0.000000e+00> : vector<2x16xf32>
    %266 = tpu.matmul %265, %8, %cst_143 {dimension_numbers = #tpu.dot_dimension_numbers<[1], [0], [0], [1], [0, 0, 1, 1], [], []>} : vector<2x32xf32>, vector<32x16xf32>, vector<2x16xf32> -> vector<2x16xf32>
    %267 = math.tanh %266 : vector<2x16xf32>
    %268 = vector.broadcast %9 : vector<1x16xf32> to vector<2x16xf32>
    %269 = arith.mulf %267, %268 : vector<2x16xf32>
    %cst_144 = arith.constant dense<0.000000e+00> : vector<2xf32>
    %270 = vector.multi_reduction <add>, %269, %cst_144 [1] : vector<2x16xf32> to vector<2xf32>
    %271 = vector.shape_cast %270 : vector<2xf32> to vector<2x1xf32>
    %c4_145 = arith.constant 4 : index
    %c0_146 = arith.constant 0 : index
    %272 = memref.load %arg0[%c4_145, %c0_146] : memref<8x6xi32, #tpu.memory_space<smem>>
    %273 = arith.index_cast %272 : i32 to index
    %c0_147 = arith.constant 0 : index
    %c0_148 = arith.constant 0 : index
    %274 = vector.load %arg1[%273, %c0_147, %c0_148] : memref<50x1x128xf32, #tpu.memory_space<vmem>>, vector<1x1x128xf32>
    %275 = vector.shape_cast %274 : vector<1x1x128xf32> to vector<1x128xf32>
    %c4_149 = arith.constant 4 : index
    %c1_150 = arith.constant 1 : index
    %276 = memref.load %arg0[%c4_149, %c1_150] : memref<8x6xi32, #tpu.memory_space<smem>>
    %277 = arith.index_cast %276 : i32 to index
    %c0_151 = arith.constant 0 : index
    %c0_152 = arith.constant 0 : index
    %278 = vector.load %arg1[%277, %c0_151, %c0_152] : memref<50x1x128xf32, #tpu.memory_space<vmem>>, vector<1x1x128xf32>
    %279 = vector.shape_cast %278 : vector<1x1x128xf32> to vector<1x128xf32>
    %c4_153 = arith.constant 4 : index
    %c2_154 = arith.constant 2 : index
    %280 = memref.load %arg0[%c4_153, %c2_154] : memref<8x6xi32, #tpu.memory_space<smem>>
    %281 = arith.index_cast %280 : i32 to index
    %c0_155 = arith.constant 0 : index
    %c0_156 = arith.constant 0 : index
    %282 = vector.load %arg1[%281, %c0_155, %c0_156] : memref<50x1x128xf32, #tpu.memory_space<vmem>>, vector<1x1x128xf32>
    %283 = vector.shape_cast %282 : vector<1x1x128xf32> to vector<1x128xf32>
    %c4_157 = arith.constant 4 : index
    %c3_158 = arith.constant 3 : index
    %284 = memref.load %arg0[%c4_157, %c3_158] : memref<8x6xi32, #tpu.memory_space<smem>>
    %285 = arith.index_cast %284 : i32 to index
    %c0_159 = arith.constant 0 : index
    %c0_160 = arith.constant 0 : index
    %286 = vector.load %arg1[%285, %c0_159, %c0_160] : memref<50x1x128xf32, #tpu.memory_space<vmem>>, vector<1x1x128xf32>
    %287 = vector.shape_cast %286 : vector<1x1x128xf32> to vector<1x128xf32>
    %c4_161 = arith.constant 4 : index
    %c4_162 = arith.constant 4 : index
    %288 = memref.load %arg0[%c4_161, %c4_162] : memref<8x6xi32, #tpu.memory_space<smem>>
    %289 = arith.index_cast %288 : i32 to index
    %c0_163 = arith.constant 0 : index
    %c0_164 = arith.constant 0 : index
    %290 = vector.load %arg1[%289, %c0_163, %c0_164] : memref<50x1x128xf32, #tpu.memory_space<vmem>>, vector<1x1x128xf32>
    %291 = vector.shape_cast %290 : vector<1x1x128xf32> to vector<1x128xf32>
    %c4_165 = arith.constant 4 : index
    %c5_166 = arith.constant 5 : index
    %292 = memref.load %arg0[%c4_165, %c5_166] : memref<8x6xi32, #tpu.memory_space<smem>>
    %293 = arith.index_cast %292 : i32 to index
    %c0_167 = arith.constant 0 : index
    %c0_168 = arith.constant 0 : index
    %294 = vector.load %arg1[%293, %c0_167, %c0_168] : memref<50x1x128xf32, #tpu.memory_space<vmem>>, vector<1x1x128xf32>
    %295 = vector.shape_cast %294 : vector<1x1x128xf32> to vector<1x128xf32>
    %296 = tpu.concatenate %275, %279, %283, %287, %291, %295 in 0 : vector<1x128xf32>, vector<1x128xf32>, vector<1x128xf32>, vector<1x128xf32>, vector<1x128xf32>, vector<1x128xf32> -> vector<6x128xf32>
    %297 = vector.extract_strided_slice %296 {offsets = [0, 0], sizes = [6, 32], strides = [1, 1]} : vector<6x128xf32> to vector<6x32xf32>
    %298 = vector.extract_strided_slice %296 {offsets = [0, 32], sizes = [6, 32], strides = [1, 1]} : vector<6x128xf32> to vector<6x32xf32>
    %299 = vector.extract_strided_slice %296 {offsets = [0, 64], sizes = [6, 32], strides = [1, 1]} : vector<6x128xf32> to vector<6x32xf32>
    %300 = vector.extract_strided_slice %296 {offsets = [0, 96], sizes = [6, 32], strides = [1, 1]} : vector<6x128xf32> to vector<6x32xf32>
    %cst_169 = arith.constant dense<0.000000e+00> : vector<6x32xf32>
    %301 = tpu.matmul %264, %1, %cst_169 {dimension_numbers = #tpu.dot_dimension_numbers<[1], [0], [0], [1], [0, 0, 1, 1], [], []>} : vector<6x32xf32>, vector<32x32xf32>, vector<6x32xf32> -> vector<6x32xf32>
    %302 = arith.addf %297, %301 : vector<6x32xf32>
    %303 = arith.negf %302 : vector<6x32xf32>
    %304 = math.exp %303 : vector<6x32xf32>
    %cst_170 = arith.constant 1.000000e+00 : f32
    %305 = vector.broadcast %cst_170 : f32 to vector<6x32xf32>
    %306 = arith.addf %305, %304 : vector<6x32xf32>
    %307 = arith.divf %305, %306 : vector<6x32xf32>
    %cst_171 = arith.constant dense<0.000000e+00> : vector<6x32xf32>
    %308 = tpu.matmul %264, %3, %cst_171 {dimension_numbers = #tpu.dot_dimension_numbers<[1], [0], [0], [1], [0, 0, 1, 1], [], []>} : vector<6x32xf32>, vector<32x32xf32>, vector<6x32xf32> -> vector<6x32xf32>
    %309 = arith.addf %298, %308 : vector<6x32xf32>
    %310 = arith.negf %309 : vector<6x32xf32>
    %311 = math.exp %310 : vector<6x32xf32>
    %cst_172 = arith.constant 1.000000e+00 : f32
    %312 = vector.broadcast %cst_172 : f32 to vector<6x32xf32>
    %313 = arith.addf %312, %311 : vector<6x32xf32>
    %314 = arith.divf %312, %313 : vector<6x32xf32>
    %cst_173 = arith.constant dense<0.000000e+00> : vector<6x32xf32>
    %315 = tpu.matmul %264, %5, %cst_173 {dimension_numbers = #tpu.dot_dimension_numbers<[1], [0], [0], [1], [0, 0, 1, 1], [], []>} : vector<6x32xf32>, vector<32x32xf32>, vector<6x32xf32> -> vector<6x32xf32>
    %316 = arith.addf %299, %315 : vector<6x32xf32>
    %317 = math.tanh %316 : vector<6x32xf32>
    %cst_174 = arith.constant dense<0.000000e+00> : vector<6x32xf32>
    %318 = tpu.matmul %264, %7, %cst_174 {dimension_numbers = #tpu.dot_dimension_numbers<[1], [0], [0], [1], [0, 0, 1, 1], [], []>} : vector<6x32xf32>, vector<32x32xf32>, vector<6x32xf32> -> vector<6x32xf32>
    %319 = arith.addf %300, %318 : vector<6x32xf32>
    %320 = arith.negf %319 : vector<6x32xf32>
    %321 = math.exp %320 : vector<6x32xf32>
    %cst_175 = arith.constant 1.000000e+00 : f32
    %322 = vector.broadcast %cst_175 : f32 to vector<6x32xf32>
    %323 = arith.addf %322, %321 : vector<6x32xf32>
    %324 = arith.divf %322, %323 : vector<6x32xf32>
    %325 = arith.mulf %314, %262 : vector<6x32xf32>
    %326 = arith.mulf %307, %317 : vector<6x32xf32>
    %327 = arith.addf %325, %326 : vector<6x32xf32>
    %328 = math.tanh %327 : vector<6x32xf32>
    %329 = arith.mulf %324, %328 : vector<6x32xf32>
    %330 = vector.extract_strided_slice %329 {offsets = [0, 0], sizes = [2, 32], strides = [1, 1]} : vector<6x32xf32> to vector<2x32xf32>
    %cst_176 = arith.constant dense<0.000000e+00> : vector<2x16xf32>
    %331 = tpu.matmul %330, %8, %cst_176 {dimension_numbers = #tpu.dot_dimension_numbers<[1], [0], [0], [1], [0, 0, 1, 1], [], []>} : vector<2x32xf32>, vector<32x16xf32>, vector<2x16xf32> -> vector<2x16xf32>
    %332 = math.tanh %331 : vector<2x16xf32>
    %333 = vector.broadcast %9 : vector<1x16xf32> to vector<2x16xf32>
    %334 = arith.mulf %332, %333 : vector<2x16xf32>
    %cst_177 = arith.constant dense<0.000000e+00> : vector<2xf32>
    %335 = vector.multi_reduction <add>, %334, %cst_177 [1] : vector<2x16xf32> to vector<2xf32>
    %336 = vector.shape_cast %335 : vector<2xf32> to vector<2x1xf32>
    %c5_178 = arith.constant 5 : index
    %c0_179 = arith.constant 0 : index
    %337 = memref.load %arg0[%c5_178, %c0_179] : memref<8x6xi32, #tpu.memory_space<smem>>
    %338 = arith.index_cast %337 : i32 to index
    %c0_180 = arith.constant 0 : index
    %c0_181 = arith.constant 0 : index
    %339 = vector.load %arg1[%338, %c0_180, %c0_181] : memref<50x1x128xf32, #tpu.memory_space<vmem>>, vector<1x1x128xf32>
    %340 = vector.shape_cast %339 : vector<1x1x128xf32> to vector<1x128xf32>
    %c5_182 = arith.constant 5 : index
    %c1_183 = arith.constant 1 : index
    %341 = memref.load %arg0[%c5_182, %c1_183] : memref<8x6xi32, #tpu.memory_space<smem>>
    %342 = arith.index_cast %341 : i32 to index
    %c0_184 = arith.constant 0 : index
    %c0_185 = arith.constant 0 : index
    %343 = vector.load %arg1[%342, %c0_184, %c0_185] : memref<50x1x128xf32, #tpu.memory_space<vmem>>, vector<1x1x128xf32>
    %344 = vector.shape_cast %343 : vector<1x1x128xf32> to vector<1x128xf32>
    %c5_186 = arith.constant 5 : index
    %c2_187 = arith.constant 2 : index
    %345 = memref.load %arg0[%c5_186, %c2_187] : memref<8x6xi32, #tpu.memory_space<smem>>
    %346 = arith.index_cast %345 : i32 to index
    %c0_188 = arith.constant 0 : index
    %c0_189 = arith.constant 0 : index
    %347 = vector.load %arg1[%346, %c0_188, %c0_189] : memref<50x1x128xf32, #tpu.memory_space<vmem>>, vector<1x1x128xf32>
    %348 = vector.shape_cast %347 : vector<1x1x128xf32> to vector<1x128xf32>
    %c5_190 = arith.constant 5 : index
    %c3_191 = arith.constant 3 : index
    %349 = memref.load %arg0[%c5_190, %c3_191] : memref<8x6xi32, #tpu.memory_space<smem>>
    %350 = arith.index_cast %349 : i32 to index
    %c0_192 = arith.constant 0 : index
    %c0_193 = arith.constant 0 : index
    %351 = vector.load %arg1[%350, %c0_192, %c0_193] : memref<50x1x128xf32, #tpu.memory_space<vmem>>, vector<1x1x128xf32>
    %352 = vector.shape_cast %351 : vector<1x1x128xf32> to vector<1x128xf32>
    %c5_194 = arith.constant 5 : index
    %c4_195 = arith.constant 4 : index
    %353 = memref.load %arg0[%c5_194, %c4_195] : memref<8x6xi32, #tpu.memory_space<smem>>
    %354 = arith.index_cast %353 : i32 to index
    %c0_196 = arith.constant 0 : index
    %c0_197 = arith.constant 0 : index
    %355 = vector.load %arg1[%354, %c0_196, %c0_197] : memref<50x1x128xf32, #tpu.memory_space<vmem>>, vector<1x1x128xf32>
    %356 = vector.shape_cast %355 : vector<1x1x128xf32> to vector<1x128xf32>
    %c5_198 = arith.constant 5 : index
    %c5_199 = arith.constant 5 : index
    %357 = memref.load %arg0[%c5_198, %c5_199] : memref<8x6xi32, #tpu.memory_space<smem>>
    %358 = arith.index_cast %357 : i32 to index
    %c0_200 = arith.constant 0 : index
    %c0_201 = arith.constant 0 : index
    %359 = vector.load %arg1[%358, %c0_200, %c0_201] : memref<50x1x128xf32, #tpu.memory_space<vmem>>, vector<1x1x128xf32>
    %360 = vector.shape_cast %359 : vector<1x1x128xf32> to vector<1x128xf32>
    %361 = tpu.concatenate %340, %344, %348, %352, %356, %360 in 0 : vector<1x128xf32>, vector<1x128xf32>, vector<1x128xf32>, vector<1x128xf32>, vector<1x128xf32>, vector<1x128xf32> -> vector<6x128xf32>
    %362 = vector.extract_strided_slice %361 {offsets = [0, 0], sizes = [6, 32], strides = [1, 1]} : vector<6x128xf32> to vector<6x32xf32>
    %363 = vector.extract_strided_slice %361 {offsets = [0, 32], sizes = [6, 32], strides = [1, 1]} : vector<6x128xf32> to vector<6x32xf32>
    %364 = vector.extract_strided_slice %361 {offsets = [0, 64], sizes = [6, 32], strides = [1, 1]} : vector<6x128xf32> to vector<6x32xf32>
    %365 = vector.extract_strided_slice %361 {offsets = [0, 96], sizes = [6, 32], strides = [1, 1]} : vector<6x128xf32> to vector<6x32xf32>
    %cst_202 = arith.constant dense<0.000000e+00> : vector<6x32xf32>
    %366 = tpu.matmul %329, %1, %cst_202 {dimension_numbers = #tpu.dot_dimension_numbers<[1], [0], [0], [1], [0, 0, 1, 1], [], []>} : vector<6x32xf32>, vector<32x32xf32>, vector<6x32xf32> -> vector<6x32xf32>
    %367 = arith.addf %362, %366 : vector<6x32xf32>
    %368 = arith.negf %367 : vector<6x32xf32>
    %369 = math.exp %368 : vector<6x32xf32>
    %cst_203 = arith.constant 1.000000e+00 : f32
    %370 = vector.broadcast %cst_203 : f32 to vector<6x32xf32>
    %371 = arith.addf %370, %369 : vector<6x32xf32>
    %372 = arith.divf %370, %371 : vector<6x32xf32>
    %cst_204 = arith.constant dense<0.000000e+00> : vector<6x32xf32>
    %373 = tpu.matmul %329, %3, %cst_204 {dimension_numbers = #tpu.dot_dimension_numbers<[1], [0], [0], [1], [0, 0, 1, 1], [], []>} : vector<6x32xf32>, vector<32x32xf32>, vector<6x32xf32> -> vector<6x32xf32>
    %374 = arith.addf %363, %373 : vector<6x32xf32>
    %375 = arith.negf %374 : vector<6x32xf32>
    %376 = math.exp %375 : vector<6x32xf32>
    %cst_205 = arith.constant 1.000000e+00 : f32
    %377 = vector.broadcast %cst_205 : f32 to vector<6x32xf32>
    %378 = arith.addf %377, %376 : vector<6x32xf32>
    %379 = arith.divf %377, %378 : vector<6x32xf32>
    %cst_206 = arith.constant dense<0.000000e+00> : vector<6x32xf32>
    %380 = tpu.matmul %329, %5, %cst_206 {dimension_numbers = #tpu.dot_dimension_numbers<[1], [0], [0], [1], [0, 0, 1, 1], [], []>} : vector<6x32xf32>, vector<32x32xf32>, vector<6x32xf32> -> vector<6x32xf32>
    %381 = arith.addf %364, %380 : vector<6x32xf32>
    %382 = math.tanh %381 : vector<6x32xf32>
    %cst_207 = arith.constant dense<0.000000e+00> : vector<6x32xf32>
    %383 = tpu.matmul %329, %7, %cst_207 {dimension_numbers = #tpu.dot_dimension_numbers<[1], [0], [0], [1], [0, 0, 1, 1], [], []>} : vector<6x32xf32>, vector<32x32xf32>, vector<6x32xf32> -> vector<6x32xf32>
    %384 = arith.addf %365, %383 : vector<6x32xf32>
    %385 = arith.negf %384 : vector<6x32xf32>
    %386 = math.exp %385 : vector<6x32xf32>
    %cst_208 = arith.constant 1.000000e+00 : f32
    %387 = vector.broadcast %cst_208 : f32 to vector<6x32xf32>
    %388 = arith.addf %387, %386 : vector<6x32xf32>
    %389 = arith.divf %387, %388 : vector<6x32xf32>
    %390 = arith.mulf %379, %327 : vector<6x32xf32>
    %391 = arith.mulf %372, %382 : vector<6x32xf32>
    %392 = arith.addf %390, %391 : vector<6x32xf32>
    %393 = math.tanh %392 : vector<6x32xf32>
    %394 = arith.mulf %389, %393 : vector<6x32xf32>
    %395 = vector.extract_strided_slice %394 {offsets = [0, 0], sizes = [2, 32], strides = [1, 1]} : vector<6x32xf32> to vector<2x32xf32>
    %cst_209 = arith.constant dense<0.000000e+00> : vector<2x16xf32>
    %396 = tpu.matmul %395, %8, %cst_209 {dimension_numbers = #tpu.dot_dimension_numbers<[1], [0], [0], [1], [0, 0, 1, 1], [], []>} : vector<2x32xf32>, vector<32x16xf32>, vector<2x16xf32> -> vector<2x16xf32>
    %397 = math.tanh %396 : vector<2x16xf32>
    %398 = vector.broadcast %9 : vector<1x16xf32> to vector<2x16xf32>
    %399 = arith.mulf %397, %398 : vector<2x16xf32>
    %cst_210 = arith.constant dense<0.000000e+00> : vector<2xf32>
    %400 = vector.multi_reduction <add>, %399, %cst_210 [1] : vector<2x16xf32> to vector<2xf32>
    %401 = vector.shape_cast %400 : vector<2xf32> to vector<2x1xf32>
    %c6 = arith.constant 6 : index
    %c0_211 = arith.constant 0 : index
    %402 = memref.load %arg0[%c6, %c0_211] : memref<8x6xi32, #tpu.memory_space<smem>>
    %403 = arith.index_cast %402 : i32 to index
    %c0_212 = arith.constant 0 : index
    %c0_213 = arith.constant 0 : index
    %404 = vector.load %arg1[%403, %c0_212, %c0_213] : memref<50x1x128xf32, #tpu.memory_space<vmem>>, vector<1x1x128xf32>
    %405 = vector.shape_cast %404 : vector<1x1x128xf32> to vector<1x128xf32>
    %c6_214 = arith.constant 6 : index
    %c1_215 = arith.constant 1 : index
    %406 = memref.load %arg0[%c6_214, %c1_215] : memref<8x6xi32, #tpu.memory_space<smem>>
    %407 = arith.index_cast %406 : i32 to index
    %c0_216 = arith.constant 0 : index
    %c0_217 = arith.constant 0 : index
    %408 = vector.load %arg1[%407, %c0_216, %c0_217] : memref<50x1x128xf32, #tpu.memory_space<vmem>>, vector<1x1x128xf32>
    %409 = vector.shape_cast %408 : vector<1x1x128xf32> to vector<1x128xf32>
    %c6_218 = arith.constant 6 : index
    %c2_219 = arith.constant 2 : index
    %410 = memref.load %arg0[%c6_218, %c2_219] : memref<8x6xi32, #tpu.memory_space<smem>>
    %411 = arith.index_cast %410 : i32 to index
    %c0_220 = arith.constant 0 : index
    %c0_221 = arith.constant 0 : index
    %412 = vector.load %arg1[%411, %c0_220, %c0_221] : memref<50x1x128xf32, #tpu.memory_space<vmem>>, vector<1x1x128xf32>
    %413 = vector.shape_cast %412 : vector<1x1x128xf32> to vector<1x128xf32>
    %c6_222 = arith.constant 6 : index
    %c3_223 = arith.constant 3 : index
    %414 = memref.load %arg0[%c6_222, %c3_223] : memref<8x6xi32, #tpu.memory_space<smem>>
    %415 = arith.index_cast %414 : i32 to index
    %c0_224 = arith.constant 0 : index
    %c0_225 = arith.constant 0 : index
    %416 = vector.load %arg1[%415, %c0_224, %c0_225] : memref<50x1x128xf32, #tpu.memory_space<vmem>>, vector<1x1x128xf32>
    %417 = vector.shape_cast %416 : vector<1x1x128xf32> to vector<1x128xf32>
    %c6_226 = arith.constant 6 : index
    %c4_227 = arith.constant 4 : index
    %418 = memref.load %arg0[%c6_226, %c4_227] : memref<8x6xi32, #tpu.memory_space<smem>>
    %419 = arith.index_cast %418 : i32 to index
    %c0_228 = arith.constant 0 : index
    %c0_229 = arith.constant 0 : index
    %420 = vector.load %arg1[%419, %c0_228, %c0_229] : memref<50x1x128xf32, #tpu.memory_space<vmem>>, vector<1x1x128xf32>
    %421 = vector.shape_cast %420 : vector<1x1x128xf32> to vector<1x128xf32>
    %c6_230 = arith.constant 6 : index
    %c5_231 = arith.constant 5 : index
    %422 = memref.load %arg0[%c6_230, %c5_231] : memref<8x6xi32, #tpu.memory_space<smem>>
    %423 = arith.index_cast %422 : i32 to index
    %c0_232 = arith.constant 0 : index
    %c0_233 = arith.constant 0 : index
    %424 = vector.load %arg1[%423, %c0_232, %c0_233] : memref<50x1x128xf32, #tpu.memory_space<vmem>>, vector<1x1x128xf32>
    %425 = vector.shape_cast %424 : vector<1x1x128xf32> to vector<1x128xf32>
    %426 = tpu.concatenate %405, %409, %413, %417, %421, %425 in 0 : vector<1x128xf32>, vector<1x128xf32>, vector<1x128xf32>, vector<1x128xf32>, vector<1x128xf32>, vector<1x128xf32> -> vector<6x128xf32>
    %427 = vector.extract_strided_slice %426 {offsets = [0, 0], sizes = [6, 32], strides = [1, 1]} : vector<6x128xf32> to vector<6x32xf32>
    %428 = vector.extract_strided_slice %426 {offsets = [0, 32], sizes = [6, 32], strides = [1, 1]} : vector<6x128xf32> to vector<6x32xf32>
    %429 = vector.extract_strided_slice %426 {offsets = [0, 64], sizes = [6, 32], strides = [1, 1]} : vector<6x128xf32> to vector<6x32xf32>
    %430 = vector.extract_strided_slice %426 {offsets = [0, 96], sizes = [6, 32], strides = [1, 1]} : vector<6x128xf32> to vector<6x32xf32>
    %cst_234 = arith.constant dense<0.000000e+00> : vector<6x32xf32>
    %431 = tpu.matmul %394, %1, %cst_234 {dimension_numbers = #tpu.dot_dimension_numbers<[1], [0], [0], [1], [0, 0, 1, 1], [], []>} : vector<6x32xf32>, vector<32x32xf32>, vector<6x32xf32> -> vector<6x32xf32>
    %432 = arith.addf %427, %431 : vector<6x32xf32>
    %433 = arith.negf %432 : vector<6x32xf32>
    %434 = math.exp %433 : vector<6x32xf32>
    %cst_235 = arith.constant 1.000000e+00 : f32
    %435 = vector.broadcast %cst_235 : f32 to vector<6x32xf32>
    %436 = arith.addf %435, %434 : vector<6x32xf32>
    %437 = arith.divf %435, %436 : vector<6x32xf32>
    %cst_236 = arith.constant dense<0.000000e+00> : vector<6x32xf32>
    %438 = tpu.matmul %394, %3, %cst_236 {dimension_numbers = #tpu.dot_dimension_numbers<[1], [0], [0], [1], [0, 0, 1, 1], [], []>} : vector<6x32xf32>, vector<32x32xf32>, vector<6x32xf32> -> vector<6x32xf32>
    %439 = arith.addf %428, %438 : vector<6x32xf32>
    %440 = arith.negf %439 : vector<6x32xf32>
    %441 = math.exp %440 : vector<6x32xf32>
    %cst_237 = arith.constant 1.000000e+00 : f32
    %442 = vector.broadcast %cst_237 : f32 to vector<6x32xf32>
    %443 = arith.addf %442, %441 : vector<6x32xf32>
    %444 = arith.divf %442, %443 : vector<6x32xf32>
    %cst_238 = arith.constant dense<0.000000e+00> : vector<6x32xf32>
    %445 = tpu.matmul %394, %5, %cst_238 {dimension_numbers = #tpu.dot_dimension_numbers<[1], [0], [0], [1], [0, 0, 1, 1], [], []>} : vector<6x32xf32>, vector<32x32xf32>, vector<6x32xf32> -> vector<6x32xf32>
    %446 = arith.addf %429, %445 : vector<6x32xf32>
    %447 = math.tanh %446 : vector<6x32xf32>
    %cst_239 = arith.constant dense<0.000000e+00> : vector<6x32xf32>
    %448 = tpu.matmul %394, %7, %cst_239 {dimension_numbers = #tpu.dot_dimension_numbers<[1], [0], [0], [1], [0, 0, 1, 1], [], []>} : vector<6x32xf32>, vector<32x32xf32>, vector<6x32xf32> -> vector<6x32xf32>
    %449 = arith.addf %430, %448 : vector<6x32xf32>
    %450 = arith.negf %449 : vector<6x32xf32>
    %451 = math.exp %450 : vector<6x32xf32>
    %cst_240 = arith.constant 1.000000e+00 : f32
    %452 = vector.broadcast %cst_240 : f32 to vector<6x32xf32>
    %453 = arith.addf %452, %451 : vector<6x32xf32>
    %454 = arith.divf %452, %453 : vector<6x32xf32>
    %455 = arith.mulf %444, %392 : vector<6x32xf32>
    %456 = arith.mulf %437, %447 : vector<6x32xf32>
    %457 = arith.addf %455, %456 : vector<6x32xf32>
    %458 = math.tanh %457 : vector<6x32xf32>
    %459 = arith.mulf %454, %458 : vector<6x32xf32>
    %460 = vector.extract_strided_slice %459 {offsets = [0, 0], sizes = [2, 32], strides = [1, 1]} : vector<6x32xf32> to vector<2x32xf32>
    %cst_241 = arith.constant dense<0.000000e+00> : vector<2x16xf32>
    %461 = tpu.matmul %460, %8, %cst_241 {dimension_numbers = #tpu.dot_dimension_numbers<[1], [0], [0], [1], [0, 0, 1, 1], [], []>} : vector<2x32xf32>, vector<32x16xf32>, vector<2x16xf32> -> vector<2x16xf32>
    %462 = math.tanh %461 : vector<2x16xf32>
    %463 = vector.broadcast %9 : vector<1x16xf32> to vector<2x16xf32>
    %464 = arith.mulf %462, %463 : vector<2x16xf32>
    %cst_242 = arith.constant dense<0.000000e+00> : vector<2xf32>
    %465 = vector.multi_reduction <add>, %464, %cst_242 [1] : vector<2x16xf32> to vector<2xf32>
    %466 = vector.shape_cast %465 : vector<2xf32> to vector<2x1xf32>
    %c7 = arith.constant 7 : index
    %c0_243 = arith.constant 0 : index
    %467 = memref.load %arg0[%c7, %c0_243] : memref<8x6xi32, #tpu.memory_space<smem>>
    %468 = arith.index_cast %467 : i32 to index
    %c0_244 = arith.constant 0 : index
    %c0_245 = arith.constant 0 : index
    %469 = vector.load %arg1[%468, %c0_244, %c0_245] : memref<50x1x128xf32, #tpu.memory_space<vmem>>, vector<1x1x128xf32>
    %470 = vector.shape_cast %469 : vector<1x1x128xf32> to vector<1x128xf32>
    %c7_246 = arith.constant 7 : index
    %c1_247 = arith.constant 1 : index
    %471 = memref.load %arg0[%c7_246, %c1_247] : memref<8x6xi32, #tpu.memory_space<smem>>
    %472 = arith.index_cast %471 : i32 to index
    %c0_248 = arith.constant 0 : index
    %c0_249 = arith.constant 0 : index
    %473 = vector.load %arg1[%472, %c0_248, %c0_249] : memref<50x1x128xf32, #tpu.memory_space<vmem>>, vector<1x1x128xf32>
    %474 = vector.shape_cast %473 : vector<1x1x128xf32> to vector<1x128xf32>
    %c7_250 = arith.constant 7 : index
    %c2_251 = arith.constant 2 : index
    %475 = memref.load %arg0[%c7_250, %c2_251] : memref<8x6xi32, #tpu.memory_space<smem>>
    %476 = arith.index_cast %475 : i32 to index
    %c0_252 = arith.constant 0 : index
    %c0_253 = arith.constant 0 : index
    %477 = vector.load %arg1[%476, %c0_252, %c0_253] : memref<50x1x128xf32, #tpu.memory_space<vmem>>, vector<1x1x128xf32>
    %478 = vector.shape_cast %477 : vector<1x1x128xf32> to vector<1x128xf32>
    %c7_254 = arith.constant 7 : index
    %c3_255 = arith.constant 3 : index
    %479 = memref.load %arg0[%c7_254, %c3_255] : memref<8x6xi32, #tpu.memory_space<smem>>
    %480 = arith.index_cast %479 : i32 to index
    %c0_256 = arith.constant 0 : index
    %c0_257 = arith.constant 0 : index
    %481 = vector.load %arg1[%480, %c0_256, %c0_257] : memref<50x1x128xf32, #tpu.memory_space<vmem>>, vector<1x1x128xf32>
    %482 = vector.shape_cast %481 : vector<1x1x128xf32> to vector<1x128xf32>
    %c7_258 = arith.constant 7 : index
    %c4_259 = arith.constant 4 : index
    %483 = memref.load %arg0[%c7_258, %c4_259] : memref<8x6xi32, #tpu.memory_space<smem>>
    %484 = arith.index_cast %483 : i32 to index
    %c0_260 = arith.constant 0 : index
    %c0_261 = arith.constant 0 : index
    %485 = vector.load %arg1[%484, %c0_260, %c0_261] : memref<50x1x128xf32, #tpu.memory_space<vmem>>, vector<1x1x128xf32>
    %486 = vector.shape_cast %485 : vector<1x1x128xf32> to vector<1x128xf32>
    %c7_262 = arith.constant 7 : index
    %c5_263 = arith.constant 5 : index
    %487 = memref.load %arg0[%c7_262, %c5_263] : memref<8x6xi32, #tpu.memory_space<smem>>
    %488 = arith.index_cast %487 : i32 to index
    %c0_264 = arith.constant 0 : index
    %c0_265 = arith.constant 0 : index
    %489 = vector.load %arg1[%488, %c0_264, %c0_265] : memref<50x1x128xf32, #tpu.memory_space<vmem>>, vector<1x1x128xf32>
    %490 = vector.shape_cast %489 : vector<1x1x128xf32> to vector<1x128xf32>
    %491 = tpu.concatenate %470, %474, %478, %482, %486, %490 in 0 : vector<1x128xf32>, vector<1x128xf32>, vector<1x128xf32>, vector<1x128xf32>, vector<1x128xf32>, vector<1x128xf32> -> vector<6x128xf32>
    %492 = vector.extract_strided_slice %491 {offsets = [0, 0], sizes = [6, 32], strides = [1, 1]} : vector<6x128xf32> to vector<6x32xf32>
    %493 = vector.extract_strided_slice %491 {offsets = [0, 32], sizes = [6, 32], strides = [1, 1]} : vector<6x128xf32> to vector<6x32xf32>
    %494 = vector.extract_strided_slice %491 {offsets = [0, 64], sizes = [6, 32], strides = [1, 1]} : vector<6x128xf32> to vector<6x32xf32>
    %495 = vector.extract_strided_slice %491 {offsets = [0, 96], sizes = [6, 32], strides = [1, 1]} : vector<6x128xf32> to vector<6x32xf32>
    %cst_266 = arith.constant dense<0.000000e+00> : vector<6x32xf32>
    %496 = tpu.matmul %459, %1, %cst_266 {dimension_numbers = #tpu.dot_dimension_numbers<[1], [0], [0], [1], [0, 0, 1, 1], [], []>} : vector<6x32xf32>, vector<32x32xf32>, vector<6x32xf32> -> vector<6x32xf32>
    %497 = arith.addf %492, %496 : vector<6x32xf32>
    %498 = arith.negf %497 : vector<6x32xf32>
    %499 = math.exp %498 : vector<6x32xf32>
    %cst_267 = arith.constant 1.000000e+00 : f32
    %500 = vector.broadcast %cst_267 : f32 to vector<6x32xf32>
    %501 = arith.addf %500, %499 : vector<6x32xf32>
    %502 = arith.divf %500, %501 : vector<6x32xf32>
    %cst_268 = arith.constant dense<0.000000e+00> : vector<6x32xf32>
    %503 = tpu.matmul %459, %3, %cst_268 {dimension_numbers = #tpu.dot_dimension_numbers<[1], [0], [0], [1], [0, 0, 1, 1], [], []>} : vector<6x32xf32>, vector<32x32xf32>, vector<6x32xf32> -> vector<6x32xf32>
    %504 = arith.addf %493, %503 : vector<6x32xf32>
    %505 = arith.negf %504 : vector<6x32xf32>
    %506 = math.exp %505 : vector<6x32xf32>
    %cst_269 = arith.constant 1.000000e+00 : f32
    %507 = vector.broadcast %cst_269 : f32 to vector<6x32xf32>
    %508 = arith.addf %507, %506 : vector<6x32xf32>
    %509 = arith.divf %507, %508 : vector<6x32xf32>
    %cst_270 = arith.constant dense<0.000000e+00> : vector<6x32xf32>
    %510 = tpu.matmul %459, %5, %cst_270 {dimension_numbers = #tpu.dot_dimension_numbers<[1], [0], [0], [1], [0, 0, 1, 1], [], []>} : vector<6x32xf32>, vector<32x32xf32>, vector<6x32xf32> -> vector<6x32xf32>
    %511 = arith.addf %494, %510 : vector<6x32xf32>
    %512 = math.tanh %511 : vector<6x32xf32>
    %cst_271 = arith.constant dense<0.000000e+00> : vector<6x32xf32>
    %513 = tpu.matmul %459, %7, %cst_271 {dimension_numbers = #tpu.dot_dimension_numbers<[1], [0], [0], [1], [0, 0, 1, 1], [], []>} : vector<6x32xf32>, vector<32x32xf32>, vector<6x32xf32> -> vector<6x32xf32>
    %514 = arith.addf %495, %513 : vector<6x32xf32>
    %515 = arith.negf %514 : vector<6x32xf32>
    %516 = math.exp %515 : vector<6x32xf32>
    %cst_272 = arith.constant 1.000000e+00 : f32
    %517 = vector.broadcast %cst_272 : f32 to vector<6x32xf32>
    %518 = arith.addf %517, %516 : vector<6x32xf32>
    %519 = arith.divf %517, %518 : vector<6x32xf32>
    %520 = arith.mulf %509, %457 : vector<6x32xf32>
    %521 = arith.mulf %502, %512 : vector<6x32xf32>
    %522 = arith.addf %520, %521 : vector<6x32xf32>
    %523 = math.tanh %522 : vector<6x32xf32>
    %524 = arith.mulf %519, %523 : vector<6x32xf32>
    %525 = vector.extract_strided_slice %524 {offsets = [0, 0], sizes = [2, 32], strides = [1, 1]} : vector<6x32xf32> to vector<2x32xf32>
    %cst_273 = arith.constant dense<0.000000e+00> : vector<2x16xf32>
    %526 = tpu.matmul %525, %8, %cst_273 {dimension_numbers = #tpu.dot_dimension_numbers<[1], [0], [0], [1], [0, 0, 1, 1], [], []>} : vector<2x32xf32>, vector<32x16xf32>, vector<2x16xf32> -> vector<2x16xf32>
    %527 = math.tanh %526 : vector<2x16xf32>
    %528 = vector.broadcast %9 : vector<1x16xf32> to vector<2x16xf32>
    %529 = arith.mulf %527, %528 : vector<2x16xf32>
    %cst_274 = arith.constant dense<0.000000e+00> : vector<2xf32>
    %530 = vector.multi_reduction <add>, %529, %cst_274 [1] : vector<2x16xf32> to vector<2xf32>
    %531 = vector.shape_cast %530 : vector<2xf32> to vector<2x1xf32>
    %532 = tpu.concatenate %76, %141, %206, %271, %336, %401, %466, %531 in 1 : vector<2x1xf32>, vector<2x1xf32>, vector<2x1xf32>, vector<2x1xf32>, vector<2x1xf32>, vector<2x1xf32>, vector<2x1xf32>, vector<2x1xf32> -> vector<2x8xf32>
    %cst_275 = arith.constant dense<0xFF800000> : vector<2xf32>
    %533 = vector.multi_reduction <maximumf>, %532, %cst_275 [1] : vector<2x8xf32> to vector<2xf32>
    %534 = vector.shape_cast %533 : vector<2xf32> to vector<2x1xf32>
    %535 = vector.broadcast %534 : vector<2x1xf32> to vector<2x8xf32>
    %536 = arith.subf %532, %535 : vector<2x8xf32>
    %537 = math.exp %536 : vector<2x8xf32>
    %cst_276 = arith.constant dense<0.000000e+00> : vector<2xf32>
    %538 = vector.multi_reduction <add>, %537, %cst_276 [1] : vector<2x8xf32> to vector<2xf32>
    %539 = vector.shape_cast %538 : vector<2xf32> to vector<2x1xf32>
    %540 = tpu.reciprocal %539 {approx = true} : vector<2x1xf32> -> vector<2x1xf32>
    %541 = vector.broadcast %540 : vector<2x1xf32> to vector<2x8xf32>
    %542 = arith.mulf %537, %541 : vector<2x8xf32>
    %cst_277 = arith.constant 0.000000e+00 : f32
    %543 = vector.broadcast %cst_277 : f32 to vector<2x32xf32>
    %544 = vector.extract_strided_slice %542 {offsets = [0, 0], sizes = [2, 1], strides = [1, 1]} : vector<2x8xf32> to vector<2x1xf32>
    %545 = vector.broadcast %544 : vector<2x1xf32> to vector<2x32xf32>
    %546 = arith.mulf %545, %70 : vector<2x32xf32>
    %547 = arith.addf %543, %546 : vector<2x32xf32>
    %548 = vector.extract_strided_slice %542 {offsets = [0, 1], sizes = [2, 1], strides = [1, 1]} : vector<2x8xf32> to vector<2x1xf32>
    %549 = vector.broadcast %548 : vector<2x1xf32> to vector<2x32xf32>
    %550 = arith.mulf %549, %135 : vector<2x32xf32>
    %551 = arith.addf %547, %550 : vector<2x32xf32>
    %552 = vector.extract_strided_slice %542 {offsets = [0, 2], sizes = [2, 1], strides = [1, 1]} : vector<2x8xf32> to vector<2x1xf32>
    %553 = vector.broadcast %552 : vector<2x1xf32> to vector<2x32xf32>
    %554 = arith.mulf %553, %200 : vector<2x32xf32>
    %555 = arith.addf %551, %554 : vector<2x32xf32>
    %556 = vector.extract_strided_slice %542 {offsets = [0, 3], sizes = [2, 1], strides = [1, 1]} : vector<2x8xf32> to vector<2x1xf32>
    %557 = vector.broadcast %556 : vector<2x1xf32> to vector<2x32xf32>
    %558 = arith.mulf %557, %265 : vector<2x32xf32>
    %559 = arith.addf %555, %558 : vector<2x32xf32>
    %560 = vector.extract_strided_slice %542 {offsets = [0, 4], sizes = [2, 1], strides = [1, 1]} : vector<2x8xf32> to vector<2x1xf32>
    %561 = vector.broadcast %560 : vector<2x1xf32> to vector<2x32xf32>
    %562 = arith.mulf %561, %330 : vector<2x32xf32>
    %563 = arith.addf %559, %562 : vector<2x32xf32>
    %564 = vector.extract_strided_slice %542 {offsets = [0, 5], sizes = [2, 1], strides = [1, 1]} : vector<2x8xf32> to vector<2x1xf32>
    %565 = vector.broadcast %564 : vector<2x1xf32> to vector<2x32xf32>
    %566 = arith.mulf %565, %395 : vector<2x32xf32>
    %567 = arith.addf %563, %566 : vector<2x32xf32>
    %568 = vector.extract_strided_slice %542 {offsets = [0, 6], sizes = [2, 1], strides = [1, 1]} : vector<2x8xf32> to vector<2x1xf32>
    %569 = vector.broadcast %568 : vector<2x1xf32> to vector<2x32xf32>
    %570 = arith.mulf %569, %460 : vector<2x32xf32>
    %571 = arith.addf %567, %570 : vector<2x32xf32>
    %572 = vector.extract_strided_slice %542 {offsets = [0, 7], sizes = [2, 1], strides = [1, 1]} : vector<2x8xf32> to vector<2x1xf32>
    %573 = vector.broadcast %572 : vector<2x1xf32> to vector<2x32xf32>
    %574 = arith.mulf %573, %525 : vector<2x32xf32>
    %575 = arith.addf %571, %574 : vector<2x32xf32>
    %576 = arith.mulf %542, %542 : vector<2x8xf32>
    %cst_278 = arith.constant dense<0.000000e+00> : vector<2xf32>
    %577 = vector.multi_reduction <add>, %576, %cst_278 [1] : vector<2x8xf32> to vector<2xf32>
    %578 = vector.shape_cast %577 : vector<2xf32> to vector<2x1xf32>
    %cst_279 = arith.constant 1.000000e+00 : f32
    %579 = vector.broadcast %cst_279 : f32 to vector<2x1xf32>
    %580 = arith.subf %578, %579 : vector<2x1xf32>
    %581 = arith.mulf %580, %580 : vector<2x1xf32>
    %cst_280 = arith.constant dense<0.000000e+00> : vector<1xf32>
    %582 = vector.multi_reduction <add>, %581, %cst_280 [0] : vector<2x1xf32> to vector<1xf32>
    %583 = vector.shape_cast %582 : vector<1xf32> to vector<1x1xf32>
    %cst_281 = arith.constant 5.000000e-01 : f32
    %584 = vector.broadcast %cst_281 : f32 to vector<1x1xf32>
    %585 = arith.mulf %583, %584 : vector<1x1xf32>
    %586 = vector.extract_strided_slice %524 {offsets = [2, 0], sizes = [2, 32], strides = [1, 1]} : vector<6x32xf32> to vector<2x32xf32>
    %587 = vector.extract_strided_slice %524 {offsets = [4, 0], sizes = [2, 32], strides = [1, 1]} : vector<6x32xf32> to vector<2x32xf32>
    %588 = arith.subf %575, %586 : vector<2x32xf32>
    %cst_282 = arith.constant 9.99999997E-7 : f32
    %589 = vector.broadcast %cst_282 : f32 to vector<2x32xf32>
    %590 = arith.addf %588, %589 : vector<2x32xf32>
    %591 = math.absf %590 : vector<2x32xf32>
    %cst_283 = arith.constant dense<0.000000e+00> : vector<2xf32>
    %592 = vector.multi_reduction <add>, %591, %cst_283 [1] : vector<2x32xf32> to vector<2xf32>
    %593 = vector.shape_cast %592 : vector<2xf32> to vector<2x1xf32>
    %594 = arith.subf %575, %587 : vector<2x32xf32>
    %cst_284 = arith.constant 9.99999997E-7 : f32
    %595 = vector.broadcast %cst_284 : f32 to vector<2x32xf32>
    %596 = arith.addf %594, %595 : vector<2x32xf32>
    %597 = math.absf %596 : vector<2x32xf32>
    %cst_285 = arith.constant dense<0.000000e+00> : vector<2xf32>
    %598 = vector.multi_reduction <add>, %597, %cst_285 [1] : vector<2x32xf32> to vector<2xf32>
    %599 = vector.shape_cast %598 : vector<2xf32> to vector<2x1xf32>
    %cst_286 = arith.constant 0.000000e+00 : f32
    %600 = vector.broadcast %cst_286 : f32 to vector<8x128xf32>
    %c0_287 = arith.constant 0 : index
    %c0_288 = arith.constant 0 : index
    %601 = vector.load %arg7[%c0_287, %c0_288] : memref<8x128xf32, #tpu.memory_space<vmem>>, vector<8x128xf32>
    tpu.vector_store %arg7[%c0_287, %c0_288], %600 {strides = array<i32>} : memref<8x128xf32, #tpu.memory_space<vmem>>, vector<8x128xf32>,
    %602 = tpu.concatenate %593, %599 in 1 : vector<2x1xf32>, vector<2x1xf32> -> vector<2x2xf32>
    %c0_289 = arith.constant 0 : index
    %c0_290 = arith.constant 0 : index
    %603 = vector.load %arg7[%c0_289, %c0_290] : memref<8x128xf32, #tpu.memory_space<vmem>>, vector<2x2xf32>
    tpu.vector_store %arg7[%c0_289, %c0_290], %602 {strides = array<i32>} : memref<8x128xf32, #tpu.memory_space<vmem>>, vector<2x2xf32>,
    %c0_291 = arith.constant 0 : index
    %c2_292 = arith.constant 2 : index
    %604 = vector.load %arg7[%c0_291, %c2_292] : memref<8x128xf32, #tpu.memory_space<vmem>>, vector<1x1xf32>
    tpu.vector_store %arg7[%c0_291, %c2_292], %585 {strides = array<i32>} : memref<8x128xf32, #tpu.memory_space<vmem>>, vector<1x1xf32>,
    return
  }
}

</mosaic_0001>

<llo_original>
// kernel: answer_selection_forward.1
$region0: #{answer_selection_forward.1}
  #allocation0 [shape = 'u32[]', space=smem, size = 0x4, offset = 0x4, fixed_abs, tag = 'smem constant byte address 0x4 - core index']
  #allocation1 [shape = 'u32[72,128]{1,0:T(1,128)}', space=vmem, size = 0x9000, scoped, tag = 'internal scratch']
  %s0 = inlined_call_operand.vmem [shape: s32[8,6], index: 0, kind: input, shape index: {}]
  %s1 = inlined_call_operand.vmem [shape: f32[50,1,128], index: 1, kind: input, shape index: {}]
  %s2 = inlined_call_operand.vmem [shape: f32[4,32,32], index: 2, kind: input, shape index: {}]
  %s3 = inlined_call_operand.vmem [shape: f32[32,16], index: 3, kind: input, shape index: {}]
  %s4 = inlined_call_operand.vmem [shape: f32[1,16], index: 4, kind: input, shape index: {}]
  %s5 = inlined_call_operand.vmem [shape: f32[6,32], index: 5, kind: input, shape index: {}]
  %s6 = inlined_call_operand.vmem [shape: f32[6,32], index: 6, kind: input, shape index: {}]
  %s7 = inlined_call_operand.vmem [shape: f32[8,128], index: 7, kind: output, shape index: {}]
  %s8 = sld [smem:[#allocation0]]
  $region42: #{answer_selection_forward.1} parent=0
    _
  %s10 = ssub.s32 1, %s8
  %s11 = scalar_select 0, %s10, %s8
  $region1: #{answer_selection_forward.1} parent=0
    #allocation2 [shape = 'u8[4096]{0}', space=smem, size = 0x1000, scoped, tag = 'input window, operand 0, single buffered']
    #allocation3 [shape = 's32[1]{0}', space=sflag, size = 0x4, scoped, tag = 'scoped memory for answer_selection_forward.1']
    %12 = vsyncpa [#allocation3], 0
    // Predicated region
    $region2: #{answer_selection_forward.1} parent=1 // pred_check
      _
    $region3: #{answer_selection_forward.1} parent=1 // pred_check_branch
      %14 = sbr.rel (0) target = $region5
    $region4: #{answer_selection_forward.1} parent=1 // pred_region
      %16 = vsyncadd [#allocation3], 0
      %s18 = sshll.u32 %s0, 4
      %s19 = int_to_ptr.vmem [resolvable:$true] %s18
      %21 = dma.vmem_to_smem %s19, 128, [#allocation2], [#allocation3]
    $region5: #{answer_selection_forward.1} parent=1 // pred_fallthru
      _
    // Predicated region
    $region6: #{answer_selection_forward.1} parent=1 // pred_check
      _
    $region7: #{answer_selection_forward.1} parent=1 // pred_check_branch
      %23 = sbr.rel (0) target = $region9
    $region8: #{answer_selection_forward.1} parent=1 // pred_region
      _
    $region9: #{answer_selection_forward.1} parent=1 // pred_fallthru
      _
    // Predicated region
    $region10: #{answer_selection_forward.1} parent=1 // pred_check
      _
    $region11: #{answer_selection_forward.1} parent=1 // pred_check_branch
      %25 = sbr.rel (0) target = $region13
    $region12: #{answer_selection_forward.1} parent=1 // pred_region
      _
    $region13: #{answer_selection_forward.1} parent=1 // pred_fallthru
      _
    // Predicated region
    $region14: #{answer_selection_forward.1} parent=1 // pred_check
      _
    $region15: #{answer_selection_forward.1} parent=1 // pred_check_branch
      %27 = sbr.rel (0) target = $region17
    $region16: #{answer_selection_forward.1} parent=1 // pred_region
      _
    $region17: #{answer_selection_forward.1} parent=1 // pred_fallthru
      _
    // Predicated region
    $region18: #{answer_selection_forward.1} parent=1 // pred_check
      _
    $region19: #{answer_selection_forward.1} parent=1 // pred_check_branch
      %29 = sbr.rel (0) target = $region21
    $region20: #{answer_selection_forward.1} parent=1 // pred_region
      _
    $region21: #{answer_selection_forward.1} parent=1 // pred_fallthru
      _
    // Predicated region
    $region22: #{answer_selection_forward.1} parent=1 // pred_check
      _
    $region23: #{answer_selection_forward.1} parent=1 // pred_check_branch
      %31 = sbr.rel (0) target = $region25
    $region24: #{answer_selection_forward.1} parent=1 // pred_region
      _
    $region25: #{answer_selection_forward.1} parent=1 // pred_fallthru
      _
    // Predicated region
    $region26: #{answer_selection_forward.1} parent=1 // pred_check
      _
    $region27: #{answer_selection_forward.1} parent=1 // pred_check_branch
      %33 = sbr.rel (0) target = $region29
    $region28: #{answer_selection_forward.1} parent=1 // pred_region
      _
    $region29: #{answer_selection_forward.1} parent=1 // pred_fallthru
      _
    // Predicated region
    $region30: #{answer_selection_forward.1} parent=1 // pred_check
      _
    $region31: #{answer_selection_forward.1} parent=1 // pred_check_branch
      %35 = sbr.rel (0) target = $region33
    $region32: #{answer_selection_forward.1} parent=1 // pred_region
      %37 = dma.done [#allocation3], 128
    $region33: #{answer_selection_forward.1} parent=1 // pred_fallthru
      _
    %38 = sfence
    %v39 = vld [vmem:[%s2] sm:$0xff]
    %v40 = vld [vmem:[%s2 + $0x8] sm:$0xff]
    %v41 = vld [vmem:[%s2 + $0x10] sm:$0xff]
    %v42 = vld [vmem:[%s2 + $0x18] sm:$0xff]
    %s43 = scalar_lea.vmem %s2, 32
    %v44 = vld [vmem:[%s43] sm:$0xff]
    %v45 = vld [vmem:[%s43 + $0x8] sm:$0xff]
    %v46 = vld [vmem:[%s43 + $0x10] sm:$0xff]
    %v47 = vld [vmem:[%s43 + $0x18] sm:$0xff]
    %s48 = scalar_lea.vmem %s2, 64
    %v49 = vld [vmem:[%s48] sm:$0xff]
    %v50 = vld [vmem:[%s48 + $0x8] sm:$0xff]
    %v51 = vld [vmem:[%s48 + $0x10] sm:$0xff]
    %v52 = vld [vmem:[%s48 + $0x18] sm:$0xff]
    %s53 = scalar_lea.vmem %s2, 96
    %v54 = vld [vmem:[%s53] sm:$0xff]
    %v55 = vld [vmem:[%s53 + $0x8] sm:$0xff]
    %v56 = vld [vmem:[%s53 + $0x10] sm:$0xff]
    %v57 = vld [vmem:[%s53 + $0x18] sm:$0xff]
    %v58 = vld [vmem:[%s3] sm:$0xff]
    %v59 = vld [vmem:[%s3 + $0x8] sm:$0xff]
    %v60 = vld [vmem:[%s3 + $0x10] sm:$0xff]
    %v61 = vld [vmem:[%s3 + $0x18] sm:$0xff]
    %v62 = vld [vmem:[%s4] sm:$0x1]
    %v63 = vld [vmem:[%s5] sm:$0x3f]
    %v64 = vld [vmem:[%s6] sm:$0x3f]
    %s65 = sld [smem:[#allocation2]]
    %s66 = scalar_lea.vmem %s1, %s65
    %v67 = vld [vmem:[%s66] sm:$0x1]
    %s68 = sld [smem:[#allocation2 + $0x1]]
    %s69 = scalar_lea.vmem %s1, %s68
    %v70 = vld [vmem:[%s69] sm:$0x1]
    %s71 = sld [smem:[#allocation2 + $0x2]]
    %s72 = scalar_lea.vmem %s1, %s71
    %v73 = vld [vmem:[%s72] sm:$0x1]
    %s74 = sld [smem:[#allocation2 + $0x3]]
    %s75 = scalar_lea.vmem %s1, %s74
    %v76 = vld [vmem:[%s75] sm:$0x1]
    %s77 = sld [smem:[#allocation2 + $0x4]]
    %s78 = scalar_lea.vmem %s1, %s77
    %v79 = vld [vmem:[%s78] sm:$0x1]
    %s80 = sld [smem:[#allocation2 + $0x5]]
    %s81 = scalar_lea.vmem %s1, %s80
    %v82 = vld [vmem:[%s81] sm:$0x1]
    %v84 = vperm.slane %v70, 0
    %v87 = vperm.slane %v73, 0
    %v90 = vperm.slane %v76, 0
    %v93 = vperm.slane %v79, 0
    %v96 = vperm.slane %v82, 0
    %vm98 = vcmask 1040384
    %v99 = vsel %vm98, %v67, %v84
    %vm100 = vcmask 1041408
    %v101 = vsel %vm100, %v99, %v87
    %vm102 = vcmask 1042432
    %v103 = vsel %vm102, %v101, %v90
    %vm104 = vcmask 1043456
    %v105 = vsel %vm104, %v103, %v93
    %vm106 = vcmask 1044480
    %v107 = vsel %vm106, %v105, %v96
    %vm108 = vcmask 261120
    %v110 = vsel %vm108, %v63, 0
    %112 = vmatpush.msra.mxu0 0.0
    %113 = vmatpush.msra.mxu0 0.0
    %114 = vmatpush.msra.mxu0 0.0
    %115 = vmatpush.msra.mxu0 0.0
    %116 = vmatpush.msra.mxu0 0.0
    %117 = vmatpush.msra.mxu0 0.0
    %118 = vmatpush.msra.mxu0 0.0
    %119 = vmatpush.msra.mxu0 0.0
    %120 = vmatpush.msra.mxu0 0.0
    %121 = vmatpush.msra.mxu0 0.0
    %122 = vmatpush.msra.mxu0 0.0
    %123 = vmatpush.msra.mxu0 0.0
    %124 = vmatpush.msra.mxu0 %v42
    %125 = vmatpush.msra.mxu0 %v41
    %126 = vmatpush.msra.mxu0 %v40
    %127 = vmatpush.msra.mxu0 %v39
    %128 = vmatmul.f32.gmra.mxu0 %v110
    %v129 = vpop.f32.mrf.mxu0
    %v130 = vadd.f32 0.0, %v129
    %131 = vdwg.mxu0
    %v132 = vadd.f32 %v107, %v130
    %v133 = vxor.u32 %v132, 2147483648
    %v134 = vmul.f32 %v133, 1.442695
    %v135 = vpow.pop %v134
    %v136 = vadd.f32 %v135, 1.0
    %v137 = vrcp.pop %v136
    %v138 = vmul.f32 %v136, %v137
    %v139 = vsub.f32 1.0, %v138
    %v140 = vmul.f32 %v137, %v139
    %v141 = vadd.f32 %v137, %v140
    %vm142 = vweird.f32 %v136
    %vm143 = vweird.f32 %v137
    %vm144 = vmor %vm142, %vm143
    %v145 = vsel %vm144, %v137, %v141
    %v146 = vand.u32 2147483647, %v136
    %vm147 = vcmp.eq.f32.partialorder %v146, 8.507059e+37
    %v148 = vand.u32 %v136, 2147483648
    %v149 = vor.u32 1.1754944e-38, %v148
    %v150 = vsel %vm147, %v149, %v145
    %v151 = vmul.f32 1.0, %v150
    %152 = vmatpush.msra.mxu0 0.0
    %153 = vmatpush.msra.mxu0 0.0
    %154 = vmatpush.msra.mxu0 0.0
    %155 = vmatpush.msra.mxu0 0.0
    %156 = vmatpush.msra.mxu0 0.0
    %157 = vmatpush.msra.mxu0 0.0
    %158 = vmatpush.msra.mxu0 0.0
    %159 = vmatpush.msra.mxu0 0.0
    %160 = vmatpush.msra.mxu0 0.0
    %161 = vmatpush.msra.mxu0 0.0
    %162 = vmatpush.msra.mxu0 0.0
    %163 = vmatpush.msra.mxu0 0.0
    %164 = vmatpush.msra.mxu0 %v47
    %165 = vmatpush.msra.mxu0 %v46
    %166 = vmatpush.msra.mxu0 %v45
    %167 = vmatpush.msra.mxu0 %v44
    %168 = vmatmul.f32.gmra.mxu0 %v110
    %v169 = vpop.f32.mrf.mxu0
    %v170 = vadd.f32 0.0, %v169
    %171 = vdwg.mxu0
    %173 = vrot.lane.b32.xlu0 %v170, 32
    %v174 = vpop.permute.xlu0 %173
    %v176 = vadd.f32 %v107, %v174
    %v177 = vxor.u32 %v176, 2147483648
    %v178 = vmul.f32 %v177, 1.442695
    %v179 = vpow.pop %v178
    %v180 = vadd.f32 %v179, 1.0
    %v181 = vrcp.pop %v180
    %v182 = vmul.f32 %v180, %v181
    %v183 = vsub.f32 1.0, %v182
    %v184 = vmul.f32 %v181, %v183
    %v185 = vadd.f32 %v181, %v184
    %vm186 = vweird.f32 %v180
    %vm187 = vweird.f32 %v181
    %vm188 = vmor %vm186, %vm187
    %v189 = vsel %vm188, %v181, %v185
    %v190 = vand.u32 2147483647, %v180
    %vm191 = vcmp.eq.f32.partialorder %v190, 8.507059e+37
    %v192 = vand.u32 %v180, 2147483648
    %v193 = vor.u32 1.1754944e-38, %v192
    %v194 = vsel %vm191, %v193, %v189
    %v195 = vmul.f32 1.0, %v194
    %196 = vmatpush.msra.mxu0 0.0
    %197 = vmatpush.msra.mxu0 0.0
    %198 = vmatpush.msra.mxu0 0.0
    %199 = vmatpush.msra.mxu0 0.0
    %200 = vmatpush.msra.mxu0 0.0
    %201 = vmatpush.msra.mxu0 0.0
    %202 = vmatpush.msra.mxu0 0.0
    %203 = vmatpush.msra.mxu0 0.0
    %204 = vmatpush.msra.mxu0 0.0
    %205 = vmatpush.msra.mxu0 0.0
    %206 = vmatpush.msra.mxu0 0.0
    %207 = vmatpush.msra.mxu0 0.0
    %208 = vmatpush.msra.mxu0 %v52
    %209 = vmatpush.msra.mxu0 %v51
    %210 = vmatpush.msra.mxu0 %v50
    %211 = vmatpush.msra.mxu0 %v49
    %212 = vmatmul.f32.gmra.mxu0 %v110
    %v213 = vpop.f32.mrf.mxu0
    %v214 = vadd.f32 0.0, %v213
    %215 = vdwg.mxu0
    %217 = vrot.lane.b32.xlu0 %v214, 64
    %v218 = vpop.permute.xlu0 %217
    %v220 = vadd.f32 %v107, %v218
    %v221 = vtanh.pop %v220
    %222 = vmatpush.msra.mxu0 0.0
    %223 = vmatpush.msra.mxu0 0.0
    %224 = vmatpush.msra.mxu0 0.0
    %225 = vmatpush.msra.mxu0 0.0
    %226 = vmatpush.msra.mxu0 0.0
    %227 = vmatpush.msra.mxu0 0.0
    %228 = vmatpush.msra.mxu0 0.0
    %229 = vmatpush.msra.mxu0 0.0
    %230 = vmatpush.msra.mxu0 0.0
    %231 = vmatpush.msra.mxu0 0.0
    %232 = vmatpush.msra.mxu0 0.0
    %233 = vmatpush.msra.mxu0 0.0
    %234 = vmatpush.msra.mxu0 %v57
    %235 = vmatpush.msra.mxu0 %v56
    %236 = vmatpush.msra.mxu0 %v55
    %237 = vmatpush.msra.mxu0 %v54
    %238 = vmatmul.f32.gmra.mxu0 %v110
    %v239 = vpop.f32.mrf.mxu0
    %v240 = vadd.f32 0.0, %v239
    %241 = vdwg.mxu0
    %243 = vrot.lane.b32.xlu0 %v240, 96
    %v244 = vpop.permute.xlu0 %243
    %v246 = vadd.f32 %v107, %v244
    %v247 = vxor.u32 %v246, 2147483648
    %v248 = vmul.f32 %v247, 1.442695
    %v249 = vpow.pop %v248
    %v250 = vadd.f32 %v249, 1.0
    %v251 = vrcp.pop %v250
    %v252 = vmul.f32 %v250, %v251
    %v253 = vsub.f32 1.0, %v252
    %v254 = vmul.f32 %v251, %v253
    %v255 = vadd.f32 %v251, %v254
    %vm256 = vweird.f32 %v250
    %vm257 = vweird.f32 %v251
    %vm258 = vmor %vm256, %vm257
    %v259 = vsel %vm258, %v251, %v255
    %v260 = vand.u32 2147483647, %v250
    %vm261 = vcmp.eq.f32.partialorder %v260, 8.507059e+37
    %v262 = vand.u32 %v250, 2147483648
    %v263 = vor.u32 1.1754944e-38, %v262
    %v264 = vsel %vm261, %v263, %v259
    %v265 = vmul.f32 1.0, %v264
    %267 = vrot.lane.b32.xlu0 %v64, 32
    %v268 = vpop.permute.xlu0 %267
    %v270 = vmul.f32 %v195, %v268
    %272 = vrot.lane.b32.xlu0 %v221, 64
    %v273 = vpop.permute.xlu0 %272
    %v275 = vmul.f32 %v151, %v273
    %277 = vrot.lane.b32.xlu0 %v275, 32
    %v278 = vpop.permute.xlu0 %277
    %v280 = vadd.f32 %v270, %v278
    %v281 = vtanh.pop %v280
    %283 = vrot.lane.b32.xlu0 %v281, 64
    %v284 = vpop.permute.xlu0 %283
    %v286 = vmul.f32 %v265, %v284
    %288 = vrot.lane.b32.xlu0 %v286, 32
    %v289 = vpop.permute.xlu0 %288
    %v290 = vsel %vm108, %v289, 0
    %292 = vmatpush.msra.mxu0 0.0
    %293 = vmatpush.msra.mxu0 0.0
    %294 = vmatpush.msra.mxu0 0.0
    %295 = vmatpush.msra.mxu0 0.0
    %296 = vmatpush.msra.mxu0 0.0
    %297 = vmatpush.msra.mxu0 0.0
    %298 = vmatpush.msra.mxu0 0.0
    %299 = vmatpush.msra.mxu0 0.0
    %300 = vmatpush.msra.mxu0 0.0
    %301 = vmatpush.msra.mxu0 0.0
    %302 = vmatpush.msra.mxu0 0.0
    %303 = vmatpush.msra.mxu0 0.0
    %304 = vmatpush.msra.mxu0 %v61
    %305 = vmatpush.msra.mxu0 %v60
    %306 = vmatpush.msra.mxu0 %v59
    %307 = vmatpush.msra.mxu0 %v58
    %308 = vmatmul.f32.gmra.mxu0 %v290
    %v309 = vpop.f32.mrf.mxu0
    %v310 = vadd.f32 0.0, %v309
    %311 = vdwg.mxu0
    %v312 = vtanh.pop %v310
    %v314 = vperm.slane %v62, 0
    %v316 = vmul.f32 %v312, %v314
    %vm317 = vcmask 123904
    %v318 = vsel %vm317, %v316, 0.0
    %319 = vadd.xlane.f32.xlu0 %v318
    %v320 = vpop.xlane.xlu0 %319
    %s321 = sld [smem:[#allocation2 + $0x80]]
    %s322 = scalar_lea.vmem %s1, %s321
    %v323 = vld [vmem:[%s322] sm:$0x1]
    %s324 = sld [smem:[#allocation2 + $0x81]]
    %s325 = scalar_lea.vmem %s1, %s324
    %v326 = vld [vmem:[%s325] sm:$0x1]
    %s327 = sld [smem:[#allocation2 + $0x82]]
    %s328 = scalar_lea.vmem %s1, %s327
    %v329 = vld [vmem:[%s328] sm:$0x1]
    %s330 = sld [smem:[#allocation2 + $0x83]]
    %s331 = scalar_lea.vmem %s1, %s330
    %v332 = vld [vmem:[%s331] sm:$0x1]
    %s333 = sld [smem:[#allocation2 + $0x84]]
    %s334 = scalar_lea.vmem %s1, %s333
    %v335 = vld [vmem:[%s334] sm:$0x1]
    %s336 = sld [smem:[#allocation2 + $0x85]]
    %s337 = scalar_lea.vmem %s1, %s336
    %v338 = vld [vmem:[%s337] sm:$0x1]
    %v340 = vperm.slane %v326, 0
    %v343 = vperm.slane %v329, 0
    %v346 = vperm.slane %v332, 0
    %v349 = vperm.slane %v335, 0
    %v352 = vperm.slane %v338, 0
    %v354 = vsel %vm98, %v323, %v340
    %v355 = vsel %vm100, %v354, %v343
    %v356 = vsel %vm102, %v355, %v346
    %v357 = vsel %vm104, %v356, %v349
    %v358 = vsel %vm106, %v357, %v352
    %359 = vmatpush.msra.mxu0 0.0
    %360 = vmatpush.msra.mxu0 0.0
    %361 = vmatpush.msra.mxu0 0.0
    %362 = vmatpush.msra.mxu0 0.0
    %363 = vmatpush.msra.mxu0 0.0
    %364 = vmatpush.msra.mxu0 0.0
    %365 = vmatpush.msra.mxu0 0.0
    %366 = vmatpush.msra.mxu0 0.0
    %367 = vmatpush.msra.mxu0 0.0
    %368 = vmatpush.msra.mxu0 0.0
    %369 = vmatpush.msra.mxu0 0.0
    %370 = vmatpush.msra.mxu0 0.0
    %371 = vmatpush.msra.mxu0 %v42
    %372 = vmatpush.msra.mxu0 %v41
    %373 = vmatpush.msra.mxu0 %v40
    %374 = vmatpush.msra.mxu0 %v39
    %375 = vmatmul.f32.gmra.mxu0 %v290
    %v376 = vpop.f32.mrf.mxu0
    %v377 = vadd.f32 0.0, %v376
    %378 = vdwg.mxu0
    %v379 = vadd.f32 %v358, %v377
    %v380 = vxor.u32 %v379, 2147483648
    %v381 = vmul.f32 %v380, 1.442695
    %v382 = vpow.pop %v381
    %v383 = vadd.f32 %v382, 1.0
    %v384 = vrcp.pop %v383
    %v385 = vmul.f32 %v383, %v384
    %v386 = vsub.f32 1.0, %v385
    %v387 = vmul.f32 %v384, %v386
    %v388 = vadd.f32 %v384, %v387
    %vm389 = vweird.f32 %v383
    %vm390 = vweird.f32 %v384
    %vm391 = vmor %vm389, %vm390
    %v392 = vsel %vm391, %v384, %v388
    %v393 = vand.u32 2147483647, %v383
    %vm394 = vcmp.eq.f32.partialorder %v393, 8.507059e+37
    %v395 = vand.u32 %v383, 2147483648
    %v396 = vor.u32 1.1754944e-38, %v395
    %v397 = vsel %vm394, %v396, %v392
    %v398 = vmul.f32 1.0, %v397
    %399 = vmatpush.msra.mxu0 0.0
    %400 = vmatpush.msra.mxu0 0.0
    %401 = vmatpush.msra.mxu0 0.0
    %402 = vmatpush.msra.mxu0 0.0
    %403 = vmatpush.msra.mxu0 0.0
    %404 = vmatpush.msra.mxu0 0.0
    %405 = vmatpush.msra.mxu0 0.0
    %406 = vmatpush.msra.mxu0 0.0
    %407 = vmatpush.msra.mxu0 0.0
    %408 = vmatpush.msra.mxu0 0.0
    %409 = vmatpush.msra.mxu0 0.0
    %410 = vmatpush.msra.mxu0 0.0
    %411 = vmatpush.msra.mxu0 %v47
    %412 = vmatpush.msra.mxu0 %v46
    %413 = vmatpush.msra.mxu0 %v45
    %414 = vmatpush.msra.mxu0 %v44
    %415 = vmatmul.f32.gmra.mxu0 %v290
    %v416 = vpop.f32.mrf.mxu0
    %v417 = vadd.f32 0.0, %v416
    %418 = vdwg.mxu0
    %420 = vrot.lane.b32.xlu0 %v417, 32
    %v421 = vpop.permute.xlu0 %420
    %v423 = vadd.f32 %v358, %v421
    %v424 = vxor.u32 %v423, 2147483648
    %v425 = vmul.f32 %v424, 1.442695
    %v426 = vpow.pop %v425
    %v427 = vadd.f32 %v426, 1.0
    %v428 = vrcp.pop %v427
    %v429 = vmul.f32 %v427, %v428
    %v430 = vsub.f32 1.0, %v429
    %v431 = vmul.f32 %v428, %v430
    %v432 = vadd.f32 %v428, %v431
    %vm433 = vweird.f32 %v427
    %vm434 = vweird.f32 %v428
    %vm435 = vmor %vm433, %vm434
    %v436 = vsel %vm435, %v428, %v432
    %v437 = vand.u32 2147483647, %v427
    %vm438 = vcmp.eq.f32.partialorder %v437, 8.507059e+37
    %v439 = vand.u32 %v427, 2147483648
    %v440 = vor.u32 1.1754944e-38, %v439
    %v441 = vsel %vm438, %v440, %v436
    %v442 = vmul.f32 1.0, %v441
    %443 = vmatpush.msra.mxu0 0.0
    %444 = vmatpush.msra.mxu0 0.0
    %445 = vmatpush.msra.mxu0 0.0
    %446 = vmatpush.msra.mxu0 0.0
    %447 = vmatpush.msra.mxu0 0.0
    %448 = vmatpush.msra.mxu0 0.0
    %449 = vmatpush.msra.mxu0 0.0
    %450 = vmatpush.msra.mxu0 0.0
    %451 = vmatpush.msra.mxu0 0.0
    %452 = vmatpush.msra.mxu0 0.0
    %453 = vmatpush.msra.mxu0 0.0
    %454 = vmatpush.msra.mxu0 0.0
    %455 = vmatpush.msra.mxu0 %v52
    %456 = vmatpush.msra.mxu0 %v51
    %457 = vmatpush.msra.mxu0 %v50
    %458 = vmatpush.msra.mxu0 %v49
    %459 = vmatmul.f32.gmra.mxu0 %v290
    %v460 = vpop.f32.mrf.mxu0
    %v461 = vadd.f32 0.0, %v460
    %462 = vdwg.mxu0
    %464 = vrot.lane.b32.xlu0 %v461, 64
    %v465 = vpop.permute.xlu0 %464
    %v467 = vadd.f32 %v358, %v465
    %v468 = vtanh.pop %v467
    %469 = vmatpush.msra.mxu0 0.0
    %470 = vmatpush.msra.mxu0 0.0
    %471 = vmatpush.msra.mxu0 0.0
    %472 = vmatpush.msra.mxu0 0.0
    %473 = vmatpush.msra.mxu0 0.0
    %474 = vmatpush.msra.mxu0 0.0
    %475 = vmatpush.msra.mxu0 0.0
    %476 = vmatpush.msra.mxu0 0.0
    %477 = vmatpush.msra.mxu0 0.0
    %478 = vmatpush.msra.mxu0 0.0
    %479 = vmatpush.msra.mxu0 0.0
    %480 = vmatpush.msra.mxu0 0.0
    %481 = vmatpush.msra.mxu0 %v57
    %482 = vmatpush.msra.mxu0 %v56
    %483 = vmatpush.msra.mxu0 %v55
    %484 = vmatpush.msra.mxu0 %v54
    %485 = vmatmul.f32.gmra.mxu0 %v290
    %v486 = vpop.f32.mrf.mxu0
    %v487 = vadd.f32 0.0, %v486
    %488 = vdwg.mxu0
    %490 = vrot.lane.b32.xlu0 %v487, 96
    %v491 = vpop.permute.xlu0 %490
    %v493 = vadd.f32 %v358, %v491
    %v494 = vxor.u32 %v493, 2147483648
    %v495 = vmul.f32 %v494, 1.442695
    %v496 = vpow.pop %v495
    %v497 = vadd.f32 %v496, 1.0
    %v498 = vrcp.pop %v497
    %v499 = vmul.f32 %v497, %v498
    %v500 = vsub.f32 1.0, %v499
    %v501 = vmul.f32 %v498, %v500
    %v502 = vadd.f32 %v498, %v501
    %vm503 = vweird.f32 %v497
    %vm504 = vweird.f32 %v498
    %vm505 = vmor %vm503, %vm504
    %v506 = vsel %vm505, %v498, %v502
    %v507 = vand.u32 2147483647, %v497
    %vm508 = vcmp.eq.f32.partialorder %v507, 8.507059e+37
    %v509 = vand.u32 %v497, 2147483648
    %v510 = vor.u32 1.1754944e-38, %v509
    %v511 = vsel %vm508, %v510, %v506
    %v512 = vmul.f32 1.0, %v511
    %v513 = vmul.f32 %v442, %v280
    %515 = vrot.lane.b32.xlu0 %v468, 64
    %v516 = vpop.permute.xlu0 %515
    %v518 = vmul.f32 %v398, %v516
    %520 = vrot.lane.b32.xlu0 %v518, 32
    %v521 = vpop.permute.xlu0 %520
    %v523 = vadd.f32 %v513, %v521
    %v524 = vtanh.pop %v523
    %526 = vrot.lane.b32.xlu0 %v524, 64
    %v527 = vpop.permute.xlu0 %526
    %v529 = vmul.f32 %v512, %v527
    %531 = vrot.lane.b32.xlu0 %v529, 32
    %v532 = vpop.permute.xlu0 %531
    %v533 = vsel %vm108, %v532, 0
    %535 = vmatpush.msra.mxu0 0.0
    %536 = vmatpush.msra.mxu0 0.0
    %537 = vmatpush.msra.mxu0 0.0
    %538 = vmatpush.msra.mxu0 0.0
    %539 = vmatpush.msra.mxu0 0.0
    %540 = vmatpush.msra.mxu0 0.0
    %541 = vmatpush.msra.mxu0 0.0
    %542 = vmatpush.msra.mxu0 0.0
    %543 = vmatpush.msra.mxu0 0.0
    %544 = vmatpush.msra.mxu0 0.0
    %545 = vmatpush.msra.mxu0 0.0
    %546 = vmatpush.msra.mxu0 0.0
    %547 = vmatpush.msra.mxu0 %v61
    %548 = vmatpush.msra.mxu0 %v60
    %549 = vmatpush.msra.mxu0 %v59
    %550 = vmatpush.msra.mxu0 %v58
    %551 = vmatmul.f32.gmra.mxu0 %v533
    %v552 = vpop.f32.mrf.mxu0
    %v553 = vadd.f32 0.0, %v552
    %554 = vdwg.mxu0
    %v555 = vtanh.pop %v553
    %v556 = vmul.f32 %v555, %v314
    %v557 = vsel %vm317, %v556, 0.0
    %558 = vadd.xlane.f32.xlu0 %v557
    %v559 = vpop.xlane.xlu0 %558
    %s560 = sld [smem:[#allocation2 + $0x100]]
    %s561 = scalar_lea.vmem %s1, %s560
    %v562 = vld [vmem:[%s561] sm:$0x1]
    %s563 = sld [smem:[#allocation2 + $0x101]]
    %s564 = scalar_lea.vmem %s1, %s563
    %v565 = vld [vmem:[%s564] sm:$0x1]
    %s566 = sld [smem:[#allocation2 + $0x102]]
    %s567 = scalar_lea.vmem %s1, %s566
    %v568 = vld [vmem:[%s567] sm:$0x1]
    %s569 = sld [smem:[#allocation2 + $0x103]]
    %s570 = scalar_lea.vmem %s1, %s569
    %v571 = vld [vmem:[%s570] sm:$0x1]
    %s572 = sld [smem:[#allocation2 + $0x104]]
    %s573 = scalar_lea.vmem %s1, %s572
    %v574 = vld [vmem:[%s573] sm:$0x1]
    %s575 = sld [smem:[#allocation2 + $0x105]]
    %s576 = scalar_lea.vmem %s1, %s575
    %v577 = vld [vmem:[%s576] sm:$0x1]
    %v579 = vperm.slane %v565, 0
    %v582 = vperm.slane %v568, 0
    %v585 = vperm.slane %v571, 0
    %v588 = vperm.slane %v574, 0
    %v591 = vperm.slane %v577, 0
    %v593 = vsel %vm98, %v562, %v579
    %v594 = vsel %vm100, %v593, %v582
    %v595 = vsel %vm102, %v594, %v585
    %v596 = vsel %vm104, %v595, %v588
    %v597 = vsel %vm106, %v596, %v591
    %598 = vmatpush.msra.mxu0 0.0
    %599 = vmatpush.msra.mxu0 0.0
    %600 = vmatpush.msra.mxu0 0.0
    %601 = vmatpush.msra.mxu0 0.0
    %602 = vmatpush.msra.mxu0 0.0
    %603 = vmatpush.msra.mxu0 0.0
    %604 = vmatpush.msra.mxu0 0.0
    %605 = vmatpush.msra.mxu0 0.0
    %606 = vmatpush.msra.mxu0 0.0
    %607 = vmatpush.msra.mxu0 0.0
    %608 = vmatpush.msra.mxu0 0.0
    %609 = vmatpush.msra.mxu0 0.0
    %610 = vmatpush.msra.mxu0 %v42
    %611 = vmatpush.msra.mxu0 %v41
    %612 = vmatpush.msra.mxu0 %v40
    %613 = vmatpush.msra.mxu0 %v39
    %614 = vmatmul.f32.gmra.mxu0 %v533
    %v615 = vpop.f32.mrf.mxu0
    %v616 = vadd.f32 0.0, %v615
    %617 = vdwg.mxu0
    %v618 = vadd.f32 %v597, %v616
    %v619 = vxor.u32 %v618, 2147483648
    %v620 = vmul.f32 %v619, 1.442695
    %v621 = vpow.pop %v620
    %v622 = vadd.f32 %v621, 1.0
    %v623 = vrcp.pop %v622
    %v624 = vmul.f32 %v622, %v623
    %v625 = vsub.f32 1.0, %v624
    %v626 = vmul.f32 %v623, %v625
    %v627 = vadd.f32 %v623, %v626
    %vm628 = vweird.f32 %v622
    %vm629 = vweird.f32 %v623
    %vm630 = vmor %vm628, %vm629
    %v631 = vsel %vm630, %v623, %v627
    %v632 = vand.u32 2147483647, %v622
    %vm633 = vcmp.eq.f32.partialorder %v632, 8.507059e+37
    %v634 = vand.u32 %v622, 2147483648
    %v635 = vor.u32 1.1754944e-38, %v634
    %v636 = vsel %vm633, %v635, %v631
    %v637 = vmul.f32 1.0, %v636
    %638 = vmatpush.msra.mxu0 0.0
    %639 = vmatpush.msra.mxu0 0.0
    %640 = vmatpush.msra.mxu0 0.0
    %641 = vmatpush.msra.mxu0 0.0
    %642 = vmatpush.msra.mxu0 0.0
    %643 = vmatpush.msra.mxu0 0.0
    %644 = vmatpush.msra.mxu0 0.0
    %645 = vmatpush.msra.mxu0 0.0
    %646 = vmatpush.msra.mxu0 0.0
    %647 = vmatpush.msra.mxu0 0.0
    %648 = vmatpush.msra.mxu0 0.0
    %649 = vmatpush.msra.mxu0 0.0
    %650 = vmatpush.msra.mxu0 %v47
    %651 = vmatpush.msra.mxu0 %v46
    %652 = vmatpush.msra.mxu0 %v45
    %653 = vmatpush.msra.mxu0 %v44
    %654 = vmatmul.f32.gmra.mxu0 %v533
    %v655 = vpop.f32.mrf.mxu0
    %v656 = vadd.f32 0.0, %v655
    %657 = vdwg.mxu0
    %659 = vrot.lane.b32.xlu0 %v656, 32
    %v660 = vpop.permute.xlu0 %659
    %v662 = vadd.f32 %v597, %v660
    %v663 = vxor.u32 %v662, 2147483648
    %v664 = vmul.f32 %v663, 1.442695
    %v665 = vpow.pop %v664
    %v666 = vadd.f32 %v665, 1.0
    %v667 = vrcp.pop %v666
    %v668 = vmul.f32 %v666, %v667
    %v669 = vsub.f32 1.0, %v668
    %v670 = vmul.f32 %v667, %v669
    %v671 = vadd.f32 %v667, %v670
    %vm672 = vweird.f32 %v666
    %vm673 = vweird.f32 %v667
    %vm674 = vmor %vm672, %vm673
    %v675 = vsel %vm674, %v667, %v671
    %v676 = vand.u32 2147483647, %v666
    %vm677 = vcmp.eq.f32.partialorder %v676, 8.507059e+37
    %v678 = vand.u32 %v666, 2147483648
    %v679 = vor.u32 1.1754944e-38, %v678
    %v680 = vsel %vm677, %v679, %v675
    %v681 = vmul.f32 1.0, %v680
    %682 = vmatpush.msra.mxu0 0.0
    %683 = vmatpush.msra.mxu0 0.0
    %684 = vmatpush.msra.mxu0 0.0
    %685 = vmatpush.msra.mxu0 0.0
    %686 = vmatpush.msra.mxu0 0.0
    %687 = vmatpush.msra.mxu0 0.0
    %688 = vmatpush.msra.mxu0 0.0
    %689 = vmatpush.msra.mxu0 0.0
    %690 = vmatpush.msra.mxu0 0.0
    %691 = vmatpush.msra.mxu0 0.0
    %692 = vmatpush.msra.mxu0 0.0
    %693 = vmatpush.msra.mxu0 0.0
    %694 = vmatpush.msra.mxu0 %v52
    %695 = vmatpush.msra.mxu0 %v51
    %696 = vmatpush.msra.mxu0 %v50
    %697 = vmatpush.msra.mxu0 %v49
    %698 = vmatmul.f32.gmra.mxu0 %v533
    %v699 = vpop.f32.mrf.mxu0
    %v700 = vadd.f32 0.0, %v699
    %701 = vdwg.mxu0
    %703 = vrot.lane.b32.xlu0 %v700, 64
    %v704 = vpop.permute.xlu0 %703
    %v706 = vadd.f32 %v597, %v704
    %v707 = vtanh.pop %v706
    %708 = vmatpush.msra.mxu0 0.0
    %709 = vmatpush.msra.mxu0 0.0
    %710 = vmatpush.msra.mxu0 0.0
    %711 = vmatpush.msra.mxu0 0.0
    %712 = vmatpush.msra.mxu0 0.0
    %713 = vmatpush.msra.mxu0 0.0
    %714 = vmatpush.msra.mxu0 0.0
    %715 = vmatpush.msra.mxu0 0.0
    %716 = vmatpush.msra.mxu0 0.0
    %717 = vmatpush.msra.mxu0 0.0
    %718 = vmatpush.msra.mxu0 0.0
    %719 = vmatpush.msra.mxu0 0.0
    %720 = vmatpush.msra.mxu0 %v57
    %721 = vmatpush.msra.mxu0 %v56
    %722 = vmatpush.msra.mxu0 %v55
    %723 = vmatpush.msra.mxu0 %v54
    %724 = vmatmul.f32.gmra.mxu0 %v533
    %v725 = vpop.f32.mrf.mxu0
    %v726 = vadd.f32 0.0, %v725
    %727 = vdwg.mxu0
    %729 = vrot.lane.b32.xlu0 %v726, 96
    %v730 = vpop.permute.xlu0 %729
    %v732 = vadd.f32 %v597, %v730
    %v733 = vxor.u32 %v732, 2147483648
    %v734 = vmul.f32 %v733, 1.442695
    %v735 = vpow.pop %v734
    %v736 = vadd.f32 %v735, 1.0
    %v737 = vrcp.pop %v736
    %v738 = vmul.f32 %v736, %v737
    %v739 = vsub.f32 1.0, %v738
    %v740 = vmul.f32 %v737, %v739
    %v741 = vadd.f32 %v737, %v740
    %vm742 = vweird.f32 %v736
    %vm743 = vweird.f32 %v737
    %vm744 = vmor %vm742, %vm743
    %v745 = vsel %vm744, %v737, %v741
    %v746 = vand.u32 2147483647, %v736
    %vm747 = vcmp.eq.f32.partialorder %v746, 8.507059e+37
    %v748 = vand.u32 %v736, 2147483648
    %v749 = vor.u32 1.1754944e-38, %v748
    %v750 = vsel %vm747, %v749, %v745
    %v751 = vmul.f32 1.0, %v750
    %v752 = vmul.f32 %v681, %v523
    %754 = vrot.lane.b32.xlu0 %v707, 64
    %v755 = vpop.permute.xlu0 %754
    %v757 = vmul.f32 %v637, %v755
    %759 = vrot.lane.b32.xlu0 %v757, 32
    %v760 = vpop.permute.xlu0 %759
    %v762 = vadd.f32 %v752, %v760
    %v763 = vtanh.pop %v762
    %765 = vrot.lane.b32.xlu0 %v763, 64
    %v766 = vpop.permute.xlu0 %765
    %v768 = vmul.f32 %v751, %v766
    %770 = vrot.lane.b32.xlu0 %v768, 32
    %v771 = vpop.permute.xlu0 %770
    %v772 = vsel %vm108, %v771, 0
    %774 = vmatpush.msra.mxu0 0.0
    %775 = vmatpush.msra.mxu0 0.0
    %776 = vmatpush.msra.mxu0 0.0
    %777 = vmatpush.msra.mxu0 0.0
    %778 = vmatpush.msra.mxu0 0.0
    %779 = vmatpush.msra.mxu0 0.0
    %780 = vmatpush.msra.mxu0 0.0
    %781 = vmatpush.msra.mxu0 0.0
    %782 = vmatpush.msra.mxu0 0.0
    %783 = vmatpush.msra.mxu0 0.0
    %784 = vmatpush.msra.mxu0 0.0
    %785 = vmatpush.msra.mxu0 0.0
    %786 = vmatpush.msra.mxu0 %v61
    %787 = vmatpush.msra.mxu0 %v60
    %788 = vmatpush.msra.mxu0 %v59
    %789 = vmatpush.msra.mxu0 %v58
    %790 = vmatmul.f32.gmra.mxu0 %v772
    %v791 = vpop.f32.mrf.mxu0
    %v792 = vadd.f32 0.0, %v791
    %793 = vdwg.mxu0
    %v794 = vtanh.pop %v792
    %v795 = vmul.f32 %v794, %v314
    %v796 = vsel %vm317, %v795, 0.0
    %797 = vadd.xlane.f32.xlu0 %v796
    %v798 = vpop.xlane.xlu0 %797
    %s799 = sld [smem:[#allocation2 + $0x180]]
    %s800 = scalar_lea.vmem %s1, %s799
    %v801 = vld [vmem:[%s800] sm:$0x1]
    %s802 = sld [smem:[#allocation2 + $0x181]]
    %s803 = scalar_lea.vmem %s1, %s802
    %v804 = vld [vmem:[%s803] sm:$0x1]
    %s805 = sld [smem:[#allocation2 + $0x182]]
    %s806 = scalar_lea.vmem %s1, %s805
    %v807 = vld [vmem:[%s806] sm:$0x1]
    %s808 = sld [smem:[#allocation2 + $0x183]]
    %s809 = scalar_lea.vmem %s1, %s808
    %v810 = vld [vmem:[%s809] sm:$0x1]
    %s811 = sld [smem:[#allocation2 + $0x184]]
    %s812 = scalar_lea.vmem %s1, %s811
    %v813 = vld [vmem:[%s812] sm:$0x1]
    %s814 = sld [smem:[#allocation2 + $0x185]]
    %s815 = scalar_lea.vmem %s1, %s814
    %v816 = vld [vmem:[%s815] sm:$0x1]
    %v818 = vperm.slane %v804, 0
    %v821 = vperm.slane %v807, 0
    %v824 = vperm.slane %v810, 0
    %v827 = vperm.slane %v813, 0
    %v830 = vperm.slane %v816, 0
    %v832 = vsel %vm98, %v801, %v818
    %v833 = vsel %vm100, %v832, %v821
    %v834 = vsel %vm102, %v833, %v824
    %v835 = vsel %vm104, %v834, %v827
    %v836 = vsel %vm106, %v835, %v830
    %837 = vmatpush.msra.mxu0 0.0
    %838 = vmatpush.msra.mxu0 0.0
    %839 = vmatpush.msra.mxu0 0.0
    %840 = vmatpush.msra.mxu0 0.0
    %841 = vmatpush.msra.mxu0 0.0
    %842 = vmatpush.msra.mxu0 0.0
    %843 = vmatpush.msra.mxu0 0.0
    %844 = vmatpush.msra.mxu0 0.0
    %845 = vmatpush.msra.mxu0 0.0
    %846 = vmatpush.msra.mxu0 0.0
    %847 = vmatpush.msra.mxu0 0.0
    %848 = vmatpush.msra.mxu0 0.0
    %849 = vmatpush.msra.mxu0 %v42
    %850 = vmatpush.msra.mxu0 %v41
    %851 = vmatpush.msra.mxu0 %v40
    %852 = vmatpush.msra.mxu0 %v39
    %853 = vmatmul.f32.gmra.mxu0 %v772
    %v854 = vpop.f32.mrf.mxu0
    %v855 = vadd.f32 0.0, %v854
    %856 = vdwg.mxu0
    %v857 = vadd.f32 %v836, %v855
    %v858 = vxor.u32 %v857, 2147483648
    %v859 = vmul.f32 %v858, 1.442695
    %v860 = vpow.pop %v859
    %v861 = vadd.f32 %v860, 1.0
    %v862 = vrcp.pop %v861
    %v863 = vmul.f32 %v861, %v862
    %v864 = vsub.f32 1.0, %v863
    %v865 = vmul.f32 %v862, %v864
    %v866 = vadd.f32 %v862, %v865
    %vm867 = vweird.f32 %v861
    %vm868 = vweird.f32 %v862
    %vm869 = vmor %vm867, %vm868
    %v870 = vsel %vm869, %v862, %v866
    %v871 = vand.u32 2147483647, %v861
    %vm872 = vcmp.eq.f32.partialorder %v871, 8.507059e+37
    %v873 = vand.u32 %v861, 2147483648
    %v874 = vor.u32 1.1754944e-38, %v873
    %v875 = vsel %vm872, %v874, %v870
    %v876 = vmul.f32 1.0, %v875
    %877 = vmatpush.msra.mxu0 0.0
    %878 = vmatpush.msra.mxu0 0.0
    %879 = vmatpush.msra.mxu0 0.0
    %880 = vmatpush.msra.mxu0 0.0
    %881 = vmatpush.msra.mxu0 0.0
    %882 = vmatpush.msra.mxu0 0.0
    %883 = vmatpush.msra.mxu0 0.0
    %884 = vmatpush.msra.mxu0 0.0
    %885 = vmatpush.msra.mxu0 0.0
    %886 = vmatpush.msra.mxu0 0.0
    %887 = vmatpush.msra.mxu0 0.0
    %888 = vmatpush.msra.mxu0 0.0
    %889 = vmatpush.msra.mxu0 %v47
    %890 = vmatpush.msra.mxu0 %v46
    %891 = vmatpush.msra.mxu0 %v45
    %892 = vmatpush.msra.mxu0 %v44
    %893 = vmatmul.f32.gmra.mxu0 %v772
    %v894 = vpop.f32.mrf.mxu0
    %v895 = vadd.f32 0.0, %v894
    %896 = vdwg.mxu0
    %898 = vrot.lane.b32.xlu0 %v895, 32
    %v899 = vpop.permute.xlu0 %898
    %v901 = vadd.f32 %v836, %v899
    %v902 = vxor.u32 %v901, 2147483648
    %v903 = vmul.f32 %v902, 1.442695
    %v904 = vpow.pop %v903
    %v905 = vadd.f32 %v904, 1.0
    %v906 = vrcp.pop %v905
    %v907 = vmul.f32 %v905, %v906
    %v908 = vsub.f32 1.0, %v907
    %v909 = vmul.f32 %v906, %v908
    %v910 = vadd.f32 %v906, %v909
    %vm911 = vweird.f32 %v905
    %vm912 = vweird.f32 %v906
    %vm913 = vmor %vm911, %vm912
    %v914 = vsel %vm913, %v906, %v910
    %v915 = vand.u32 2147483647, %v905
    %vm916 = vcmp.eq.f32.partialorder %v915, 8.507059e+37
    %v917 = vand.u32 %v905, 2147483648
    %v918 = vor.u32 1.1754944e-38, %v917
    %v919 = vsel %vm916, %v918, %v914
    %v920 = vmul.f32 1.0, %v919
    %921 = vmatpush.msra.mxu0 0.0
    %922 = vmatpush.msra.mxu0 0.0
    %923 = vmatpush.msra.mxu0 0.0
    %924 = vmatpush.msra.mxu0 0.0
    %925 = vmatpush.msra.mxu0 0.0
    %926 = vmatpush.msra.mxu0 0.0
    %927 = vmatpush.msra.mxu0 0.0
    %928 = vmatpush.msra.mxu0 0.0
    %929 = vmatpush.msra.mxu0 0.0
    %930 = vmatpush.msra.mxu0 0.0
    %931 = vmatpush.msra.mxu0 0.0
    %932 = vmatpush.msra.mxu0 0.0
    %933 = vmatpush.msra.mxu0 %v52
    %934 = vmatpush.msra.mxu0 %v51
    %935 = vmatpush.msra.mxu0 %v50
    %936 = vmatpush.msra.mxu0 %v49
    %937 = vmatmul.f32.gmra.mxu0 %v772
    %v938 = vpop.f32.mrf.mxu0
    %v939 = vadd.f32 0.0, %v938
    %940 = vdwg.mxu0
    %942 = vrot.lane.b32.xlu0 %v939, 64
    %v943 = vpop.permute.xlu0 %942
    %v945 = vadd.f32 %v836, %v943
    %v946 = vtanh.pop %v945
    %947 = vmatpush.msra.mxu0 0.0
    %948 = vmatpush.msra.mxu0 0.0
    %949 = vmatpush.msra.mxu0 0.0
    %950 = vmatpush.msra.mxu0 0.0
    %951 = vmatpush.msra.mxu0 0.0
    %952 = vmatpush.msra.mxu0 0.0
    %953 = vmatpush.msra.mxu0 0.0
    %954 = vmatpush.msra.mxu0 0.0
    %955 = vmatpush.msra.mxu0 0.0
    %956 = vmatpush.msra.mxu0 0.0
    %957 = vmatpush.msra.mxu0 0.0
    %958 = vmatpush.msra.mxu0 0.0
    %959 = vmatpush.msra.mxu0 %v57
    %960 = vmatpush.msra.mxu0 %v56
    %961 = vmatpush.msra.mxu0 %v55
    %962 = vmatpush.msra.mxu0 %v54
    %963 = vmatmul.f32.gmra.mxu0 %v772
    %v964 = vpop.f32.mrf.mxu0
    %v965 = vadd.f32 0.0, %v964
    %966 = vdwg.mxu0
    %968 = vrot.lane.b32.xlu0 %v965, 96
    %v969 = vpop.permute.xlu0 %968
    %v971 = vadd.f32 %v836, %v969
    %v972 = vxor.u32 %v971, 2147483648
    %v973 = vmul.f32 %v972, 1.442695
    %v974 = vpow.pop %v973
    %v975 = vadd.f32 %v974, 1.0
    %v976 = vrcp.pop %v975
    %v977 = vmul.f32 %v975, %v976
    %v978 = vsub.f32 1.0, %v977
    %v979 = vmul.f32 %v976, %v978
    %v980 = vadd.f32 %v976, %v979
    %vm981 = vweird.f32 %v975
    %vm982 = vweird.f32 %v976
    %vm983 = vmor %vm981, %vm982
    %v984 = vsel %vm983, %v976, %v980
    %v985 = vand.u32 2147483647, %v975
    %vm986 = vcmp.eq.f32.partialorder %v985, 8.507059e+37
    %v987 = vand.u32 %v975, 2147483648
    %v988 = vor.u32 1.1754944e-38, %v987
    %v989 = vsel %vm986, %v988, %v984
    %v990 = vmul.f32 1.0, %v989
    %v991 = vmul.f32 %v920, %v762
    %993 = vrot.lane.b32.xlu0 %v946, 64
    %v994 = vpop.permute.xlu0 %993
    %v996 = vmul.f32 %v876, %v994
    %998 = vrot.lane.b32.xlu0 %v996, 32
    %v999 = vpop.permute.xlu0 %998
    %v1001 = vadd.f32 %v991, %v999
    %v1002 = vtanh.pop %v1001
    %1004 = vrot.lane.b32.xlu0 %v1002, 64
    %v1005 = vpop.permute.xlu0 %1004
    %v1007 = vmul.f32 %v990, %v1005
    %1009 = vrot.lane.b32.xlu0 %v1007, 32
    %v1010 = vpop.permute.xlu0 %1009
    %v1011 = vsel %vm108, %v1010, 0
    %1013 = vmatpush.msra.mxu0 0.0
    %1014 = vmatpush.msra.mxu0 0.0
    %1015 = vmatpush.msra.mxu0 0.0
    %1016 = vmatpush.msra.mxu0 0.0
    %1017 = vmatpush.msra.mxu0 0.0
    %1018 = vmatpush.msra.mxu0 0.0
    %1019 = vmatpush.msra.mxu0 0.0
    %1020 = vmatpush.msra.mxu0 0.0
    %1021 = vmatpush.msra.mxu0 0.0
    %1022 = vmatpush.msra.mxu0 0.0
    %1023 = vmatpush.msra.mxu0 0.0
    %1024 = vmatpush.msra.mxu0 0.0
    %1025 = vmatpush.msra.mxu0 %v61
    %1026 = vmatpush.msra.mxu0 %v60
    %1027 = vmatpush.msra.mxu0 %v59
    %1028 = vmatpush.msra.mxu0 %v58
    %1029 = vmatmul.f32.gmra.mxu0 %v1011
    %v1030 = vpop.f32.mrf.mxu0
    %v1031 = vadd.f32 0.0, %v1030
    %1032 = vdwg.mxu0
    %v1033 = vtanh.pop %v1031
    %v1034 = vmul.f32 %v1033, %v314
    %v1035 = vsel %vm317, %v1034, 0.0
    %1036 = vadd.xlane.f32.xlu0 %v1035
    %v1037 = vpop.xlane.xlu0 %1036
    %s1038 = sld [smem:[#allocation2 + $0x200]]
    %s1039 = scalar_lea.vmem %s1, %s1038
    %v1040 = vld [vmem:[%s1039] sm:$0x1]
    %s1041 = sld [smem:[#allocation2 + $0x201]]
    %s1042 = scalar_lea.vmem %s1, %s1041
    %v1043 = vld [vmem:[%s1042] sm:$0x1]
    %s1044 = sld [smem:[#allocation2 + $0x202]]
    %s1045 = scalar_lea.vmem %s1, %s1044
    %v1046 = vld [vmem:[%s1045] sm:$0x1]
    %s1047 = sld [smem:[#allocation2 + $0x203]]
    %s1048 = scalar_lea.vmem %s1, %s1047
    %v1049 = vld [vmem:[%s1048] sm:$0x1]
    %s1050 = sld [smem:[#allocation2 + $0x204]]
    %s1051 = scalar_lea.vmem %s1, %s1050
    %v1052 = vld [vmem:[%s1051] sm:$0x1]
    %s1053 = sld [smem:[#allocation2 + $0x205]]
    %s1054 = scalar_lea.vmem %s1, %s1053
    %v1055 = vld [vmem:[%s1054] sm:$0x1]
    %v1057 = vperm.slane %v1043, 0
    %v1060 = vperm.slane %v1046, 0
    %v1063 = vperm.slane %v1049, 0
    %v1066 = vperm.slane %v1052, 0
    %v1069 = vperm.slane %v1055, 0
    %v1071 = vsel %vm98, %v1040, %v1057
    %v1072 = vsel %vm100, %v1071, %v1060
    %v1073 = vsel %vm102, %v1072, %v1063
    %v1074 = vsel %vm104, %v1073, %v1066
    %v1075 = vsel %vm106, %v1074, %v1069
    %1076 = vmatpush.msra.mxu0 0.0
    %1077 = vmatpush.msra.mxu0 0.0
    %1078 = vmatpush.msra.mxu0 0.0
    %1079 = vmatpush.msra.mxu0 0.0
    %1080 = vmatpush.msra.mxu0 0.0
    %1081 = vmatpush.msra.mxu0 0.0
    %1082 = vmatpush.msra.mxu0 0.0
    %1083 = vmatpush.msra.mxu0 0.0
    %1084 = vmatpush.msra.mxu0 0.0
    %1085 = vmatpush.msra.mxu0 0.0
    %1086 = vmatpush.msra.mxu0 0.0
    %1087 = vmatpush.msra.mxu0 0.0
    %1088 = vmatpush.msra.mxu0 %v42
    %1089 = vmatpush.msra.mxu0 %v41
    %1090 = vmatpush.msra.mxu0 %v40
    %1091 = vmatpush.msra.mxu0 %v39
    %1092 = vmatmul.f32.gmra.mxu0 %v1011
    %v1093 = vpop.f32.mrf.mxu0
    %v1094 = vadd.f32 0.0, %v1093
    %1095 = vdwg.mxu0
    %v1096 = vadd.f32 %v1075, %v1094
    %v1097 = vxor.u32 %v1096, 2147483648
    %v1098 = vmul.f32 %v1097, 1.442695
    %v1099 = vpow.pop %v1098
    %v1100 = vadd.f32 %v1099, 1.0
    %v1101 = vrcp.pop %v1100
    %v1102 = vmul.f32 %v1100, %v1101
    %v1103 = vsub.f32 1.0, %v1102
    %v1104 = vmul.f32 %v1101, %v1103
    %v1105 = vadd.f32 %v1101, %v1104
    %vm1106 = vweird.f32 %v1100
    %vm1107 = vweird.f32 %v1101
    %vm1108 = vmor %vm1106, %vm1107
    %v1109 = vsel %vm1108, %v1101, %v1105
    %v1110 = vand.u32 2147483647, %v1100
    %vm1111 = vcmp.eq.f32.partialorder %v1110, 8.507059e+37
    %v1112 = vand.u32 %v1100, 2147483648
    %v1113 = vor.u32 1.1754944e-38, %v1112
    %v1114 = vsel %vm1111, %v1113, %v1109
    %v1115 = vmul.f32 1.0, %v1114
    %1116 = vmatpush.msra.mxu0 0.0
    %1117 = vmatpush.msra.mxu0 0.0
    %1118 = vmatpush.msra.mxu0 0.0
    %1119 = vmatpush.msra.mxu0 0.0
    %1120 = vmatpush.msra.mxu0 0.0
    %1121 = vmatpush.msra.mxu0 0.0
    %1122 = vmatpush.msra.mxu0 0.0
    %1123 = vmatpush.msra.mxu0 0.0
    %1124 = vmatpush.msra.mxu0 0.0
    %1125 = vmatpush.msra.mxu0 0.0
    %1126 = vmatpush.msra.mxu0 0.0
    %1127 = vmatpush.msra.mxu0 0.0
    %1128 = vmatpush.msra.mxu0 %v47
    %1129 = vmatpush.msra.mxu0 %v46
    %1130 = vmatpush.msra.mxu0 %v45
    %1131 = vmatpush.msra.mxu0 %v44
    %1132 = vmatmul.f32.gmra.mxu0 %v1011
    %v1133 = vpop.f32.mrf.mxu0
    %v1134 = vadd.f32 0.0, %v1133
    %1135 = vdwg.mxu0
    %1137 = vrot.lane.b32.xlu0 %v1134, 32
    %v1138 = vpop.permute.xlu0 %1137
    %v1140 = vadd.f32 %v1075, %v1138
    %v1141 = vxor.u32 %v1140, 2147483648
    %v1142 = vmul.f32 %v1141, 1.442695
    %v1143 = vpow.pop %v1142
    %v1144 = vadd.f32 %v1143, 1.0
    %v1145 = vrcp.pop %v1144
    %v1146 = vmul.f32 %v1144, %v1145
    %v1147 = vsub.f32 1.0, %v1146
    %v1148 = vmul.f32 %v1145, %v1147
    %v1149 = vadd.f32 %v1145, %v1148
    %vm1150 = vweird.f32 %v1144
    %vm1151 = vweird.f32 %v1145
    %vm1152 = vmor %vm1150, %vm1151
    %v1153 = vsel %vm1152, %v1145, %v1149
    %v1154 = vand.u32 2147483647, %v1144
    %vm1155 = vcmp.eq.f32.partialorder %v1154, 8.507059e+37
    %v1156 = vand.u32 %v1144, 2147483648
    %v1157 = vor.u32 1.1754944e-38, %v1156
    %v1158 = vsel %vm1155, %v1157, %v1153
    %v1159 = vmul.f32 1.0, %v1158
    %1160 = vmatpush.msra.mxu0 0.0
    %1161 = vmatpush.msra.mxu0 0.0
    %1162 = vmatpush.msra.mxu0 0.0
    %1163 = vmatpush.msra.mxu0 0.0
    %1164 = vmatpush.msra.mxu0 0.0
    %1165 = vmatpush.msra.mxu0 0.0
    %1166 = vmatpush.msra.mxu0 0.0
    %1167 = vmatpush.msra.mxu0 0.0
    %1168 = vmatpush.msra.mxu0 0.0
    %1169 = vmatpush.msra.mxu0 0.0
    %1170 = vmatpush.msra.mxu0 0.0
    %1171 = vmatpush.msra.mxu0 0.0
    %1172 = vmatpush.msra.mxu0 %v52
    %1173 = vmatpush.msra.mxu0 %v51
    %1174 = vmatpush.msra.mxu0 %v50
    %1175 = vmatpush.msra.mxu0 %v49
    %1176 = vmatmul.f32.gmra.mxu0 %v1011
    %v1177 = vpop.f32.mrf.mxu0
    %v1178 = vadd.f32 0.0, %v1177
    %1179 = vdwg.mxu0
    %1181 = vrot.lane.b32.xlu0 %v1178, 64
    %v1182 = vpop.permute.xlu0 %1181
    %v1184 = vadd.f32 %v1075, %v1182
    %v1185 = vtanh.pop %v1184
    %1186 = vmatpush.msra.mxu0 0.0
    %1187 = vmatpush.msra.mxu0 0.0
    %1188 = vmatpush.msra.mxu0 0.0
    %1189 = vmatpush.msra.mxu0 0.0
    %1190 = vmatpush.msra.mxu0 0.0
    %1191 = vmatpush.msra.mxu0 0.0
    %1192 = vmatpush.msra.mxu0 0.0
    %1193 = vmatpush.msra.mxu0 0.0
    %1194 = vmatpush.msra.mxu0 0.0
    %1195 = vmatpush.msra.mxu0 0.0
    %1196 = vmatpush.msra.mxu0 0.0
    %1197 = vmatpush.msra.mxu0 0.0
    %1198 = vmatpush.msra.mxu0 %v57
    %1199 = vmatpush.msra.mxu0 %v56
    %1200 = vmatpush.msra.mxu0 %v55
    %1201 = vmatpush.msra.mxu0 %v54
    %1202 = vmatmul.f32.gmra.mxu0 %v1011
    %v1203 = vpop.f32.mrf.mxu0
    %v1204 = vadd.f32 0.0, %v1203
    %1205 = vdwg.mxu0
    %1207 = vrot.lane.b32.xlu0 %v1204, 96
    %v1208 = vpop.permute.xlu0 %1207
    %v1210 = vadd.f32 %v1075, %v1208
    %v1211 = vxor.u32 %v1210, 2147483648
    %v1212 = vmul.f32 %v1211, 1.442695
    %v1213 = vpow.pop %v1212
    %v1214 = vadd.f32 %v1213, 1.0
    %v1215 = vrcp.pop %v1214
    %v1216 = vmul.f32 %v1214, %v1215
    %v1217 = vsub.f32 1.0, %v1216
    %v1218 = vmul.f32 %v1215, %v1217
    %v1219 = vadd.f32 %v1215, %v1218
    %vm1220 = vweird.f32 %v1214
    %vm1221 = vweird.f32 %v1215
    %vm1222 = vmor %vm1220, %vm1221
    %v1223 = vsel %vm1222, %v1215, %v1219
    %v1224 = vand.u32 2147483647, %v1214
    %vm1225 = vcmp.eq.f32.partialorder %v1224, 8.507059e+37
    %v1226 = vand.u32 %v1214, 2147483648
    %v1227 = vor.u32 1.1754944e-38, %v1226
    %v1228 = vsel %vm1225, %v1227, %v1223
    %v1229 = vmul.f32 1.0, %v1228
    %v1230 = vmul.f32 %v1159, %v1001
    %1232 = vrot.lane.b32.xlu0 %v1185, 64
    %v1233 = vpop.permute.xlu0 %1232
    %v1235 = vmul.f32 %v1115, %v1233
    %1237 = vrot.lane.b32.xlu0 %v1235, 32
    %v1238 = vpop.permute.xlu0 %1237
    %v1240 = vadd.f32 %v1230, %v1238
    %v1241 = vtanh.pop %v1240
    %1243 = vrot.lane.b32.xlu0 %v1241, 64
    %v1244 = vpop.permute.xlu0 %1243
    %v1246 = vmul.f32 %v1229, %v1244
    %1248 = vrot.lane.b32.xlu0 %v1246, 32
    %v1249 = vpop.permute.xlu0 %1248
    %v1250 = vsel %vm108, %v1249, 0
    %1252 = vmatpush.msra.mxu0 0.0
    %1253 = vmatpush.msra.mxu0 0.0
    %1254 = vmatpush.msra.mxu0 0.0
    %1255 = vmatpush.msra.mxu0 0.0
    %1256 = vmatpush.msra.mxu0 0.0
    %1257 = vmatpush.msra.mxu0 0.0
    %1258 = vmatpush.msra.mxu0 0.0
    %1259 = vmatpush.msra.mxu0 0.0
    %1260 = vmatpush.msra.mxu0 0.0
    %1261 = vmatpush.msra.mxu0 0.0
    %1262 = vmatpush.msra.mxu0 0.0
    %1263 = vmatpush.msra.mxu0 0.0
    %1264 = vmatpush.msra.mxu0 %v61
    %1265 = vmatpush.msra.mxu0 %v60
    %1266 = vmatpush.msra.mxu0 %v59
    %1267 = vmatpush.msra.mxu0 %v58
    %1268 = vmatmul.f32.gmra.mxu0 %v1250
    %v1269 = vpop.f32.mrf.mxu0
    %v1270 = vadd.f32 0.0, %v1269
    %1271 = vdwg.mxu0
    %v1272 = vtanh.pop %v1270
    %v1273 = vmul.f32 %v1272, %v314
    %v1274 = vsel %vm317, %v1273, 0.0
    %1275 = vadd.xlane.f32.xlu0 %v1274
    %v1276 = vpop.xlane.xlu0 %1275
    %s1277 = sld [smem:[#allocation2 + $0x280]]
    %s1278 = scalar_lea.vmem %s1, %s1277
    %v1279 = vld [vmem:[%s1278] sm:$0x1]
    %s1280 = sld [smem:[#allocation2 + $0x281]]
    %s1281 = scalar_lea.vmem %s1, %s1280
    %v1282 = vld [vmem:[%s1281] sm:$0x1]
    %s1283 = sld [smem:[#allocation2 + $0x282]]
    %s1284 = scalar_lea.vmem %s1, %s1283
    %v1285 = vld [vmem:[%s1284] sm:$0x1]
    %s1286 = sld [smem:[#allocation2 + $0x283]]
    %s1287 = scalar_lea.vmem %s1, %s1286
    %v1288 = vld [vmem:[%s1287] sm:$0x1]
    %s1289 = sld [smem:[#allocation2 + $0x284]]
    %s1290 = scalar_lea.vmem %s1, %s1289
    %v1291 = vld [vmem:[%s1290] sm:$0x1]
    %s1292 = sld [smem:[#allocation2 + $0x285]]
    %s1293 = scalar_lea.vmem %s1, %s1292
    %v1294 = vld [vmem:[%s1293] sm:$0x1]
    %v1296 = vperm.slane %v1282, 0
    %v1299 = vperm.slane %v1285, 0
    %v1302 = vperm.slane %v1288, 0
    %v1305 = vperm.slane %v1291, 0
    %v1308 = vperm.slane %v1294, 0
    %v1310 = vsel %vm98, %v1279, %v1296
    %v1311 = vsel %vm100, %v1310, %v1299
    %v1312 = vsel %vm102, %v1311, %v1302
    %v1313 = vsel %vm104, %v1312, %v1305
    %v1314 = vsel %vm106, %v1313, %v1308
    %1315 = vmatpush.msra.mxu0 0.0
    %1316 = vmatpush.msra.mxu0 0.0
    %1317 = vmatpush.msra.mxu0 0.0
    %1318 = vmatpush.msra.mxu0 0.0
    %1319 = vmatpush.msra.mxu0 0.0
    %1320 = vmatpush.msra.mxu0 0.0
    %1321 = vmatpush.msra.mxu0 0.0
    %1322 = vmatpush.msra.mxu0 0.0
    %1323 = vmatpush.msra.mxu0 0.0
    %1324 = vmatpush.msra.mxu0 0.0
    %1325 = vmatpush.msra.mxu0 0.0
    %1326 = vmatpush.msra.mxu0 0.0
    %1327 = vmatpush.msra.mxu0 %v42
    %1328 = vmatpush.msra.mxu0 %v41
    %1329 = vmatpush.msra.mxu0 %v40
    %1330 = vmatpush.msra.mxu0 %v39
    %1331 = vmatmul.f32.gmra.mxu0 %v1250
    %v1332 = vpop.f32.mrf.mxu0
    %v1333 = vadd.f32 0.0, %v1332
    %1334 = vdwg.mxu0
    %v1335 = vadd.f32 %v1314, %v1333
    %v1336 = vxor.u32 %v1335, 2147483648
    %v1337 = vmul.f32 %v1336, 1.442695
    %v1338 = vpow.pop %v1337
    %v1339 = vadd.f32 %v1338, 1.0
    %v1340 = vrcp.pop %v1339
    %v1341 = vmul.f32 %v1339, %v1340
    %v1342 = vsub.f32 1.0, %v1341
    %v1343 = vmul.f32 %v1340, %v1342
    %v1344 = vadd.f32 %v1340, %v1343
    %vm1345 = vweird.f32 %v1339
    %vm1346 = vweird.f32 %v1340
    %vm1347 = vmor %vm1345, %vm1346
    %v1348 = vsel %vm1347, %v1340, %v1344
    %v1349 = vand.u32 2147483647, %v1339
    %vm1350 = vcmp.eq.f32.partialorder %v1349, 8.507059e+37
    %v1351 = vand.u32 %v1339, 2147483648
    %v1352 = vor.u32 1.1754944e-38, %v1351
    %v1353 = vsel %vm1350, %v1352, %v1348
    %v1354 = vmul.f32 1.0, %v1353
    %1355 = vmatpush.msra.mxu0 0.0
    %1356 = vmatpush.msra.mxu0 0.0
    %1357 = vmatpush.msra.mxu0 0.0
    %1358 = vmatpush.msra.mxu0 0.0
    %1359 = vmatpush.msra.mxu0 0.0
    %1360 = vmatpush.msra.mxu0 0.0
    %1361 = vmatpush.msra.mxu0 0.0
    %1362 = vmatpush.msra.mxu0 0.0
    %1363 = vmatpush.msra.mxu0 0.0
    %1364 = vmatpush.msra.mxu0 0.0
    %1365 = vmatpush.msra.mxu0 0.0
    %1366 = vmatpush.msra.mxu0 0.0
    %1367 = vmatpush.msra.mxu0 %v47
    %1368 = vmatpush.msra.mxu0 %v46
    %1369 = vmatpush.msra.mxu0 %v45
    %1370 = vmatpush.msra.mxu0 %v44
    %1371 = vmatmul.f32.gmra.mxu0 %v1250
    %v1372 = vpop.f32.mrf.mxu0
    %v1373 = vadd.f32 0.0, %v1372
    %1374 = vdwg.mxu0
    %1376 = vrot.lane.b32.xlu0 %v1373, 32
    %v1377 = vpop.permute.xlu0 %1376
    %v1379 = vadd.f32 %v1314, %v1377
    %v1380 = vxor.u32 %v1379, 2147483648
    %v1381 = vmul.f32 %v1380, 1.442695
    %v1382 = vpow.pop %v1381
    %v1383 = vadd.f32 %v1382, 1.0
    %v1384 = vrcp.pop %v1383
    %v1385 = vmul.f32 %v1383, %v1384
    %v1386 = vsub.f32 1.0, %v1385
    %v1387 = vmul.f32 %v1384, %v1386
    %v1388 = vadd.f32 %v1384, %v1387
    %vm1389 = vweird.f32 %v1383
    %vm1390 = vweird.f32 %v1384
    %vm1391 = vmor %vm1389, %vm1390
    %v1392 = vsel %vm1391, %v1384, %v1388
    %v1393 = vand.u32 2147483647, %v1383
    %vm1394 = vcmp.eq.f32.partialorder %v1393, 8.507059e+37
    %v1395 = vand.u32 %v1383, 2147483648
    %v1396 = vor.u32 1.1754944e-38, %v1395
    %v1397 = vsel %vm1394, %v1396, %v1392
    %v1398 = vmul.f32 1.0, %v1397
    %1399 = vmatpush.msra.mxu0 0.0
    %1400 = vmatpush.msra.mxu0 0.0
    %1401 = vmatpush.msra.mxu0 0.0
    %1402 = vmatpush.msra.mxu0 0.0
    %1403 = vmatpush.msra.mxu0 0.0
    %1404 = vmatpush.msra.mxu0 0.0
    %1405 = vmatpush.msra.mxu0 0.0
    %1406 = vmatpush.msra.mxu0 0.0
    %1407 = vmatpush.msra.mxu0 0.0
    %1408 = vmatpush.msra.mxu0 0.0
    %1409 = vmatpush.msra.mxu0 0.0
    %1410 = vmatpush.msra.mxu0 0.0
    %1411 = vmatpush.msra.mxu0 %v52
    %1412 = vmatpush.msra.mxu0 %v51
    %1413 = vmatpush.msra.mxu0 %v50
    %1414 = vmatpush.msra.mxu0 %v49
    %1415 = vmatmul.f32.gmra.mxu0 %v1250
    %v1416 = vpop.f32.mrf.mxu0
    %v1417 = vadd.f32 0.0, %v1416
    %1418 = vdwg.mxu0
    %1420 = vrot.lane.b32.xlu0 %v1417, 64
    %v1421 = vpop.permute.xlu0 %1420
    %v1423 = vadd.f32 %v1314, %v1421
    %v1424 = vtanh.pop %v1423
    %1425 = vmatpush.msra.mxu0 0.0
    %1426 = vmatpush.msra.mxu0 0.0
    %1427 = vmatpush.msra.mxu0 0.0
    %1428 = vmatpush.msra.mxu0 0.0
    %1429 = vmatpush.msra.mxu0 0.0
    %1430 = vmatpush.msra.mxu0 0.0
    %1431 = vmatpush.msra.mxu0 0.0
    %1432 = vmatpush.msra.mxu0 0.0
    %1433 = vmatpush.msra.mxu0 0.0
    %1434 = vmatpush.msra.mxu0 0.0
    %1435 = vmatpush.msra.mxu0 0.0
    %1436 = vmatpush.msra.mxu0 0.0
    %1437 = vmatpush.msra.mxu0 %v57
    %1438 = vmatpush.msra.mxu0 %v56
    %1439 = vmatpush.msra.mxu0 %v55
    %1440 = vmatpush.msra.mxu0 %v54
    %1441 = vmatmul.f32.gmra.mxu0 %v1250
    %v1442 = vpop.f32.mrf.mxu0
    %v1443 = vadd.f32 0.0, %v1442
    %1444 = vdwg.mxu0
    %1446 = vrot.lane.b32.xlu0 %v1443, 96
    %v1447 = vpop.permute.xlu0 %1446
    %v1449 = vadd.f32 %v1314, %v1447
    %v1450 = vxor.u32 %v1449, 2147483648
    %v1451 = vmul.f32 %v1450, 1.442695
    %v1452 = vpow.pop %v1451
    %v1453 = vadd.f32 %v1452, 1.0
    %v1454 = vrcp.pop %v1453
    %v1455 = vmul.f32 %v1453, %v1454
    %v1456 = vsub.f32 1.0, %v1455
    %v1457 = vmul.f32 %v1454, %v1456
    %v1458 = vadd.f32 %v1454, %v1457
    %vm1459 = vweird.f32 %v1453
    %vm1460 = vweird.f32 %v1454
    %vm1461 = vmor %vm1459, %vm1460
    %v1462 = vsel %vm1461, %v1454, %v1458
    %v1463 = vand.u32 2147483647, %v1453
    %vm1464 = vcmp.eq.f32.partialorder %v1463, 8.507059e+37
    %v1465 = vand.u32 %v1453, 2147483648
    %v1466 = vor.u32 1.1754944e-38, %v1465
    %v1467 = vsel %vm1464, %v1466, %v1462
    %v1468 = vmul.f32 1.0, %v1467
    %v1469 = vmul.f32 %v1398, %v1240
    %1471 = vrot.lane.b32.xlu0 %v1424, 64
    %v1472 = vpop.permute.xlu0 %1471
    %v1474 = vmul.f32 %v1354, %v1472
    %1476 = vrot.lane.b32.xlu0 %v1474, 32
    %v1477 = vpop.permute.xlu0 %1476
    %v1479 = vadd.f32 %v1469, %v1477
    %v1480 = vtanh.pop %v1479
    %1482 = vrot.lane.b32.xlu0 %v1480, 64
    %v1483 = vpop.permute.xlu0 %1482
    %v1485 = vmul.f32 %v1468, %v1483
    %1487 = vrot.lane.b32.xlu0 %v1485, 32
    %v1488 = vpop.permute.xlu0 %1487
    %v1489 = vsel %vm108, %v1488, 0
    %1491 = vmatpush.msra.mxu0 0.0
    %1492 = vmatpush.msra.mxu0 0.0
    %1493 = vmatpush.msra.mxu0 0.0
    %1494 = vmatpush.msra.mxu0 0.0
    %1495 = vmatpush.msra.mxu0 0.0
    %1496 = vmatpush.msra.mxu0 0.0
    %1497 = vmatpush.msra.mxu0 0.0
    %1498 = vmatpush.msra.mxu0 0.0
    %1499 = vmatpush.msra.mxu0 0.0
    %1500 = vmatpush.msra.mxu0 0.0
    %1501 = vmatpush.msra.mxu0 0.0
    %1502 = vmatpush.msra.mxu0 0.0
    %1503 = vmatpush.msra.mxu0 %v61
    %1504 = vmatpush.msra.mxu0 %v60
    %1505 = vmatpush.msra.mxu0 %v59
    %1506 = vmatpush.msra.mxu0 %v58
    %1507 = vmatmul.f32.gmra.mxu0 %v1489
    %v1508 = vpop.f32.mrf.mxu0
    %v1509 = vadd.f32 0.0, %v1508
    %1510 = vdwg.mxu0
    %v1511 = vtanh.pop %v1509
    %v1512 = vmul.f32 %v1511, %v314
    %v1513 = vsel %vm317, %v1512, 0.0
    %1514 = vadd.xlane.f32.xlu0 %v1513
    %v1515 = vpop.xlane.xlu0 %1514
    %s1516 = sld [smem:[#allocation2 + $0x300]]
    %s1517 = scalar_lea.vmem %s1, %s1516
    %v1518 = vld [vmem:[%s1517] sm:$0x1]
    %s1519 = sld [smem:[#allocation2 + $0x301]]
    %s1520 = scalar_lea.vmem %s1, %s1519
    %v1521 = vld [vmem:[%s1520] sm:$0x1]
    %s1522 = sld [smem:[#allocation2 + $0x302]]
    %s1523 = scalar_lea.vmem %s1, %s1522
    %v1524 = vld [vmem:[%s1523] sm:$0x1]
    %s1525 = sld [smem:[#allocation2 + $0x303]]
    %s1526 = scalar_lea.vmem %s1, %s1525
    %v1527 = vld [vmem:[%s1526] sm:$0x1]
    %s1528 = sld [smem:[#allocation2 + $0x304]]
    %s1529 = scalar_lea.vmem %s1, %s1528
    %v1530 = vld [vmem:[%s1529] sm:$0x1]
    %s1531 = sld [smem:[#allocation2 + $0x305]]
    %s1532 = scalar_lea.vmem %s1, %s1531
    %v1533 = vld [vmem:[%s1532] sm:$0x1]
    %v1535 = vperm.slane %v1521, 0
    %v1538 = vperm.slane %v1524, 0
    %v1541 = vperm.slane %v1527, 0
    %v1544 = vperm.slane %v1530, 0
    %v1547 = vperm.slane %v1533, 0
    %v1549 = vsel %vm98, %v1518, %v1535
    %v1550 = vsel %vm100, %v1549, %v1538
    %v1551 = vsel %vm102, %v1550, %v1541
    %v1552 = vsel %vm104, %v1551, %v1544
    %v1553 = vsel %vm106, %v1552, %v1547
    %1554 = vmatpush.msra.mxu0 0.0
    %1555 = vmatpush.msra.mxu0 0.0
    %1556 = vmatpush.msra.mxu0 0.0
    %1557 = vmatpush.msra.mxu0 0.0
    %1558 = vmatpush.msra.mxu0 0.0
    %1559 = vmatpush.msra.mxu0 0.0
    %1560 = vmatpush.msra.mxu0 0.0
    %1561 = vmatpush.msra.mxu0 0.0
    %1562 = vmatpush.msra.mxu0 0.0
    %1563 = vmatpush.msra.mxu0 0.0
    %1564 = vmatpush.msra.mxu0 0.0
    %1565 = vmatpush.msra.mxu0 0.0
    %1566 = vmatpush.msra.mxu0 %v42
    %1567 = vmatpush.msra.mxu0 %v41
    %1568 = vmatpush.msra.mxu0 %v40
    %1569 = vmatpush.msra.mxu0 %v39
    %1570 = vmatmul.f32.gmra.mxu0 %v1489
    %v1571 = vpop.f32.mrf.mxu0
    %v1572 = vadd.f32 0.0, %v1571
    %1573 = vdwg.mxu0
    %v1574 = vadd.f32 %v1553, %v1572
    %v1575 = vxor.u32 %v1574, 2147483648
    %v1576 = vmul.f32 %v1575, 1.442695
    %v1577 = vpow.pop %v1576
    %v1578 = vadd.f32 %v1577, 1.0
    %v1579 = vrcp.pop %v1578
    %v1580 = vmul.f32 %v1578, %v1579
    %v1581 = vsub.f32 1.0, %v1580
    %v1582 = vmul.f32 %v1579, %v1581
    %v1583 = vadd.f32 %v1579, %v1582
    %vm1584 = vweird.f32 %v1578
    %vm1585 = vweird.f32 %v1579
    %vm1586 = vmor %vm1584, %vm1585
    %v1587 = vsel %vm1586, %v1579, %v1583
    %v1588 = vand.u32 2147483647, %v1578
    %vm1589 = vcmp.eq.f32.partialorder %v1588, 8.507059e+37
    %v1590 = vand.u32 %v1578, 2147483648
    %v1591 = vor.u32 1.1754944e-38, %v1590
    %v1592 = vsel %vm1589, %v1591, %v1587
    %v1593 = vmul.f32 1.0, %v1592
    %1594 = vmatpush.msra.mxu0 0.0
    %1595 = vmatpush.msra.mxu0 0.0
    %1596 = vmatpush.msra.mxu0 0.0
    %1597 = vmatpush.msra.mxu0 0.0
    %1598 = vmatpush.msra.mxu0 0.0
    %1599 = vmatpush.msra.mxu0 0.0
    %1600 = vmatpush.msra.mxu0 0.0
    %1601 = vmatpush.msra.mxu0 0.0
    %1602 = vmatpush.msra.mxu0 0.0
    %1603 = vmatpush.msra.mxu0 0.0
    %1604 = vmatpush.msra.mxu0 0.0
    %1605 = vmatpush.msra.mxu0 0.0
    %1606 = vmatpush.msra.mxu0 %v47
    %1607 = vmatpush.msra.mxu0 %v46
    %1608 = vmatpush.msra.mxu0 %v45
    %1609 = vmatpush.msra.mxu0 %v44
    %1610 = vmatmul.f32.gmra.mxu0 %v1489
    %v1611 = vpop.f32.mrf.mxu0
    %v1612 = vadd.f32 0.0, %v1611
    %1613 = vdwg.mxu0
    %1615 = vrot.lane.b32.xlu0 %v1612, 32
    %v1616 = vpop.permute.xlu0 %1615
    %v1618 = vadd.f32 %v1553, %v1616
    %v1619 = vxor.u32 %v1618, 2147483648
    %v1620 = vmul.f32 %v1619, 1.442695
    %v1621 = vpow.pop %v1620
    %v1622 = vadd.f32 %v1621, 1.0
    %v1623 = vrcp.pop %v1622
    %v1624 = vmul.f32 %v1622, %v1623
    %v1625 = vsub.f32 1.0, %v1624
    %v1626 = vmul.f32 %v1623, %v1625
    %v1627 = vadd.f32 %v1623, %v1626
    %vm1628 = vweird.f32 %v1622
    %vm1629 = vweird.f32 %v1623
    %vm1630 = vmor %vm1628, %vm1629
    %v1631 = vsel %vm1630, %v1623, %v1627
    %v1632 = vand.u32 2147483647, %v1622
    %vm1633 = vcmp.eq.f32.partialorder %v1632, 8.507059e+37
    %v1634 = vand.u32 %v1622, 2147483648
    %v1635 = vor.u32 1.1754944e-38, %v1634
    %v1636 = vsel %vm1633, %v1635, %v1631
    %v1637 = vmul.f32 1.0, %v1636
    %1638 = vmatpush.msra.mxu0 0.0
    %1639 = vmatpush.msra.mxu0 0.0
    %1640 = vmatpush.msra.mxu0 0.0
    %1641 = vmatpush.msra.mxu0 0.0
    %1642 = vmatpush.msra.mxu0 0.0
    %1643 = vmatpush.msra.mxu0 0.0
    %1644 = vmatpush.msra.mxu0 0.0
    %1645 = vmatpush.msra.mxu0 0.0
    %1646 = vmatpush.msra.mxu0 0.0
    %1647 = vmatpush.msra.mxu0 0.0
    %1648 = vmatpush.msra.mxu0 0.0
    %1649 = vmatpush.msra.mxu0 0.0
    %1650 = vmatpush.msra.mxu0 %v52
    %1651 = vmatpush.msra.mxu0 %v51
    %1652 = vmatpush.msra.mxu0 %v50
    %1653 = vmatpush.msra.mxu0 %v49
    %1654 = vmatmul.f32.gmra.mxu0 %v1489
    %v1655 = vpop.f32.mrf.mxu0
    %v1656 = vadd.f32 0.0, %v1655
    %1657 = vdwg.mxu0
    %1659 = vrot.lane.b32.xlu0 %v1656, 64
    %v1660 = vpop.permute.xlu0 %1659
    %v1662 = vadd.f32 %v1553, %v1660
    %v1663 = vtanh.pop %v1662
    %1664 = vmatpush.msra.mxu0 0.0
    %1665 = vmatpush.msra.mxu0 0.0
    %1666 = vmatpush.msra.mxu0 0.0
    %1667 = vmatpush.msra.mxu0 0.0
    %1668 = vmatpush.msra.mxu0 0.0
    %1669 = vmatpush.msra.mxu0 0.0
    %1670 = vmatpush.msra.mxu0 0.0
    %1671 = vmatpush.msra.mxu0 0.0
    %1672 = vmatpush.msra.mxu0 0.0
    %1673 = vmatpush.msra.mxu0 0.0
    %1674 = vmatpush.msra.mxu0 0.0
    %1675 = vmatpush.msra.mxu0 0.0
    %1676 = vmatpush.msra.mxu0 %v57
    %1677 = vmatpush.msra.mxu0 %v56
    %1678 = vmatpush.msra.mxu0 %v55
    %1679 = vmatpush.msra.mxu0 %v54
    %1680 = vmatmul.f32.gmra.mxu0 %v1489
    %v1681 = vpop.f32.mrf.mxu0
    %v1682 = vadd.f32 0.0, %v1681
    %1683 = vdwg.mxu0
    %1685 = vrot.lane.b32.xlu0 %v1682, 96
    %v1686 = vpop.permute.xlu0 %1685
    %v1688 = vadd.f32 %v1553, %v1686
    %v1689 = vxor.u32 %v1688, 2147483648
    %v1690 = vmul.f32 %v1689, 1.442695
    %v1691 = vpow.pop %v1690
    %v1692 = vadd.f32 %v1691, 1.0
    %v1693 = vrcp.pop %v1692
    %v1694 = vmul.f32 %v1692, %v1693
    %v1695 = vsub.f32 1.0, %v1694
    %v1696 = vmul.f32 %v1693, %v1695
    %v1697 = vadd.f32 %v1693, %v1696
    %vm1698 = vweird.f32 %v1692
    %vm1699 = vweird.f32 %v1693
    %vm1700 = vmor %vm1698, %vm1699
    %v1701 = vsel %vm1700, %v1693, %v1697
    %v1702 = vand.u32 2147483647, %v1692
    %vm1703 = vcmp.eq.f32.partialorder %v1702, 8.507059e+37
    %v1704 = vand.u32 %v1692, 2147483648
    %v1705 = vor.u32 1.1754944e-38, %v1704
    %v1706 = vsel %vm1703, %v1705, %v1701
    %v1707 = vmul.f32 1.0, %v1706
    %v1708 = vmul.f32 %v1637, %v1479
    %1710 = vrot.lane.b32.xlu0 %v1663, 64
    %v1711 = vpop.permute.xlu0 %1710
    %v1713 = vmul.f32 %v1593, %v1711
    %1715 = vrot.lane.b32.xlu0 %v1713, 32
    %v1716 = vpop.permute.xlu0 %1715
    %v1718 = vadd.f32 %v1708, %v1716
    %v1719 = vtanh.pop %v1718
    %1721 = vrot.lane.b32.xlu0 %v1719, 64
    %v1722 = vpop.permute.xlu0 %1721
    %v1724 = vmul.f32 %v1707, %v1722
    %1726 = vrot.lane.b32.xlu0 %v1724, 32
    %v1727 = vpop.permute.xlu0 %1726
    %v1728 = vsel %vm108, %v1727, 0
    %1730 = vmatpush.msra.mxu0 0.0
    %1731 = vmatpush.msra.mxu0 0.0
    %1732 = vmatpush.msra.mxu0 0.0
    %1733 = vmatpush.msra.mxu0 0.0
    %1734 = vmatpush.msra.mxu0 0.0
    %1735 = vmatpush.msra.mxu0 0.0
    %1736 = vmatpush.msra.mxu0 0.0
    %1737 = vmatpush.msra.mxu0 0.0
    %1738 = vmatpush.msra.mxu0 0.0
    %1739 = vmatpush.msra.mxu0 0.0
    %1740 = vmatpush.msra.mxu0 0.0
    %1741 = vmatpush.msra.mxu0 0.0
    %1742 = vmatpush.msra.mxu0 %v61
    %1743 = vmatpush.msra.mxu0 %v60
    %1744 = vmatpush.msra.mxu0 %v59
    %1745 = vmatpush.msra.mxu0 %v58
    %1746 = vmatmul.f32.gmra.mxu0 %v1728
    %v1747 = vpop.f32.mrf.mxu0
    %v1748 = vadd.f32 0.0, %v1747
    %1749 = vdwg.mxu0
    %v1750 = vtanh.pop %v1748
    %v1751 = vmul.f32 %v1750, %v314
    %v1752 = vsel %vm317, %v1751, 0.0
    %1753 = vadd.xlane.f32.xlu0 %v1752
    %v1754 = vpop.xlane.xlu0 %1753
    %s1755 = sld [smem:[#allocation2 + $0x380]]
    %s1756 = scalar_lea.vmem %s1, %s1755
    %v1757 = vld [vmem:[%s1756] sm:$0x1]
    %s1758 = sld [smem:[#allocation2 + $0x381]]
    %s1759 = scalar_lea.vmem %s1, %s1758
    %v1760 = vld [vmem:[%s1759] sm:$0x1]
    %s1761 = sld [smem:[#allocation2 + $0x382]]
    %s1762 = scalar_lea.vmem %s1, %s1761
    %v1763 = vld [vmem:[%s1762] sm:$0x1]
    %s1764 = sld [smem:[#allocation2 + $0x383]]
    %s1765 = scalar_lea.vmem %s1, %s1764
    %v1766 = vld [vmem:[%s1765] sm:$0x1]
    %s1767 = sld [smem:[#allocation2 + $0x384]]
    %s1768 = scalar_lea.vmem %s1, %s1767
    %v1769 = vld [vmem:[%s1768] sm:$0x1]
    %s1770 = sld [smem:[#allocation2 + $0x385]]
    %s1771 = scalar_lea.vmem %s1, %s1770
    %v1772 = vld [vmem:[%s1771] sm:$0x1]
    %v1774 = vperm.slane %v1760, 0
    %v1777 = vperm.slane %v1763, 0
    %v1780 = vperm.slane %v1766, 0
    %v1783 = vperm.slane %v1769, 0
    %v1786 = vperm.slane %v1772, 0
    %v1788 = vsel %vm98, %v1757, %v1774
    %v1789 = vsel %vm100, %v1788, %v1777
    %v1790 = vsel %vm102, %v1789, %v1780
    %v1791 = vsel %vm104, %v1790, %v1783
    %v1792 = vsel %vm106, %v1791, %v1786
    %1793 = vmatpush.msra.mxu0 0.0
    %1794 = vmatpush.msra.mxu0 0.0
    %1795 = vmatpush.msra.mxu0 0.0
    %1796 = vmatpush.msra.mxu0 0.0
    %1797 = vmatpush.msra.mxu0 0.0
    %1798 = vmatpush.msra.mxu0 0.0
    %1799 = vmatpush.msra.mxu0 0.0
    %1800 = vmatpush.msra.mxu0 0.0
    %1801 = vmatpush.msra.mxu0 0.0
    %1802 = vmatpush.msra.mxu0 0.0
    %1803 = vmatpush.msra.mxu0 0.0
    %1804 = vmatpush.msra.mxu0 0.0
    %1805 = vmatpush.msra.mxu0 %v42
    %1806 = vmatpush.msra.mxu0 %v41
    %1807 = vmatpush.msra.mxu0 %v40
    %1808 = vmatpush.msra.mxu0 %v39
    %1809 = vmatmul.f32.gmra.mxu0 %v1728
    %v1810 = vpop.f32.mrf.mxu0
    %v1811 = vadd.f32 0.0, %v1810
    %1812 = vdwg.mxu0
    %v1813 = vadd.f32 %v1792, %v1811
    %v1814 = vxor.u32 %v1813, 2147483648
    %v1815 = vmul.f32 %v1814, 1.442695
    %v1816 = vpow.pop %v1815
    %v1817 = vadd.f32 %v1816, 1.0
    %v1818 = vrcp.pop %v1817
    %v1819 = vmul.f32 %v1817, %v1818
    %v1820 = vsub.f32 1.0, %v1819
    %v1821 = vmul.f32 %v1818, %v1820
    %v1822 = vadd.f32 %v1818, %v1821
    %vm1823 = vweird.f32 %v1817
    %vm1824 = vweird.f32 %v1818
    %vm1825 = vmor %vm1823, %vm1824
    %v1826 = vsel %vm1825, %v1818, %v1822
    %v1827 = vand.u32 2147483647, %v1817
    %vm1828 = vcmp.eq.f32.partialorder %v1827, 8.507059e+37
    %v1829 = vand.u32 %v1817, 2147483648
    %v1830 = vor.u32 1.1754944e-38, %v1829
    %v1831 = vsel %vm1828, %v1830, %v1826
    %v1832 = vmul.f32 1.0, %v1831
    %1833 = vmatpush.msra.mxu0 0.0
    %1834 = vmatpush.msra.mxu0 0.0
    %1835 = vmatpush.msra.mxu0 0.0
    %1836 = vmatpush.msra.mxu0 0.0
    %1837 = vmatpush.msra.mxu0 0.0
    %1838 = vmatpush.msra.mxu0 0.0
    %1839 = vmatpush.msra.mxu0 0.0
    %1840 = vmatpush.msra.mxu0 0.0
    %1841 = vmatpush.msra.mxu0 0.0
    %1842 = vmatpush.msra.mxu0 0.0
    %1843 = vmatpush.msra.mxu0 0.0
    %1844 = vmatpush.msra.mxu0 0.0
    %1845 = vmatpush.msra.mxu0 %v47
    %1846 = vmatpush.msra.mxu0 %v46
    %1847 = vmatpush.msra.mxu0 %v45
    %1848 = vmatpush.msra.mxu0 %v44
    %1849 = vmatmul.f32.gmra.mxu0 %v1728
    %v1850 = vpop.f32.mrf.mxu0
    %v1851 = vadd.f32 0.0, %v1850
    %1852 = vdwg.mxu0
    %1854 = vrot.lane.b32.xlu0 %v1851, 32
    %v1855 = vpop.permute.xlu0 %1854
    %v1857 = vadd.f32 %v1792, %v1855
    %v1858 = vxor.u32 %v1857, 2147483648
    %v1859 = vmul.f32 %v1858, 1.442695
    %v1860 = vpow.pop %v1859
    %v1861 = vadd.f32 %v1860, 1.0
    %v1862 = vrcp.pop %v1861
    %v1863 = vmul.f32 %v1861, %v1862
    %v1864 = vsub.f32 1.0, %v1863
    %v1865 = vmul.f32 %v1862, %v1864
    %v1866 = vadd.f32 %v1862, %v1865
    %vm1867 = vweird.f32 %v1861
    %vm1868 = vweird.f32 %v1862
    %vm1869 = vmor %vm1867, %vm1868
    %v1870 = vsel %vm1869, %v1862, %v1866
    %v1871 = vand.u32 2147483647, %v1861
    %vm1872 = vcmp.eq.f32.partialorder %v1871, 8.507059e+37
    %v1873 = vand.u32 %v1861, 2147483648
    %v1874 = vor.u32 1.1754944e-38, %v1873
    %v1875 = vsel %vm1872, %v1874, %v1870
    %v1876 = vmul.f32 1.0, %v1875
    %1877 = vmatpush.msra.mxu0 0.0
    %1878 = vmatpush.msra.mxu0 0.0
    %1879 = vmatpush.msra.mxu0 0.0
    %1880 = vmatpush.msra.mxu0 0.0
    %1881 = vmatpush.msra.mxu0 0.0
    %1882 = vmatpush.msra.mxu0 0.0
    %1883 = vmatpush.msra.mxu0 0.0
    %1884 = vmatpush.msra.mxu0 0.0
    %1885 = vmatpush.msra.mxu0 0.0
    %1886 = vmatpush.msra.mxu0 0.0
    %1887 = vmatpush.msra.mxu0 0.0
    %1888 = vmatpush.msra.mxu0 0.0
    %1889 = vmatpush.msra.mxu0 %v52
    %1890 = vmatpush.msra.mxu0 %v51
    %1891 = vmatpush.msra.mxu0 %v50
    %1892 = vmatpush.msra.mxu0 %v49
    %1893 = vmatmul.f32.gmra.mxu0 %v1728
    %v1894 = vpop.f32.mrf.mxu0
    %v1895 = vadd.f32 0.0, %v1894
    %1896 = vdwg.mxu0
    %1898 = vrot.lane.b32.xlu0 %v1895, 64
    %v1899 = vpop.permute.xlu0 %1898
    %v1901 = vadd.f32 %v1792, %v1899
    %v1902 = vtanh.pop %v1901
    %1903 = vmatpush.msra.mxu0 0.0
    %1904 = vmatpush.msra.mxu0 0.0
    %1905 = vmatpush.msra.mxu0 0.0
    %1906 = vmatpush.msra.mxu0 0.0
    %1907 = vmatpush.msra.mxu0 0.0
    %1908 = vmatpush.msra.mxu0 0.0
    %1909 = vmatpush.msra.mxu0 0.0
    %1910 = vmatpush.msra.mxu0 0.0
    %1911 = vmatpush.msra.mxu0 0.0
    %1912 = vmatpush.msra.mxu0 0.0
    %1913 = vmatpush.msra.mxu0 0.0
    %1914 = vmatpush.msra.mxu0 0.0
    %1915 = vmatpush.msra.mxu0 %v57
    %1916 = vmatpush.msra.mxu0 %v56
    %1917 = vmatpush.msra.mxu0 %v55
    %1918 = vmatpush.msra.mxu0 %v54
    %1919 = vmatmul.f32.gmra.mxu0 %v1728
    %v1920 = vpop.f32.mrf.mxu0
    %v1921 = vadd.f32 0.0, %v1920
    %1922 = vdwg.mxu0
    %1924 = vrot.lane.b32.xlu0 %v1921, 96
    %v1925 = vpop.permute.xlu0 %1924
    %v1927 = vadd.f32 %v1792, %v1925
    %v1928 = vxor.u32 %v1927, 2147483648
    %v1929 = vmul.f32 %v1928, 1.442695
    %v1930 = vpow.pop %v1929
    %v1931 = vadd.f32 %v1930, 1.0
    %v1932 = vrcp.pop %v1931
    %v1933 = vmul.f32 %v1931, %v1932
    %v1934 = vsub.f32 1.0, %v1933
    %v1935 = vmul.f32 %v1932, %v1934
    %v1936 = vadd.f32 %v1932, %v1935
    %vm1937 = vweird.f32 %v1931
    %vm1938 = vweird.f32 %v1932
    %vm1939 = vmor %vm1937, %vm1938
    %v1940 = vsel %vm1939, %v1932, %v1936
    %v1941 = vand.u32 2147483647, %v1931
    %vm1942 = vcmp.eq.f32.partialorder %v1941, 8.507059e+37
    %v1943 = vand.u32 %v1931, 2147483648
    %v1944 = vor.u32 1.1754944e-38, %v1943
    %v1945 = vsel %vm1942, %v1944, %v1940
    %v1946 = vmul.f32 1.0, %v1945
    %v1947 = vmul.f32 %v1876, %v1718
    %1949 = vrot.lane.b32.xlu0 %v1902, 64
    %v1950 = vpop.permute.xlu0 %1949
    %v1952 = vmul.f32 %v1832, %v1950
    %1954 = vrot.lane.b32.xlu0 %v1952, 32
    %v1955 = vpop.permute.xlu0 %1954
    %v1957 = vadd.f32 %v1947, %v1955
    %v1958 = vtanh.pop %v1957
    %1960 = vrot.lane.b32.xlu0 %v1958, 64
    %v1961 = vpop.permute.xlu0 %1960
    %v1963 = vmul.f32 %v1946, %v1961
    %1965 = vrot.lane.b32.xlu0 %v1963, 32
    %v1966 = vpop.permute.xlu0 %1965
    %v1967 = vsel %vm108, %v1966, 0
    %1969 = vmatpush.msra.mxu0 0.0
    %1970 = vmatpush.msra.mxu0 0.0
    %1971 = vmatpush.msra.mxu0 0.0
    %1972 = vmatpush.msra.mxu0 0.0
    %1973 = vmatpush.msra.mxu0 0.0
    %1974 = vmatpush.msra.mxu0 0.0
    %1975 = vmatpush.msra.mxu0 0.0
    %1976 = vmatpush.msra.mxu0 0.0
    %1977 = vmatpush.msra.mxu0 0.0
    %1978 = vmatpush.msra.mxu0 0.0
    %1979 = vmatpush.msra.mxu0 0.0
    %1980 = vmatpush.msra.mxu0 0.0
    %1981 = vmatpush.msra.mxu0 %v61
    %1982 = vmatpush.msra.mxu0 %v60
    %1983 = vmatpush.msra.mxu0 %v59
    %1984 = vmatpush.msra.mxu0 %v58
    %1985 = vmatmul.f32.gmra.mxu0 %v1967
    %v1986 = vpop.f32.mrf.mxu0
    %v1987 = vadd.f32 0.0, %v1986
    %1988 = vdwg.mxu0
    %v1989 = vtanh.pop %v1987
    %v1990 = vmul.f32 %v1989, %v314
    %v1991 = vsel %vm317, %v1990, 0.0
    %1992 = vadd.xlane.f32.xlu0 %v1991
    %v1993 = vpop.xlane.xlu0 %1992
    %vm1994 = vcmask 7168
    %v1995 = vsel %vm1994, %v320, %v559
    %vm1996 = vcmask 15360
    %v1997 = vsel %vm1996, %v1995, %v798
    %vm1998 = vcmask 23552
    %v1999 = vsel %vm1998, %v1997, %v1037
    %vm2000 = vcmask 31744
    %v2001 = vsel %vm2000, %v1999, %v1276
    %vm2002 = vcmask 39936
    %v2003 = vsel %vm2002, %v2001, %v1515
    %vm2004 = vcmask 48128
    %v2005 = vsel %vm2004, %v2003, %v1754
    %vm2006 = vcmask 56320
    %v2007 = vsel %vm2006, %v2005, %v1993
    %vm2008 = vcmask 58368
    %v2009 = vsel %vm2008, %v2007, -inf
    %2010 = vmax.xlane.f32.xlu0 %v2009
    %v2011 = vpop.xlane.xlu0 %2010
    %v2012 = vsub.f32 %v2007, %v2011
    %v2013 = vmul.f32 %v2012, 1.442695
    %v2014 = vpow.pop %v2013
    %v2015 = vsel %vm2008, %v2014, 0.0
    %2016 = vadd.xlane.f32.xlu0 %v2015
    %v2017 = vpop.xlane.xlu0 %2016
    %v2018 = vrcp.pop %v2017
    %v2019 = vmul.f32 %v2014, %v2018
    %2021 = vset.pattern.permute.xlu0 0
    %2022 = vperm.xlu0 %2021, %v2019
    %v2023 = vpop.permute.xlu0 %2022
    %v2025 = vmul.f32 %v2023, %v286
    %v2026 = vadd.f32 %v2025, 0.0
    %2027 = vset.pattern.permute.xlu0 1
    %2028 = vperm.xlu0 %2027, %v2019
    %v2029 = vpop.permute.xlu0 %2028
    %v2031 = vmul.f32 %v2029, %v529
    %v2032 = vadd.f32 %v2026, %v2031
    %2033 = vset.pattern.permute.xlu0 2
    %2034 = vperm.xlu0 %2033, %v2019
    %v2035 = vpop.permute.xlu0 %2034
    %v2037 = vmul.f32 %v2035, %v768
    %v2038 = vadd.f32 %v2032, %v2037
    %2039 = vset.pattern.permute.xlu0 3
    %2040 = vperm.xlu0 %2039, %v2019
    %v2041 = vpop.permute.xlu0 %2040
    %v2043 = vmul.f32 %v2041, %v1007
    %v2044 = vadd.f32 %v2038, %v2043
    %2045 = vset.pattern.permute.xlu0 4
    %2046 = vperm.xlu0 %2045, %v2019
    %v2047 = vpop.permute.xlu0 %2046
    %v2049 = vmul.f32 %v2047, %v1246
    %v2050 = vadd.f32 %v2044, %v2049
    %2051 = vset.pattern.permute.xlu0 5
    %2052 = vperm.xlu0 %2051, %v2019
    %v2053 = vpop.permute.xlu0 %2052
    %v2055 = vmul.f32 %v2053, %v1485
    %v2056 = vadd.f32 %v2050, %v2055
    %2057 = vset.pattern.permute.xlu0 6
    %2058 = vperm.xlu0 %2057, %v2019
    %v2059 = vpop.permute.xlu0 %2058
    %v2061 = vmul.f32 %v2059, %v1724
    %v2062 = vadd.f32 %v2056, %v2061
    %2063 = vset.pattern.permute.xlu0 7
    %2064 = vperm.xlu0 %2063, %v2019
    %v2065 = vpop.permute.xlu0 %2064
    %v2067 = vmul.f32 %v2065, %v1963
    %v2068 = vadd.f32 %v2062, %v2067
    %v2069 = vmul.f32 %v2019, %v2019
    %v2070 = vsel %vm2008, %v2069, 0.0
    %2071 = vadd.xlane.f32.xlu0 %v2070
    %v2072 = vpop.xlane.xlu0 %2071
    %v2073 = vsub.f32 %v2072, 1.0
    %v2074 = vmul.f32 %v2073, %v2073
    %v2075 = vsel %vm100, %v2074, 0.0
    %v2076 = vrot.slane %v2075, 4
    %v2077 = vadd.f32 %v2075, %v2076
    %v2078 = vrot.slane %v2077, 2
    %v2079 = vadd.f32 %v2077, %v2078
    %v2080 = vrot.slane %v2079, 1
    %v2081 = vadd.f32 %v2079, %v2080
    %v2082 = vmul.f32 %v2081, 0.5
    %v2083 = vrot.slane %v1963, 2
    %v2085 = vsub.f32 %v2068, %v2083
    %v2086 = vadd.f32 %v2085, 1e-06
    %v2087 = vand.u32 2147483647, %v2086
    %2089 = vrot.lane.b32.xlu0 %v2087, 32
    %v2090 = vpop.permute.xlu0 %2089
    %vm2092 = vcmask 254976
    %v2093 = vsel %vm2092, %v2090, 0.0
    %2094 = vadd.xlane.f32.xlu0 %v2093
    %v2095 = vpop.xlane.xlu0 %2094
    %v2096 = vrot.slane %v1963, 4
    %v2098 = vsub.f32 %v2068, %v2096
    %v2099 = vadd.f32 %v2098, 1e-06
    %v2100 = vand.u32 2147483647, %v2099
    %2102 = vrot.lane.b32.xlu0 %v2100, 32
    %v2103 = vpop.permute.xlu0 %2102
    %v2105 = vsel %vm2092, %v2103, 0.0
    %2106 = vadd.xlane.f32.xlu0 %v2105
    %v2107 = vpop.xlane.xlu0 %2106
    %2108 = vst [vmem:[%s7] sm:$0xff] 0.0
    %v2109 = vsel %vm1994, %v2095, %v2107
    %vm2110 = vcmask 9216
    %2111 = vst.msk [vmem:[%s7] sm:$0x3] %vm2110, %v2109
    %vm2112 = vcmask 16400
    %2113 = vst.msk [vmem:[%s7] sm:$0x1] %vm2112, %v2082
    // Predicated region
    $region34: #{answer_selection_forward.1} parent=1 // pred_check
      _
    $region35: #{answer_selection_forward.1} parent=1 // pred_check_branch
      %2115 = sbr.rel (0) target = $region37
    $region36: #{answer_selection_forward.1} parent=1 // pred_region
      _
    $region37: #{answer_selection_forward.1} parent=1 // pred_fallthru
      _
    // Predicated region
    $region38: #{answer_selection_forward.1} parent=1 // pred_check
      _
    $region39: #{answer_selection_forward.1} parent=1 // pred_check_branch
      %2117 = sbr.rel (0) target = $region41
    $region40: #{answer_selection_forward.1} parent=1 // pred_region
      _
    $region41: #{answer_selection_forward.1} parent=1 // pred_fallthru
      _
    %2118 = vsyncpa [#allocation3], 1

</llo_original>
